<compile_context>
chip_gen: v5e
topology: v5e:2x2
jax: 0.10.0
libtpu: 0.0.40
codegen_flags: <defaults>
</compile_context>

<pallas_src>
import functools

import jax
import jax.numpy as jnp
from jax.experimental import pallas as pl
from jax.experimental.pallas import tpu as pltpu

_EPS = 1e-5  # nn.InstanceNorm2d default


def _round_up(v, m):
    return ((v + m - 1) // m) * m


# ---------------------------------------------------------------------------
# Fused kernel: conv1 + IN + ReLU + reflect-pad + conv2 + IN + residual
# (one image per grid step; InstanceNorm reduction stays local to the block)
# ---------------------------------------------------------------------------
def _residual_block_kernel(xpad_ref, w1_ref, w2_ref, xres_ref, o_ref, h1p_ref,
                           *, h, w, c, cpad):
    hw = h * w
    f32 = jnp.float32

    def conv3x3(xp_f32, w_ref):
        # Implicit GEMM: 9 shifted (HW, Cpad) views x (Cpad, Cpad) tap weights.
        acc = jnp.zeros((hw, cpad), f32)
        for di in range(3):
            for dj in range(3):
                lhs = xp_f32[di:di + h, dj:dj + w, :].reshape(hw, cpad)
                acc = acc + jnp.dot(lhs.astype(jnp.bfloat16),
                                    w_ref[di * 3 + dj],
                                    preferred_element_type=f32)
        return acc

    def instance_norm(y):                       # per-channel over the H*W rows
        mean = jnp.mean(y, axis=0, keepdims=True)
        d = y - mean
        var = jnp.mean(d * d, axis=0, keepdims=True)   # biased var (torch IN)
        return d * jax.lax.rsqrt(var + _EPS)

    # ----- layer 1 -----
    xp = xpad_ref[0].astype(f32)                          # (Hp, Wp, Cpad)
    h1 = jnp.maximum(instance_norm(conv3x3(xp, w1_ref)), 0.0).reshape(h, w, cpad)

    # ----- in-kernel ReflectionPad2d(1) of h1 into VMEM scratch -----
    h1p_ref[1:h + 1, 1:w + 1, :] = h1                                 # interior
    h1p_ref[0:1, 1:w + 1, :] = h1[1:2]                                # top
    h1p_ref[h + 1:h + 2, 1:w + 1, :] = h1[h - 2:h - 1]                # bottom
    h1p_ref[1:h + 1, 0:1, :] = h1[:, 1:2, :]                          # left
    h1p_ref[1:h + 1, w + 1:w + 2, :] = h1[:, w - 2:w - 1, :]          # right
    h1p_ref[0:1, 0:1, :] = h1[1:2, 1:2, :]                            # corners
    h1p_ref[0:1, w + 1:w + 2, :] = h1[1:2, w - 2:w - 1, :]
    h1p_ref[h + 1:h + 2, 0:1, :] = h1[h - 2:h - 1, 1:2, :]
    h1p_ref[h + 1:h + 2, w + 1:w + 2, :] = h1[h - 2:h - 1, w - 2:w - 1, :]

    # ----- layer 2 -----
    y2 = instance_norm(conv3x3(h1p_ref[...], w2_ref))                # (HW, Cpad)

    # ----- residual add on the first c lanes only; lane-dense full store -----
    o_ref[0] = y2.astype(o_ref.dtype)
    o_ref[0, :, 0:c] = (y2[:, 0:c] + xres_ref[0].astype(f32)).astype(o_ref.dtype)


# ---------------------------------------------------------------------------
# Host-side glue
# ---------------------------------------------------------------------------
def _tap_weights(w_oihw, cpad):
    """OIHW conv weight -> (9, Cin_pad, Cout_pad) bf16 per-tap GEMM operands."""
    cout, cin, kh, kw = w_oihw.shape
    wm = jnp.transpose(w_oihw, (2, 3, 1, 0)).reshape(kh * kw, cin, cout)
    wm = jnp.pad(wm, ((0, 0), (0, cpad - cin), (0, cpad - cout)))
    return wm.astype(jnp.bfloat16)


def residual_block_pallas(x_nchw, w1, b1, w2, b2):
    # b1/b2 accepted for API parity with the PyTorch module but unused:
    # InstanceNorm2d (affine=False) subtracts the per-channel mean, so a
    # constant per-channel conv bias cancels exactly.
    del b1, b2
    n, c, h, w = x_nchw.shape
    assert h >= 2 and w >= 2, "ReflectionPad2d(1) needs H, W >= 2"
    hw = h * w
    hp, wp = h + 2, w + 2
    cpad = _round_up(c, 128)

    x_nhwc = jnp.transpose(x_nchw, (0, 2, 3, 1)).astype(jnp.float32)
    # Reflection pad (+2 rows/cols) + zero channel pad: tiny XLA glue on the raw
    # activation (NO im2col / 9x patch materialization).
    x_pad = jnp.pad(x_nhwc, ((0, 0), (1, 1), (1, 1), (0, 0)), mode="reflect")
    x_pad = jnp.pad(x_pad, ((0, 0), (0, 0), (0, 0), (0, cpad - c)))
    x_pad = x_pad.astype(jnp.bfloat16)                     # (N, Hp, Wp, Cpad)
    x_res = x_nhwc.reshape(n, hw, c)                       # f32, native C width

    w1m = _tap_weights(w1, cpad)                           # (9, Cpad, Cpad) bf16
    w2m = _tap_weights(w2, cpad)

    # VMEM budget: double-buffered streams + resident weights + pad scratch +
    # in-kernel f32 accumulator; explicit limit so the same kernel still
    # pipelines under v5e/v6e default scoped-VMEM configs.
    est = (2 * hp * wp * cpad * 2            # padded activation (bf16, x2 bufs)
           + 2 * 2 * 9 * cpad * cpad * 2     # two weight stacks (bf16, x2 bufs)
           + 2 * hw * c * 4                  # residual stream (f32, x2 bufs)
           + 2 * hw * cpad * 4               # output block (f32, x2 bufs)
           + hp * wp * cpad * 4              # reflect-pad scratch (f32)
           + 4 * hw * cpad * 4)              # GEMM accumulator / temporaries
    vmem_limit = int(min(max(2 * est, 32 * 1024 * 1024), 100 * 1024 * 1024))

    kernel = functools.partial(_residual_block_kernel, h=h, w=w, c=c, cpad=cpad)

    out = pl.pallas_call(
        kernel,
        out_shape=jax.ShapeDtypeStruct((n, hw, cpad), jnp.float32),
        grid_spec=pltpu.PrefetchScalarGridSpec(
            num_scalar_prefetch=0,
            grid=(n,),
            in_specs=[
                pl.BlockSpec((1, hp, wp, cpad), lambda i: (i, 0, 0, 0)),
                # Weights: constant-index blocks stay resident across steps
                # (still double-buffered by Pallas; small, acceptable).
                pl.BlockSpec((9, cpad, cpad), lambda i: (0, 0, 0)),
                pl.BlockSpec((9, cpad, cpad), lambda i: (0, 0, 0)),
                pl.BlockSpec((1, hw, c), lambda i: (i, 0, 0)),
            ],
            out_specs=pl.BlockSpec((1, hw, cpad), lambda i: (i, 0, 0)),
            scratch_shapes=[pltpu.VMEM((hp, wp, cpad), jnp.float32)],
        ),
        compiler_params=pltpu.CompilerParams(
            dimension_semantics=("parallel",),
            vmem_limit_bytes=vmem_limit,
        ),
    )(x_pad, w1m, w2m, x_res)

    out_nhwc = out[:, :, :c].reshape(n, h, w, c)
    return jnp.transpose(out_nhwc, (0, 3, 1, 2))           # back to NCHW


# ---------------------------------------------------------------------------
if __name__ == "__main__":
    key = jax.random.PRNGKey(0)
    kx, kw1, kb1, kw2, kb2 = jax.random.split(key, 5)

    N, C, H, W = 2, 4, 16, 16
    x = jax.random.normal(kx, (N, C, H, W), jnp.float32)
    # MyConv2D layers are constructed with zero weights (filled in externally
    # by the style meta-network); use deterministic random values so the
    # kernel computes something non-trivial.
    w1 = jax.random.normal(kw1, (C, C, 3, 3), jnp.float32) * 0.1
    b1 = jax.random.normal(kb1, (C,), jnp.float32) * 0.1
    w2 = jax.random.normal(kw2, (C, C, 3, 3), jnp.float32) * 0.1
    b2 = jax.random.normal(kb2, (C,), jnp.float32) * 0.1

    fwd = jax.jit(residual_block_pallas)
    out = jax.block_until_ready(fwd(x, w1, b1, w2, b2))

    # ---- pure-JAX f32 reference of the PyTorch module ----
    def _conv(xx, wt, bs):
        xp = jnp.pad(xx, ((0, 0), (0, 0), (1, 1), (1, 1)), mode="reflect")
        y = jax.lax.conv_general_dilated(
            xp, wt, (1, 1), "VALID",
            dimension_numbers=("NCHW", "OIHW", "NCHW"),
            precision=jax.lax.Precision.HIGHEST)
        return y + bs.reshape(1, -1, 1, 1)

    def _inorm(y):
        mean = y.mean(axis=(2, 3), keepdims=True)
        var = ((y - mean) ** 2).mean(axis=(2, 3), keepdims=True)
        return (y - mean) * jax.lax.rsqrt(var + _EPS)

    hh = jax.nn.relu(_inorm(_conv(x, w1, b1)))
    ref = _inorm(_conv(hh, w2, b2)) + x

    assert out.shape == ref.shape, (out.shape, ref.shape)
    err = float(jnp.max(jnp.abs(out - ref)))
    # bf16 MXU operands (f32 accumulation) vs an f32/HIGHEST reference.
    assert jnp.allclose(out, ref, atol=3e-2, rtol=3e-2), f"max abs err {err}"
    print("KERNEL_OK")
</pallas_src>

<mosaic_0001>
module attributes {stable_mosaic.version = 11 : i64} {
  func.func @_residual_block_kernel(%arg0: i32, %arg1: memref<1x18x18x128xbf16, #tpu.memory_space<vmem>>, %arg2: memref<9x128x128xbf16, #tpu.memory_space<vmem>>, %arg3: memref<9x128x128xbf16, #tpu.memory_space<vmem>>, %arg4: memref<1x256x4xf32, #tpu.memory_space<vmem>>, %arg5: memref<1x256x128xf32, #tpu.memory_space<vmem>>, %arg6: memref<18x18x128xf32, #tpu.memory_space<vmem>>) attributes {dimension_semantics = [#tpu.dimension_semantics<parallel>], iteration_bounds = array<i64: 2>, scalar_prefetch = 0 : i64, scratch_operands = 1 : i64, tpu.core_type = #tpu.core_type<tc>, window_params = [{transform_indices = @transform_0, window_bounds = array<i64: 1, 18, 18, 128>}, {pipeline_mode = #tpu.pipeline_mode<synchronous>, transform_indices = @transform_1, window_bounds = array<i64: 9, 128, 128>}, {pipeline_mode = #tpu.pipeline_mode<synchronous>, transform_indices = @transform_2, window_bounds = array<i64: 9, 128, 128>}, {transform_indices = @transform_3, window_bounds = array<i64: 1, 256, 4>}, {transform_indices = @transform_4, window_bounds = array<i64: 1, 256, 128>}]} {
    %c0 = arith.constant 0 : index
    %c0_0 = arith.constant 0 : index
    %c0_1 = arith.constant 0 : index
    %c0_2 = arith.constant 0 : index
    %0 = vector.load %arg1[%c0, %c0_0, %c0_1, %c0_2] : memref<1x18x18x128xbf16, #tpu.memory_space<vmem>>, vector<1x18x18x128xbf16>
    %1 = vector.shape_cast %0 : vector<1x18x18x128xbf16> to vector<18x18x128xbf16>
    %2 = arith.extf %1 : vector<18x18x128xbf16> to vector<18x18x128xf32>
    %cst = arith.constant 0.000000e+00 : f32
    %3 = vector.broadcast %cst : f32 to vector<256x128xf32>
    %4 = vector.extract_strided_slice %2 {offsets = [0, 0, 0], sizes = [16, 16, 128], strides = [1, 1, 1]} : vector<18x18x128xf32> to vector<16x16x128xf32>
    %5 = vector.shape_cast %4 : vector<16x16x128xf32> to vector<256x128xf32>
    %6 = arith.truncf %5 : vector<256x128xf32> to vector<256x128xbf16>
    %c0_3 = arith.constant 0 : index
    %c0_4 = arith.constant 0 : index
    %c0_5 = arith.constant 0 : index
    %7 = vector.load %arg2[%c0_3, %c0_4, %c0_5] : memref<9x128x128xbf16, #tpu.memory_space<vmem>>, vector<1x128x128xbf16>
    %8 = vector.shape_cast %7 : vector<1x128x128xbf16> to vector<128x128xbf16>
    %cst_6 = arith.constant dense<0.000000e+00> : vector<256x128xf32>
    %9 = tpu.matmul %6, %8, %cst_6 {dimension_numbers = #tpu.dot_dimension_numbers<[1], [0], [0], [1], [0, 0, 1, 1], [], []>} : vector<256x128xbf16>, vector<128x128xbf16>, vector<256x128xf32> -> vector<256x128xf32>
    %10 = arith.addf %3, %9 : vector<256x128xf32>
    %11 = vector.extract_strided_slice %2 {offsets = [0, 1, 0], sizes = [16, 16, 128], strides = [1, 1, 1]} : vector<18x18x128xf32> to vector<16x16x128xf32>
    %12 = vector.shape_cast %11 : vector<16x16x128xf32> to vector<256x128xf32>
    %13 = arith.truncf %12 : vector<256x128xf32> to vector<256x128xbf16>
    %c1 = arith.constant 1 : index
    %c0_7 = arith.constant 0 : index
    %c0_8 = arith.constant 0 : index
    %14 = vector.load %arg2[%c1, %c0_7, %c0_8] : memref<9x128x128xbf16, #tpu.memory_space<vmem>>, vector<1x128x128xbf16>
    %15 = vector.shape_cast %14 : vector<1x128x128xbf16> to vector<128x128xbf16>
    %cst_9 = arith.constant dense<0.000000e+00> : vector<256x128xf32>
    %16 = tpu.matmul %13, %15, %cst_9 {dimension_numbers = #tpu.dot_dimension_numbers<[1], [0], [0], [1], [0, 0, 1, 1], [], []>} : vector<256x128xbf16>, vector<128x128xbf16>, vector<256x128xf32> -> vector<256x128xf32>
    %17 = arith.addf %10, %16 : vector<256x128xf32>
    %18 = vector.extract_strided_slice %2 {offsets = [0, 2, 0], sizes = [16, 16, 128], strides = [1, 1, 1]} : vector<18x18x128xf32> to vector<16x16x128xf32>
    %19 = vector.shape_cast %18 : vector<16x16x128xf32> to vector<256x128xf32>
    %20 = arith.truncf %19 : vector<256x128xf32> to vector<256x128xbf16>
    %c2 = arith.constant 2 : index
    %c0_10 = arith.constant 0 : index
    %c0_11 = arith.constant 0 : index
    %21 = vector.load %arg2[%c2, %c0_10, %c0_11] : memref<9x128x128xbf16, #tpu.memory_space<vmem>>, vector<1x128x128xbf16>
    %22 = vector.shape_cast %21 : vector<1x128x128xbf16> to vector<128x128xbf16>
    %cst_12 = arith.constant dense<0.000000e+00> : vector<256x128xf32>
    %23 = tpu.matmul %20, %22, %cst_12 {dimension_numbers = #tpu.dot_dimension_numbers<[1], [0], [0], [1], [0, 0, 1, 1], [], []>} : vector<256x128xbf16>, vector<128x128xbf16>, vector<256x128xf32> -> vector<256x128xf32>
    %24 = arith.addf %17, %23 : vector<256x128xf32>
    %25 = vector.extract_strided_slice %2 {offsets = [1, 0, 0], sizes = [16, 16, 128], strides = [1, 1, 1]} : vector<18x18x128xf32> to vector<16x16x128xf32>
    %26 = vector.shape_cast %25 : vector<16x16x128xf32> to vector<256x128xf32>
    %27 = arith.truncf %26 : vector<256x128xf32> to vector<256x128xbf16>
    %c3 = arith.constant 3 : index
    %c0_13 = arith.constant 0 : index
    %c0_14 = arith.constant 0 : index
    %28 = vector.load %arg2[%c3, %c0_13, %c0_14] : memref<9x128x128xbf16, #tpu.memory_space<vmem>>, vector<1x128x128xbf16>
    %29 = vector.shape_cast %28 : vector<1x128x128xbf16> to vector<128x128xbf16>
    %cst_15 = arith.constant dense<0.000000e+00> : vector<256x128xf32>
    %30 = tpu.matmul %27, %29, %cst_15 {dimension_numbers = #tpu.dot_dimension_numbers<[1], [0], [0], [1], [0, 0, 1, 1], [], []>} : vector<256x128xbf16>, vector<128x128xbf16>, vector<256x128xf32> -> vector<256x128xf32>
    %31 = arith.addf %24, %30 : vector<256x128xf32>
    %32 = vector.extract_strided_slice %2 {offsets = [1, 1, 0], sizes = [16, 16, 128], strides = [1, 1, 1]} : vector<18x18x128xf32> to vector<16x16x128xf32>
    %33 = vector.shape_cast %32 : vector<16x16x128xf32> to vector<256x128xf32>
    %34 = arith.truncf %33 : vector<256x128xf32> to vector<256x128xbf16>
    %c4 = arith.constant 4 : index
    %c0_16 = arith.constant 0 : index
    %c0_17 = arith.constant 0 : index
    %35 = vector.load %arg2[%c4, %c0_16, %c0_17] : memref<9x128x128xbf16, #tpu.memory_space<vmem>>, vector<1x128x128xbf16>
    %36 = vector.shape_cast %35 : vector<1x128x128xbf16> to vector<128x128xbf16>
    %cst_18 = arith.constant dense<0.000000e+00> : vector<256x128xf32>
    %37 = tpu.matmul %34, %36, %cst_18 {dimension_numbers = #tpu.dot_dimension_numbers<[1], [0], [0], [1], [0, 0, 1, 1], [], []>} : vector<256x128xbf16>, vector<128x128xbf16>, vector<256x128xf32> -> vector<256x128xf32>
    %38 = arith.addf %31, %37 : vector<256x128xf32>
    %39 = vector.extract_strided_slice %2 {offsets = [1, 2, 0], sizes = [16, 16, 128], strides = [1, 1, 1]} : vector<18x18x128xf32> to vector<16x16x128xf32>
    %40 = vector.shape_cast %39 : vector<16x16x128xf32> to vector<256x128xf32>
    %41 = arith.truncf %40 : vector<256x128xf32> to vector<256x128xbf16>
    %c5 = arith.constant 5 : index
    %c0_19 = arith.constant 0 : index
    %c0_20 = arith.constant 0 : index
    %42 = vector.load %arg2[%c5, %c0_19, %c0_20] : memref<9x128x128xbf16, #tpu.memory_space<vmem>>, vector<1x128x128xbf16>
    %43 = vector.shape_cast %42 : vector<1x128x128xbf16> to vector<128x128xbf16>
    %cst_21 = arith.constant dense<0.000000e+00> : vector<256x128xf32>
    %44 = tpu.matmul %41, %43, %cst_21 {dimension_numbers = #tpu.dot_dimension_numbers<[1], [0], [0], [1], [0, 0, 1, 1], [], []>} : vector<256x128xbf16>, vector<128x128xbf16>, vector<256x128xf32> -> vector<256x128xf32>
    %45 = arith.addf %38, %44 : vector<256x128xf32>
    %46 = vector.extract_strided_slice %2 {offsets = [2, 0, 0], sizes = [16, 16, 128], strides = [1, 1, 1]} : vector<18x18x128xf32> to vector<16x16x128xf32>
    %47 = vector.shape_cast %46 : vector<16x16x128xf32> to vector<256x128xf32>
    %48 = arith.truncf %47 : vector<256x128xf32> to vector<256x128xbf16>
    %c6 = arith.constant 6 : index
    %c0_22 = arith.constant 0 : index
    %c0_23 = arith.constant 0 : index
    %49 = vector.load %arg2[%c6, %c0_22, %c0_23] : memref<9x128x128xbf16, #tpu.memory_space<vmem>>, vector<1x128x128xbf16>
    %50 = vector.shape_cast %49 : vector<1x128x128xbf16> to vector<128x128xbf16>
    %cst_24 = arith.constant dense<0.000000e+00> : vector<256x128xf32>
    %51 = tpu.matmul %48, %50, %cst_24 {dimension_numbers = #tpu.dot_dimension_numbers<[1], [0], [0], [1], [0, 0, 1, 1], [], []>} : vector<256x128xbf16>, vector<128x128xbf16>, vector<256x128xf32> -> vector<256x128xf32>
    %52 = arith.addf %45, %51 : vector<256x128xf32>
    %53 = vector.extract_strided_slice %2 {offsets = [2, 1, 0], sizes = [16, 16, 128], strides = [1, 1, 1]} : vector<18x18x128xf32> to vector<16x16x128xf32>
    %54 = vector.shape_cast %53 : vector<16x16x128xf32> to vector<256x128xf32>
    %55 = arith.truncf %54 : vector<256x128xf32> to vector<256x128xbf16>
    %c7 = arith.constant 7 : index
    %c0_25 = arith.constant 0 : index
    %c0_26 = arith.constant 0 : index
    %56 = vector.load %arg2[%c7, %c0_25, %c0_26] : memref<9x128x128xbf16, #tpu.memory_space<vmem>>, vector<1x128x128xbf16>
    %57 = vector.shape_cast %56 : vector<1x128x128xbf16> to vector<128x128xbf16>
    %cst_27 = arith.constant dense<0.000000e+00> : vector<256x128xf32>
    %58 = tpu.matmul %55, %57, %cst_27 {dimension_numbers = #tpu.dot_dimension_numbers<[1], [0], [0], [1], [0, 0, 1, 1], [], []>} : vector<256x128xbf16>, vector<128x128xbf16>, vector<256x128xf32> -> vector<256x128xf32>
    %59 = arith.addf %52, %58 : vector<256x128xf32>
    %60 = vector.extract_strided_slice %2 {offsets = [2, 2, 0], sizes = [16, 16, 128], strides = [1, 1, 1]} : vector<18x18x128xf32> to vector<16x16x128xf32>
    %61 = vector.shape_cast %60 : vector<16x16x128xf32> to vector<256x128xf32>
    %62 = arith.truncf %61 : vector<256x128xf32> to vector<256x128xbf16>
    %c8 = arith.constant 8 : index
    %c0_28 = arith.constant 0 : index
    %c0_29 = arith.constant 0 : index
    %63 = vector.load %arg2[%c8, %c0_28, %c0_29] : memref<9x128x128xbf16, #tpu.memory_space<vmem>>, vector<1x128x128xbf16>
    %64 = vector.shape_cast %63 : vector<1x128x128xbf16> to vector<128x128xbf16>
    %cst_30 = arith.constant dense<0.000000e+00> : vector<256x128xf32>
    %65 = tpu.matmul %62, %64, %cst_30 {dimension_numbers = #tpu.dot_dimension_numbers<[1], [0], [0], [1], [0, 0, 1, 1], [], []>} : vector<256x128xbf16>, vector<128x128xbf16>, vector<256x128xf32> -> vector<256x128xf32>
    %66 = arith.addf %59, %65 : vector<256x128xf32>
    %cst_31 = arith.constant dense<0.000000e+00> : vector<128xf32>
    %67 = vector.multi_reduction <add>, %66, %cst_31 [0] : vector<256x128xf32> to vector<128xf32>
    %68 = vector.shape_cast %67 : vector<128xf32> to vector<1x128xf32>
    %cst_32 = arith.constant 2.560000e+02 : f32
    %69 = vector.broadcast %cst_32 : f32 to vector<1x128xf32>
    %70 = arith.divf %68, %69 : vector<1x128xf32>
    %71 = vector.broadcast %70 : vector<1x128xf32> to vector<256x128xf32>
    %72 = arith.subf %66, %71 : vector<256x128xf32>
    %73 = arith.mulf %72, %72 : vector<256x128xf32>
    %cst_33 = arith.constant dense<0.000000e+00> : vector<128xf32>
    %74 = vector.multi_reduction <add>, %73, %cst_33 [0] : vector<256x128xf32> to vector<128xf32>
    %75 = vector.shape_cast %74 : vector<128xf32> to vector<1x128xf32>
    %cst_34 = arith.constant 2.560000e+02 : f32
    %76 = vector.broadcast %cst_34 : f32 to vector<1x128xf32>
    %77 = arith.divf %75, %76 : vector<1x128xf32>
    %cst_35 = arith.constant 9.99999974E-6 : f32
    %78 = vector.broadcast %cst_35 : f32 to vector<1x128xf32>
    %79 = arith.addf %77, %78 : vector<1x128xf32>
    %80 = math.rsqrt %79 : vector<1x128xf32>
    %81 = vector.broadcast %80 : vector<1x128xf32> to vector<256x128xf32>
    %82 = arith.mulf %72, %81 : vector<256x128xf32>
    %cst_36 = arith.constant 0.000000e+00 : f32
    %83 = vector.broadcast %cst_36 : f32 to vector<256x128xf32>
    %84 = arith.maximumf %82, %83 : vector<256x128xf32>
    %85 = vector.shape_cast %84 : vector<256x128xf32> to vector<16x16x128xf32>
    %c1_37 = arith.constant 1 : index
    %c1_38 = arith.constant 1 : index
    %c0_39 = arith.constant 0 : index
    %86 = vector.load %arg6[%c1_37, %c1_38, %c0_39] : memref<18x18x128xf32, #tpu.memory_space<vmem>>, vector<16x16x128xf32>
    tpu.vector_store %arg6[%c1_37, %c1_38, %c0_39], %85 {strides = array<i32>} : memref<18x18x128xf32, #tpu.memory_space<vmem>>, vector<16x16x128xf32>,
    %87 = vector.extract_strided_slice %85 {offsets = [1, 0, 0], sizes = [1, 16, 128], strides = [1, 1, 1]} : vector<16x16x128xf32> to vector<1x16x128xf32>
    %c0_40 = arith.constant 0 : index
    %c1_41 = arith.constant 1 : index
    %c0_42 = arith.constant 0 : index
    %88 = vector.load %arg6[%c0_40, %c1_41, %c0_42] : memref<18x18x128xf32, #tpu.memory_space<vmem>>, vector<1x16x128xf32>
    tpu.vector_store %arg6[%c0_40, %c1_41, %c0_42], %87 {strides = array<i32>} : memref<18x18x128xf32, #tpu.memory_space<vmem>>, vector<1x16x128xf32>,
    %89 = vector.extract_strided_slice %85 {offsets = [14, 0, 0], sizes = [1, 16, 128], strides = [1, 1, 1]} : vector<16x16x128xf32> to vector<1x16x128xf32>
    %c17 = arith.constant 17 : index
    %c1_43 = arith.constant 1 : index
    %c0_44 = arith.constant 0 : index
    %90 = vector.load %arg6[%c17, %c1_43, %c0_44] : memref<18x18x128xf32, #tpu.memory_space<vmem>>, vector<1x16x128xf32>
    tpu.vector_store %arg6[%c17, %c1_43, %c0_44], %89 {strides = array<i32>} : memref<18x18x128xf32, #tpu.memory_space<vmem>>, vector<1x16x128xf32>,
    %91 = vector.extract_strided_slice %85 {offsets = [0, 1, 0], sizes = [16, 1, 128], strides = [1, 1, 1]} : vector<16x16x128xf32> to vector<16x1x128xf32>
    %c1_45 = arith.constant 1 : index
    %c0_46 = arith.constant 0 : index
    %c0_47 = arith.constant 0 : index
    %92 = vector.load %arg6[%c1_45, %c0_46, %c0_47] : memref<18x18x128xf32, #tpu.memory_space<vmem>>, vector<16x1x128xf32>
    tpu.vector_store %arg6[%c1_45, %c0_46, %c0_47], %91 {strides = array<i32>} : memref<18x18x128xf32, #tpu.memory_space<vmem>>, vector<16x1x128xf32>,
    %93 = vector.extract_strided_slice %85 {offsets = [0, 14, 0], sizes = [16, 1, 128], strides = [1, 1, 1]} : vector<16x16x128xf32> to vector<16x1x128xf32>
    %c1_48 = arith.constant 1 : index
    %c17_49 = arith.constant 17 : index
    %c0_50 = arith.constant 0 : index
    %94 = vector.load %arg6[%c1_48, %c17_49, %c0_50] : memref<18x18x128xf32, #tpu.memory_space<vmem>>, vector<16x1x128xf32>
    tpu.vector_store %arg6[%c1_48, %c17_49, %c0_50], %93 {strides = array<i32>} : memref<18x18x128xf32, #tpu.memory_space<vmem>>, vector<16x1x128xf32>,
    %95 = vector.extract_strided_slice %85 {offsets = [1, 1, 0], sizes = [1, 1, 128], strides = [1, 1, 1]} : vector<16x16x128xf32> to vector<1x1x128xf32>
    %c0_51 = arith.constant 0 : index
    %c0_52 = arith.constant 0 : index
    %c0_53 = arith.constant 0 : index
    %96 = vector.load %arg6[%c0_51, %c0_52, %c0_53] : memref<18x18x128xf32, #tpu.memory_space<vmem>>, vector<1x1x128xf32>
    tpu.vector_store %arg6[%c0_51, %c0_52, %c0_53], %95 {strides = array<i32>} : memref<18x18x128xf32, #tpu.memory_space<vmem>>, vector<1x1x128xf32>,
    %97 = vector.extract_strided_slice %85 {offsets = [1, 14, 0], sizes = [1, 1, 128], strides = [1, 1, 1]} : vector<16x16x128xf32> to vector<1x1x128xf32>
    %c0_54 = arith.constant 0 : index
    %c17_55 = arith.constant 17 : index
    %c0_56 = arith.constant 0 : index
    %98 = vector.load %arg6[%c0_54, %c17_55, %c0_56] : memref<18x18x128xf32, #tpu.memory_space<vmem>>, vector<1x1x128xf32>
    tpu.vector_store %arg6[%c0_54, %c17_55, %c0_56], %97 {strides = array<i32>} : memref<18x18x128xf32, #tpu.memory_space<vmem>>, vector<1x1x128xf32>,
    %99 = vector.extract_strided_slice %85 {offsets = [14, 1, 0], sizes = [1, 1, 128], strides = [1, 1, 1]} : vector<16x16x128xf32> to vector<1x1x128xf32>
    %c17_57 = arith.constant 17 : index
    %c0_58 = arith.constant 0 : index
    %c0_59 = arith.constant 0 : index
    %100 = vector.load %arg6[%c17_57, %c0_58, %c0_59] : memref<18x18x128xf32, #tpu.memory_space<vmem>>, vector<1x1x128xf32>
    tpu.vector_store %arg6[%c17_57, %c0_58, %c0_59], %99 {strides = array<i32>} : memref<18x18x128xf32, #tpu.memory_space<vmem>>, vector<1x1x128xf32>,
    %101 = vector.extract_strided_slice %85 {offsets = [14, 14, 0], sizes = [1, 1, 128], strides = [1, 1, 1]} : vector<16x16x128xf32> to vector<1x1x128xf32>
    %c17_60 = arith.constant 17 : index
    %c17_61 = arith.constant 17 : index
    %c0_62 = arith.constant 0 : index
    %102 = vector.load %arg6[%c17_60, %c17_61, %c0_62] : memref<18x18x128xf32, #tpu.memory_space<vmem>>, vector<1x1x128xf32>
    tpu.vector_store %arg6[%c17_60, %c17_61, %c0_62], %101 {strides = array<i32>} : memref<18x18x128xf32, #tpu.memory_space<vmem>>, vector<1x1x128xf32>,
    %c0_63 = arith.constant 0 : index
    %c0_64 = arith.constant 0 : index
    %c0_65 = arith.constant 0 : index
    %103 = vector.load %arg6[%c0_63, %c0_64, %c0_65] : memref<18x18x128xf32, #tpu.memory_space<vmem>>, vector<18x18x128xf32>
    %cst_66 = arith.constant 0.000000e+00 : f32
    %104 = vector.broadcast %cst_66 : f32 to vector<256x128xf32>
    %105 = vector.extract_strided_slice %103 {offsets = [0, 0, 0], sizes = [16, 16, 128], strides = [1, 1, 1]} : vector<18x18x128xf32> to vector<16x16x128xf32>
    %106 = vector.shape_cast %105 : vector<16x16x128xf32> to vector<256x128xf32>
    %107 = arith.truncf %106 : vector<256x128xf32> to vector<256x128xbf16>
    %c0_67 = arith.constant 0 : index
    %c0_68 = arith.constant 0 : index
    %c0_69 = arith.constant 0 : index
    %108 = vector.load %arg3[%c0_67, %c0_68, %c0_69] : memref<9x128x128xbf16, #tpu.memory_space<vmem>>, vector<1x128x128xbf16>
    %109 = vector.shape_cast %108 : vector<1x128x128xbf16> to vector<128x128xbf16>
    %cst_70 = arith.constant dense<0.000000e+00> : vector<256x128xf32>
    %110 = tpu.matmul %107, %109, %cst_70 {dimension_numbers = #tpu.dot_dimension_numbers<[1], [0], [0], [1], [0, 0, 1, 1], [], []>} : vector<256x128xbf16>, vector<128x128xbf16>, vector<256x128xf32> -> vector<256x128xf32>
    %111 = arith.addf %104, %110 : vector<256x128xf32>
    %112 = vector.extract_strided_slice %103 {offsets = [0, 1, 0], sizes = [16, 16, 128], strides = [1, 1, 1]} : vector<18x18x128xf32> to vector<16x16x128xf32>
    %113 = vector.shape_cast %112 : vector<16x16x128xf32> to vector<256x128xf32>
    %114 = arith.truncf %113 : vector<256x128xf32> to vector<256x128xbf16>
    %c1_71 = arith.constant 1 : index
    %c0_72 = arith.constant 0 : index
    %c0_73 = arith.constant 0 : index
    %115 = vector.load %arg3[%c1_71, %c0_72, %c0_73] : memref<9x128x128xbf16, #tpu.memory_space<vmem>>, vector<1x128x128xbf16>
    %116 = vector.shape_cast %115 : vector<1x128x128xbf16> to vector<128x128xbf16>
    %cst_74 = arith.constant dense<0.000000e+00> : vector<256x128xf32>
    %117 = tpu.matmul %114, %116, %cst_74 {dimension_numbers = #tpu.dot_dimension_numbers<[1], [0], [0], [1], [0, 0, 1, 1], [], []>} : vector<256x128xbf16>, vector<128x128xbf16>, vector<256x128xf32> -> vector<256x128xf32>
    %118 = arith.addf %111, %117 : vector<256x128xf32>
    %119 = vector.extract_strided_slice %103 {offsets = [0, 2, 0], sizes = [16, 16, 128], strides = [1, 1, 1]} : vector<18x18x128xf32> to vector<16x16x128xf32>
    %120 = vector.shape_cast %119 : vector<16x16x128xf32> to vector<256x128xf32>
    %121 = arith.truncf %120 : vector<256x128xf32> to vector<256x128xbf16>
    %c2_75 = arith.constant 2 : index
    %c0_76 = arith.constant 0 : index
    %c0_77 = arith.constant 0 : index
    %122 = vector.load %arg3[%c2_75, %c0_76, %c0_77] : memref<9x128x128xbf16, #tpu.memory_space<vmem>>, vector<1x128x128xbf16>
    %123 = vector.shape_cast %122 : vector<1x128x128xbf16> to vector<128x128xbf16>
    %cst_78 = arith.constant dense<0.000000e+00> : vector<256x128xf32>
    %124 = tpu.matmul %121, %123, %cst_78 {dimension_numbers = #tpu.dot_dimension_numbers<[1], [0], [0], [1], [0, 0, 1, 1], [], []>} : vector<256x128xbf16>, vector<128x128xbf16>, vector<256x128xf32> -> vector<256x128xf32>
    %125 = arith.addf %118, %124 : vector<256x128xf32>
    %126 = vector.extract_strided_slice %103 {offsets = [1, 0, 0], sizes = [16, 16, 128], strides = [1, 1, 1]} : vector<18x18x128xf32> to vector<16x16x128xf32>
    %127 = vector.shape_cast %126 : vector<16x16x128xf32> to vector<256x128xf32>
    %128 = arith.truncf %127 : vector<256x128xf32> to vector<256x128xbf16>
    %c3_79 = arith.constant 3 : index
    %c0_80 = arith.constant 0 : index
    %c0_81 = arith.constant 0 : index
    %129 = vector.load %arg3[%c3_79, %c0_80, %c0_81] : memref<9x128x128xbf16, #tpu.memory_space<vmem>>, vector<1x128x128xbf16>
    %130 = vector.shape_cast %129 : vector<1x128x128xbf16> to vector<128x128xbf16>
    %cst_82 = arith.constant dense<0.000000e+00> : vector<256x128xf32>
    %131 = tpu.matmul %128, %130, %cst_82 {dimension_numbers = #tpu.dot_dimension_numbers<[1], [0], [0], [1], [0, 0, 1, 1], [], []>} : vector<256x128xbf16>, vector<128x128xbf16>, vector<256x128xf32> -> vector<256x128xf32>
    %132 = arith.addf %125, %131 : vector<256x128xf32>
    %133 = vector.extract_strided_slice %103 {offsets = [1, 1, 0], sizes = [16, 16, 128], strides = [1, 1, 1]} : vector<18x18x128xf32> to vector<16x16x128xf32>
    %134 = vector.shape_cast %133 : vector<16x16x128xf32> to vector<256x128xf32>
    %135 = arith.truncf %134 : vector<256x128xf32> to vector<256x128xbf16>
    %c4_83 = arith.constant 4 : index
    %c0_84 = arith.constant 0 : index
    %c0_85 = arith.constant 0 : index
    %136 = vector.load %arg3[%c4_83, %c0_84, %c0_85] : memref<9x128x128xbf16, #tpu.memory_space<vmem>>, vector<1x128x128xbf16>
    %137 = vector.shape_cast %136 : vector<1x128x128xbf16> to vector<128x128xbf16>
    %cst_86 = arith.constant dense<0.000000e+00> : vector<256x128xf32>
    %138 = tpu.matmul %135, %137, %cst_86 {dimension_numbers = #tpu.dot_dimension_numbers<[1], [0], [0], [1], [0, 0, 1, 1], [], []>} : vector<256x128xbf16>, vector<128x128xbf16>, vector<256x128xf32> -> vector<256x128xf32>
    %139 = arith.addf %132, %138 : vector<256x128xf32>
    %140 = vector.extract_strided_slice %103 {offsets = [1, 2, 0], sizes = [16, 16, 128], strides = [1, 1, 1]} : vector<18x18x128xf32> to vector<16x16x128xf32>
    %141 = vector.shape_cast %140 : vector<16x16x128xf32> to vector<256x128xf32>
    %142 = arith.truncf %141 : vector<256x128xf32> to vector<256x128xbf16>
    %c5_87 = arith.constant 5 : index
    %c0_88 = arith.constant 0 : index
    %c0_89 = arith.constant 0 : index
    %143 = vector.load %arg3[%c5_87, %c0_88, %c0_89] : memref<9x128x128xbf16, #tpu.memory_space<vmem>>, vector<1x128x128xbf16>
    %144 = vector.shape_cast %143 : vector<1x128x128xbf16> to vector<128x128xbf16>
    %cst_90 = arith.constant dense<0.000000e+00> : vector<256x128xf32>
    %145 = tpu.matmul %142, %144, %cst_90 {dimension_numbers = #tpu.dot_dimension_numbers<[1], [0], [0], [1], [0, 0, 1, 1], [], []>} : vector<256x128xbf16>, vector<128x128xbf16>, vector<256x128xf32> -> vector<256x128xf32>
    %146 = arith.addf %139, %145 : vector<256x128xf32>
    %147 = vector.extract_strided_slice %103 {offsets = [2, 0, 0], sizes = [16, 16, 128], strides = [1, 1, 1]} : vector<18x18x128xf32> to vector<16x16x128xf32>
    %148 = vector.shape_cast %147 : vector<16x16x128xf32> to vector<256x128xf32>
    %149 = arith.truncf %148 : vector<256x128xf32> to vector<256x128xbf16>
    %c6_91 = arith.constant 6 : index
    %c0_92 = arith.constant 0 : index
    %c0_93 = arith.constant 0 : index
    %150 = vector.load %arg3[%c6_91, %c0_92, %c0_93] : memref<9x128x128xbf16, #tpu.memory_space<vmem>>, vector<1x128x128xbf16>
    %151 = vector.shape_cast %150 : vector<1x128x128xbf16> to vector<128x128xbf16>
    %cst_94 = arith.constant dense<0.000000e+00> : vector<256x128xf32>
    %152 = tpu.matmul %149, %151, %cst_94 {dimension_numbers = #tpu.dot_dimension_numbers<[1], [0], [0], [1], [0, 0, 1, 1], [], []>} : vector<256x128xbf16>, vector<128x128xbf16>, vector<256x128xf32> -> vector<256x128xf32>
    %153 = arith.addf %146, %152 : vector<256x128xf32>
    %154 = vector.extract_strided_slice %103 {offsets = [2, 1, 0], sizes = [16, 16, 128], strides = [1, 1, 1]} : vector<18x18x128xf32> to vector<16x16x128xf32>
    %155 = vector.shape_cast %154 : vector<16x16x128xf32> to vector<256x128xf32>
    %156 = arith.truncf %155 : vector<256x128xf32> to vector<256x128xbf16>
    %c7_95 = arith.constant 7 : index
    %c0_96 = arith.constant 0 : index
    %c0_97 = arith.constant 0 : index
    %157 = vector.load %arg3[%c7_95, %c0_96, %c0_97] : memref<9x128x128xbf16, #tpu.memory_space<vmem>>, vector<1x128x128xbf16>
    %158 = vector.shape_cast %157 : vector<1x128x128xbf16> to vector<128x128xbf16>
    %cst_98 = arith.constant dense<0.000000e+00> : vector<256x128xf32>
    %159 = tpu.matmul %156, %158, %cst_98 {dimension_numbers = #tpu.dot_dimension_numbers<[1], [0], [0], [1], [0, 0, 1, 1], [], []>} : vector<256x128xbf16>, vector<128x128xbf16>, vector<256x128xf32> -> vector<256x128xf32>
    %160 = arith.addf %153, %159 : vector<256x128xf32>
    %161 = vector.extract_strided_slice %103 {offsets = [2, 2, 0], sizes = [16, 16, 128], strides = [1, 1, 1]} : vector<18x18x128xf32> to vector<16x16x128xf32>
    %162 = vector.shape_cast %161 : vector<16x16x128xf32> to vector<256x128xf32>
    %163 = arith.truncf %162 : vector<256x128xf32> to vector<256x128xbf16>
    %c8_99 = arith.constant 8 : index
    %c0_100 = arith.constant 0 : index
    %c0_101 = arith.constant 0 : index
    %164 = vector.load %arg3[%c8_99, %c0_100, %c0_101] : memref<9x128x128xbf16, #tpu.memory_space<vmem>>, vector<1x128x128xbf16>
    %165 = vector.shape_cast %164 : vector<1x128x128xbf16> to vector<128x128xbf16>
    %cst_102 = arith.constant dense<0.000000e+00> : vector<256x128xf32>
    %166 = tpu.matmul %163, %165, %cst_102 {dimension_numbers = #tpu.dot_dimension_numbers<[1], [0], [0], [1], [0, 0, 1, 1], [], []>} : vector<256x128xbf16>, vector<128x128xbf16>, vector<256x128xf32> -> vector<256x128xf32>
    %167 = arith.addf %160, %166 : vector<256x128xf32>
    %cst_103 = arith.constant dense<0.000000e+00> : vector<128xf32>
    %168 = vector.multi_reduction <add>, %167, %cst_103 [0] : vector<256x128xf32> to vector<128xf32>
    %169 = vector.shape_cast %168 : vector<128xf32> to vector<1x128xf32>
    %cst_104 = arith.constant 2.560000e+02 : f32
    %170 = vector.broadcast %cst_104 : f32 to vector<1x128xf32>
    %171 = arith.divf %169, %170 : vector<1x128xf32>
    %172 = vector.broadcast %171 : vector<1x128xf32> to vector<256x128xf32>
    %173 = arith.subf %167, %172 : vector<256x128xf32>
    %174 = arith.mulf %173, %173 : vector<256x128xf32>
    %cst_105 = arith.constant dense<0.000000e+00> : vector<128xf32>
    %175 = vector.multi_reduction <add>, %174, %cst_105 [0] : vector<256x128xf32> to vector<128xf32>
    %176 = vector.shape_cast %175 : vector<128xf32> to vector<1x128xf32>
    %cst_106 = arith.constant 2.560000e+02 : f32
    %177 = vector.broadcast %cst_106 : f32 to vector<1x128xf32>
    %178 = arith.divf %176, %177 : vector<1x128xf32>
    %cst_107 = arith.constant 9.99999974E-6 : f32
    %179 = vector.broadcast %cst_107 : f32 to vector<1x128xf32>
    %180 = arith.addf %178, %179 : vector<1x128xf32>
    %181 = math.rsqrt %180 : vector<1x128xf32>
    %182 = vector.broadcast %181 : vector<1x128xf32> to vector<256x128xf32>
    %183 = arith.mulf %173, %182 : vector<256x128xf32>
    %c0_108 = arith.constant 0 : index
    %c0_109 = arith.constant 0 : index
    %c0_110 = arith.constant 0 : index
    %184 = vector.load %arg5[%c0_108, %c0_109, %c0_110] : memref<1x256x128xf32, #tpu.memory_space<vmem>>, vector<1x256x128xf32>
    %185 = vector.shape_cast %184 : vector<1x256x128xf32> to vector<256x128xf32>
    %186 = vector.shape_cast %183 : vector<256x128xf32> to vector<1x256x128xf32>
    tpu.vector_store %arg5[%c0_108, %c0_109, %c0_110], %186 {strides = array<i32>} : memref<1x256x128xf32, #tpu.memory_space<vmem>>, vector<1x256x128xf32>,
    %187 = vector.extract_strided_slice %183 {offsets = [0, 0], sizes = [256, 4], strides = [1, 1]} : vector<256x128xf32> to vector<256x4xf32>
    %c0_111 = arith.constant 0 : index
    %c0_112 = arith.constant 0 : index
    %c0_113 = arith.constant 0 : index
    %188 = vector.load %arg4[%c0_111, %c0_112, %c0_113] : memref<1x256x4xf32, #tpu.memory_space<vmem>>, vector<1x256x4xf32>
    %189 = vector.shape_cast %188 : vector<1x256x4xf32> to vector<256x4xf32>
    %190 = arith.addf %187, %189 : vector<256x4xf32>
    %c0_114 = arith.constant 0 : index
    %c0_115 = arith.constant 0 : index
    %c0_116 = arith.constant 0 : index
    %191 = vector.load %arg5[%c0_114, %c0_115, %c0_116] : memref<1x256x128xf32, #tpu.memory_space<vmem>>, vector<1x256x4xf32>
    %192 = vector.shape_cast %191 : vector<1x256x4xf32> to vector<256x4xf32>
    %193 = vector.shape_cast %190 : vector<256x4xf32> to vector<1x256x4xf32>
    tpu.vector_store %arg5[%c0_114, %c0_115, %c0_116], %193 {strides = array<i32>} : memref<1x256x128xf32, #tpu.memory_space<vmem>>, vector<1x256x4xf32>,
    return
  }
  func.func @transform_0(%arg0: i32) -> (i32, i32, i32, i32) {
    %c0_i32 = arith.constant 0 : i32
    %c0_i32_0 = arith.constant 0 : i32
    %c0_i32_1 = arith.constant 0 : i32
    %c0_i32_2 = arith.constant 0 : i32
    return %arg0, %c0_i32, %c0_i32_0, %c0_i32_1 : i32, i32, i32, i32
  }
  func.func @transform_1(%arg0: i32) -> (i32, i32, i32) {
    %c0_i32 = arith.constant 0 : i32
    %c0_i32_0 = arith.constant 0 : i32
    %c0_i32_1 = arith.constant 0 : i32
    %c0_i32_2 = arith.constant 0 : i32
    return %c0_i32, %c0_i32_0, %c0_i32_1 : i32, i32, i32
  }
  func.func @transform_2(%arg0: i32) -> (i32, i32, i32) {
    %c0_i32 = arith.constant 0 : i32
    %c0_i32_0 = arith.constant 0 : i32
    %c0_i32_1 = arith.constant 0 : i32
    %c0_i32_2 = arith.constant 0 : i32
    return %c0_i32, %c0_i32_0, %c0_i32_1 : i32, i32, i32
  }
  func.func @transform_3(%arg0: i32) -> (i32, i32, i32) {
    %c0_i32 = arith.constant 0 : i32
    %c0_i32_0 = arith.constant 0 : i32
    %c0_i32_1 = arith.constant 0 : i32
    return %arg0, %c0_i32, %c0_i32_0 : i32, i32, i32
  }
  func.func @transform_4(%arg0: i32) -> (i32, i32, i32) {
    %c0_i32 = arith.constant 0 : i32
    %c0_i32_0 = arith.constant 0 : i32
    %c0_i32_1 = arith.constant 0 : i32
    return %arg0, %c0_i32, %c0_i32_0 : i32, i32, i32
  }
}

</mosaic_0001>

<llo_original>
// kernel: residual_block_pallas.1
$region0: #{residual_block_pallas.1}
  #allocation0 [shape = 'u32[]', space=smem, size = 0x4, offset = 0x4, fixed_abs, tag = 'smem constant byte address 0x4 - core index']
  #allocation1 [shape = 'u32[72,128]{1,0:T(1,128)}', space=vmem, size = 0x9000, scoped, tag = 'internal scratch']
  #allocation2 [shape = 'f32[18,18,128]{2,1,0:T(8,128)}', space=vmem, size = 0x36000, scoped, tag = 'scratch operand']
  %s0 = inlined_call_operand.vmem [shape: bf16[2,18,18,128], index: 0, kind: input, shape index: {}]
  %s1 = inlined_call_operand.vmem [shape: bf16[9,128,128], index: 1, kind: input, shape index: {}]
  %s2 = inlined_call_operand.vmem [shape: bf16[9,128,128], index: 2, kind: input, shape index: {}]
  %s3 = inlined_call_operand.vmem [shape: f32[2,256,4], index: 3, kind: input, shape index: {}]
  %s4 = inlined_call_operand.vmem [shape: f32[2,256,128], index: 4, kind: output, shape index: {}]
  %s5 = sld [smem:[#allocation0]]
  $region49: #{residual_block_pallas.1} parent=0
    _
  %s7 = ssub.s32 1, %s5
  %s8 = scalar_select 0, %s7, %s5
  loop: start=0, step=1, limit=4
  $region2: #{residual_block_pallas.1} parent=0 // loop_pre_header
    _
  $region3: #{residual_block_pallas.1} parent=0 // loop_header
    %s10 = sphi 0, %s14
    %p11 = scmp.ge.s32.totalorder %s10, 4
    %s20 = sphi 0, %s22
    %s23 = sphi 0, %s20
    %s24 = sphi 0, %s23
    %s40 = sphi 0, %s24
    %s44 = sphi 0, %s44
    %s46 = sphi 0, %s44
    %s47 = sphi 0, %s46
    %s61 = sphi 0, %s47
    %s65 = sphi 0, %s65
    %s67 = sphi 0, %s65
    %s68 = sphi 0, %s67
    %s82 = sphi 0, %s68
    %s88 = sphi 0, %s90
    %s91 = sphi 0, %s88
    %s92 = sphi 0, %s91
    %s108 = sphi 0, %s92
    %s114 = sphi 0, %s116
    %s117 = sphi 0, %s114
    %s118 = sphi 0, %s117
    %s134 = sphi 0, %s118
  $region4: #{residual_block_pallas.1} parent=0 // loop_header_branch
    %13 = sbr.rel (%p11) target = $region8
  $region5: #{residual_block_pallas.1} parent=0 // loop_body
    %s15 = ssub.s32 %s10, 1
    %s16 = ssub.s32 %s10, 2
    %s17 = sadd.s32 %s10, 1
    %s18 = ssub.s32 %s10, %s17
    %p19 = scmp.eq.s32.totalorder %s18, 0
    %s21 = sadd.s32 %s20, 1
    %s22 = scalar_select %p19, %s20, %s21
    %p25 = pneg %p19
    %p26 = scmp.eq.s32.totalorder %s10, 1
    %p27 = por %p25, %p26
    %p28 = scmp.ne.s32.totalorder %s20, %s23
    %p29 = scmp.eq.s32.totalorder %s10, 0
    %p30 = por %p28, %p29
    %p31 = scmp.ne.s32.totalorder %s20, %s23
    %p32 = scmp.eq.s32.totalorder %s15, 1
    %p33 = por %p31, %p32
    %p34 = scmp.ne.s32.totalorder %s23, %s24
    %p35 = scmp.eq.s32.totalorder %s15, 0
    %p36 = por %p34, %p35
    %p37 = scmp.ne.s32.totalorder %s23, %s24
    %p38 = scmp.eq.s32.totalorder %s16, 1
    %p39 = por %p37, %p38
    %p41 = scmp.ne.s32.totalorder %s24, %s40
    %p42 = scmp.eq.s32.totalorder %s16, 0
    %p43 = por %p41, %p42
    %s45 = sadd.s32 %s44, 1
    %p48 = scmp.eq.s32.totalorder %s10, 1
    %p49 = scmp.ne.s32.totalorder %s44, %s46
    %p50 = scmp.eq.s32.totalorder %s10, 0
    %p51 = por %p49, %p50
    %p52 = scmp.ne.s32.totalorder %s44, %s46
    %p53 = scmp.eq.s32.totalorder %s15, 1
    %p54 = por %p52, %p53
    %p55 = scmp.ne.s32.totalorder %s46, %s47
    %p56 = scmp.eq.s32.totalorder %s15, 0
    %p57 = por %p55, %p56
    %p58 = scmp.ne.s32.totalorder %s46, %s47
    %p59 = scmp.eq.s32.totalorder %s16, 1
    %p60 = por %p58, %p59
    %p62 = scmp.ne.s32.totalorder %s47, %s61
    %p63 = scmp.eq.s32.totalorder %s16, 0
    %p64 = por %p62, %p63
    %s66 = sadd.s32 %s65, 1
    %p69 = scmp.eq.s32.totalorder %s10, 1
    %p70 = scmp.ne.s32.totalorder %s65, %s67
    %p71 = scmp.eq.s32.totalorder %s10, 0
    %p72 = por %p70, %p71
    %p73 = scmp.ne.s32.totalorder %s65, %s67
    %p74 = scmp.eq.s32.totalorder %s15, 1
    %p75 = por %p73, %p74
    %p76 = scmp.ne.s32.totalorder %s67, %s68
    %p77 = scmp.eq.s32.totalorder %s15, 0
    %p78 = por %p76, %p77
    %p79 = scmp.ne.s32.totalorder %s67, %s68
    %p80 = scmp.eq.s32.totalorder %s16, 1
    %p81 = por %p79, %p80
    %p83 = scmp.ne.s32.totalorder %s68, %s82
    %p84 = scmp.eq.s32.totalorder %s16, 0
    %p85 = por %p83, %p84
    %s86 = ssub.s32 %s10, %s17
    %p87 = scmp.eq.s32.totalorder %s86, 0
    %s89 = sadd.s32 %s88, 1
    %s90 = scalar_select %p87, %s88, %s89
    %p93 = pneg %p87
    %p94 = scmp.eq.s32.totalorder %s10, 1
    %p95 = por %p93, %p94
    %p96 = scmp.ne.s32.totalorder %s88, %s91
    %p97 = scmp.eq.s32.totalorder %s10, 0
    %p98 = por %p96, %p97
    %p99 = scmp.ne.s32.totalorder %s88, %s91
    %p100 = scmp.eq.s32.totalorder %s15, 1
    %p101 = por %p99, %p100
    %p102 = scmp.ne.s32.totalorder %s91, %s92
    %p103 = scmp.eq.s32.totalorder %s15, 0
    %p104 = por %p102, %p103
    %p105 = scmp.ne.s32.totalorder %s91, %s92
    %p106 = scmp.eq.s32.totalorder %s16, 1
    %p107 = por %p105, %p106
    %p109 = scmp.ne.s32.totalorder %s92, %s108
    %p110 = scmp.eq.s32.totalorder %s16, 0
    %p111 = por %p109, %p110
    %s112 = ssub.s32 %s10, %s17
    %p113 = scmp.eq.s32.totalorder %s112, 0
    %s115 = sadd.s32 %s114, 1
    %s116 = scalar_select %p113, %s114, %s115
    %p119 = pneg %p113
    %p120 = scmp.eq.s32.totalorder %s10, 1
    %p121 = por %p119, %p120
    %p122 = scmp.ne.s32.totalorder %s114, %s117
    %p123 = scmp.eq.s32.totalorder %s10, 0
    %p124 = por %p122, %p123
    %p125 = scmp.ne.s32.totalorder %s114, %s117
    %p126 = scmp.eq.s32.totalorder %s15, 1
    %p127 = por %p125, %p126
    %p128 = scmp.ne.s32.totalorder %s117, %s118
    %p129 = scmp.eq.s32.totalorder %s15, 0
    %p130 = por %p128, %p129
    %p131 = scmp.ne.s32.totalorder %s117, %s118
    %p132 = scmp.eq.s32.totalorder %s16, 1
    %p133 = por %p131, %p132
    %p135 = scmp.ne.s32.totalorder %s118, %s134
    %p136 = scmp.eq.s32.totalorder %s16, 0
    %p137 = por %p135, %p136
    %p138 = scmp.le.s32.totalorder 1, %s10
    %p139 = scmp.lt.s32.totalorder %s10, 3
    %p140 = pnand %p138, %p139
    %p141 = pneg %p140
    // Predicated region
    $region9: #{residual_block_pallas.1} parent=5 // pred_check
      _
    $region10: #{residual_block_pallas.1} parent=5 // pred_check_branch
      %143 = sbr.rel (%p140) target = $region12
    $region11: #{residual_block_pallas.1} parent=5 // pred_region
      %s144 = ssub.s32 %s10, 1
      // Predicated region
      $region13: #{residual_block_pallas.1} parent=11 // pred_check
        %p145 = pneg %p57
      $region14: #{residual_block_pallas.1} parent=11 // pred_check_branch
        %147 = sbr.rel (%p145) target = $region16
      $region15: #{residual_block_pallas.1} parent=11 // pred_region
        _
      $region16: #{residual_block_pallas.1} parent=11 // pred_fallthru
        _
      // Predicated region
      $region17: #{residual_block_pallas.1} parent=11 // pred_check
        %p148 = pneg %p78
      $region18: #{residual_block_pallas.1} parent=11 // pred_check_branch
        %150 = sbr.rel (%p148) target = $region20
      $region19: #{residual_block_pallas.1} parent=11 // pred_region
        _
      $region20: #{residual_block_pallas.1} parent=11 // pred_fallthru
        _
    $region12: #{residual_block_pallas.1} parent=5 // pred_fallthru
      _
    %p151 = scmp.lt.s32.totalorder %s10, 2
    // Predicated region
    $region21: #{residual_block_pallas.1} parent=5 // pred_check
      %p152 = pneg %p151
    $region22: #{residual_block_pallas.1} parent=5 // pred_check_branch
      %154 = sbr.rel (%p152) target = $region24
    $region23: #{residual_block_pallas.1} parent=5 // pred_region
      // Predicated region
      $region25: #{residual_block_pallas.1} parent=23 // pred_check
        %p155 = pneg %p30
      $region26: #{residual_block_pallas.1} parent=23 // pred_check_branch
        %157 = sbr.rel (%p155) target = $region28
      $region27: #{residual_block_pallas.1} parent=23 // pred_region
        %p158 = scmp.lt.s32.totalorder %s10, 1
        %s159 = scalar_select %p158, %s10, 1
        %s160 = smul.addr %s159, 54
        %s161 = smul.addr %s160, 4
        %s162 = scalar_lea.vmem %s0, %s161
      $region28: #{residual_block_pallas.1} parent=23 // pred_fallthru
        _
      // Predicated region
      $region29: #{residual_block_pallas.1} parent=23 // pred_check
        %p163 = pneg %p98
      $region30: #{residual_block_pallas.1} parent=23 // pred_check_branch
        %165 = sbr.rel (%p163) target = $region32
      $region31: #{residual_block_pallas.1} parent=23 // pred_region
        %p166 = scmp.lt.s32.totalorder %s10, 1
        %s167 = scalar_select %p166, %s10, 1
        %s168 = smul.addr %s167, 32
        %s169 = smul.addr %s168, 8
        %s170 = scalar_lea.vmem %s3, %s169
      $region32: #{residual_block_pallas.1} parent=23 // pred_fallthru
        _
    $region24: #{residual_block_pallas.1} parent=5 // pred_fallthru
      _
    %p171 = scmp.le.s32.totalorder 1, %s10
    %p172 = scmp.lt.s32.totalorder %s10, 3
    %p173 = pnand %p171, %p172
    %p174 = pneg %p173
    // Predicated region
    $region33: #{residual_block_pallas.1} parent=5 // pred_check
      _
    $region34: #{residual_block_pallas.1} parent=5 // pred_check_branch
      %176 = sbr.rel (%p173) target = $region36
    $region35: #{residual_block_pallas.1} parent=5 // pred_region
      %s177 = ssub.s32 %s10, 1
      %p178 = scmp.lt.s32.totalorder %s15, 1
      %s179 = scalar_select %p178, %s15, 1
      %s180 = smul.addr %s179, 54
      %s181 = smul.addr %s180, 4
      %s182 = scalar_lea.vmem %s0, %s181
      %p183 = pneg %p36
      %p184 = pneg %p33
      %p185 = pneg %p57
      %p186 = pneg %p54
      %p187 = pneg %p78
      %p188 = pneg %p75
      %p189 = scmp.lt.s32.totalorder %s15, 1
      %s190 = scalar_select %p189, %s15, 1
      %s191 = smul.addr %s190, 32
      %s192 = smul.addr %s191, 8
      %s193 = scalar_lea.vmem %s3, %s192
      %p194 = pneg %p104
      %p195 = pneg %p101
      %p196 = pneg %p130
      %p197 = pneg %p127
      %p198 = scmp.lt.s32.totalorder %s15, 1
      %s199 = scalar_select %p198, %s15, 1
      %s200 = smul.addr %s199, 32
      %s201 = smul.addr %s200, 8
      %s202 = scalar_lea.vmem %s4, %s201
      %p203 = scmp.lt.s32.totalorder %s15, 1
      %s204 = scalar_select %p203, %s15, 1
      %s205 = smul.addr %s204, 54
      %s206 = smul.addr %s205, 4
      %s207 = scalar_lea.vmem %s0, %s206
      %p208 = scmp.lt.s32.totalorder %s15, 1
      %s209 = scalar_select %p208, %s15, 1
      %s210 = smul.addr %s209, 32
      %s211 = smul.addr %s210, 8
      %s212 = scalar_lea.vmem %s3, %s211
      %p213 = scmp.lt.s32.totalorder %s15, 1
      %s214 = scalar_select %p213, %s15, 1
      %s215 = smul.addr %s214, 32
      %s216 = smul.addr %s215, 8
      %s217 = scalar_lea.vmem %s4, %s216
      %v218 = vld [vmem:[%s207] sm:$0xf]
      %v219 = vld [vmem:[%s207 + $0x4] sm:$0xf]
      %v220 = vld [vmem:[%s207 + $0x8] sm:$0x1]
      %v221 = vld [vmem:[%s207 + $0xc] sm:$0xf]
      %v222 = vld [vmem:[%s207 + $0x10] sm:$0xf]
      %v223 = vld [vmem:[%s207 + $0x14] sm:$0x1]
      %v224 = vld [vmem:[%s207 + $0x18] sm:$0xf]
      %v225 = vld [vmem:[%s207 + $0x1c] sm:$0xf]
      %v226 = vld [vmem:[%s207 + $0x20] sm:$0x1]
      %v227 = vld [vmem:[%s207 + $0x24] sm:$0xf]
      %v228 = vld [vmem:[%s207 + $0x28] sm:$0xf]
      %v229 = vld [vmem:[%s207 + $0x2c] sm:$0x1]
      %v230 = vld [vmem:[%s207 + $0x30] sm:$0xf]
      %v231 = vld [vmem:[%s207 + $0x34] sm:$0xf]
      %v232 = vld [vmem:[%s207 + $0x38] sm:$0x1]
      %v233 = vld [vmem:[%s207 + $0x3c] sm:$0xf]
      %v234 = vld [vmem:[%s207 + $0x40] sm:$0xf]
      %v235 = vld [vmem:[%s207 + $0x44] sm:$0x1]
      %v236 = vld [vmem:[%s207 + $0x48] sm:$0xf]
      %v237 = vld [vmem:[%s207 + $0x4c] sm:$0xf]
      %v238 = vld [vmem:[%s207 + $0x50] sm:$0x1]
      %v239 = vld [vmem:[%s207 + $0x54] sm:$0xf]
      %v240 = vld [vmem:[%s207 + $0x58] sm:$0xf]
      %v241 = vld [vmem:[%s207 + $0x5c] sm:$0x1]
      %v242 = vld [vmem:[%s207 + $0x60] sm:$0xf]
      %v243 = vld [vmem:[%s207 + $0x64] sm:$0xf]
      %v244 = vld [vmem:[%s207 + $0x68] sm:$0x1]
      %v245 = vld [vmem:[%s207 + $0x6c] sm:$0xf]
      %v246 = vld [vmem:[%s207 + $0x70] sm:$0xf]
      %v247 = vld [vmem:[%s207 + $0x74] sm:$0x1]
      %v248 = vld [vmem:[%s207 + $0x78] sm:$0xf]
      %v249 = vld [vmem:[%s207 + $0x7c] sm:$0xf]
      %v250 = vld [vmem:[%s207 + $0x80] sm:$0x1]
      %v251 = vld [vmem:[%s207 + $0x84] sm:$0xf]
      %v252 = vld [vmem:[%s207 + $0x88] sm:$0xf]
      %v253 = vld [vmem:[%s207 + $0x8c] sm:$0x1]
      %v254 = vld [vmem:[%s207 + $0x90] sm:$0xf]
      %v255 = vld [vmem:[%s207 + $0x94] sm:$0xf]
      %v256 = vld [vmem:[%s207 + $0x98] sm:$0x1]
      %v257 = vld [vmem:[%s207 + $0x9c] sm:$0xf]
      %v258 = vld [vmem:[%s207 + $0xa0] sm:$0xf]
      %v259 = vld [vmem:[%s207 + $0xa4] sm:$0x1]
      %v260 = vld [vmem:[%s207 + $0xa8] sm:$0xf]
      %v261 = vld [vmem:[%s207 + $0xac] sm:$0xf]
      %v262 = vld [vmem:[%s207 + $0xb0] sm:$0x1]
      %v263 = vld [vmem:[%s207 + $0xb4] sm:$0xf]
      %v264 = vld [vmem:[%s207 + $0xb8] sm:$0xf]
      %v265 = vld [vmem:[%s207 + $0xbc] sm:$0x1]
      %v266 = vld [vmem:[%s207 + $0xc0] sm:$0xf]
      %v267 = vld [vmem:[%s207 + $0xc4] sm:$0xf]
      %v268 = vld [vmem:[%s207 + $0xc8] sm:$0x1]
      %v269 = vld [vmem:[%s207 + $0xcc] sm:$0xf]
      %v270 = vld [vmem:[%s207 + $0xd0] sm:$0xf]
      %v271 = vld [vmem:[%s207 + $0xd4] sm:$0x1]
      %v272 = vunpack.c.l.bf16 %v218
      %v273 = vunpack.c.l.bf16 %v219
      %v274 = vunpack.c.l.bf16 %v220
      %v275 = vunpack.c.l.bf16 %v221
      %v276 = vunpack.c.l.bf16 %v222
      %v277 = vunpack.c.l.bf16 %v223
      %v278 = vunpack.c.l.bf16 %v224
      %v279 = vunpack.c.l.bf16 %v225
      %v280 = vunpack.c.l.bf16 %v226
      %v281 = vunpack.c.l.bf16 %v227
      %v282 = vunpack.c.l.bf16 %v228
      %v283 = vunpack.c.l.bf16 %v229
      %v284 = vunpack.c.l.bf16 %v230
      %v285 = vunpack.c.l.bf16 %v231
      %v286 = vunpack.c.l.bf16 %v232
      %v287 = vunpack.c.l.bf16 %v233
      %v288 = vunpack.c.l.bf16 %v234
      %v289 = vunpack.c.l.bf16 %v235
      %v290 = vunpack.c.l.bf16 %v236
      %v291 = vunpack.c.l.bf16 %v237
      %v292 = vunpack.c.l.bf16 %v238
      %v293 = vunpack.c.l.bf16 %v239
      %v294 = vunpack.c.l.bf16 %v240
      %v295 = vunpack.c.l.bf16 %v241
      %v296 = vunpack.c.l.bf16 %v242
      %v297 = vunpack.c.l.bf16 %v243
      %v298 = vunpack.c.l.bf16 %v244
      %v299 = vunpack.c.l.bf16 %v245
      %v300 = vunpack.c.l.bf16 %v246
      %v301 = vunpack.c.l.bf16 %v247
      %v302 = vunpack.c.l.bf16 %v248
      %v303 = vunpack.c.l.bf16 %v249
      %v304 = vunpack.c.l.bf16 %v250
      %v305 = vunpack.c.l.bf16 %v251
      %v306 = vunpack.c.l.bf16 %v252
      %v307 = vunpack.c.l.bf16 %v253
      %v308 = vunpack.c.l.bf16 %v254
      %v309 = vunpack.c.l.bf16 %v255
      %v310 = vunpack.c.l.bf16 %v256
      %v311 = vunpack.c.l.bf16 %v257
      %v312 = vunpack.c.l.bf16 %v258
      %v313 = vunpack.c.l.bf16 %v259
      %v314 = vunpack.c.l.bf16 %v260
      %v315 = vunpack.c.l.bf16 %v261
      %v316 = vunpack.c.l.bf16 %v262
      %v317 = vunpack.c.l.bf16 %v263
      %v318 = vunpack.c.l.bf16 %v264
      %v319 = vunpack.c.l.bf16 %v265
      %v320 = vunpack.c.l.bf16 %v266
      %v321 = vunpack.c.l.bf16 %v267
      %v322 = vunpack.c.l.bf16 %v268
      %v323 = vunpack.c.l.bf16 %v269
      %v324 = vunpack.c.l.bf16 %v270
      %v325 = vunpack.c.l.bf16 %v271
      %v326 = vpack.c.bf16 %v273, %v272
      %v327 = vpack.c.bf16 %v276, %v275
      %v328 = vpack.c.bf16 %v279, %v278
      %v329 = vpack.c.bf16 %v282, %v281
      %v330 = vpack.c.bf16 %v285, %v284
      %v331 = vpack.c.bf16 %v288, %v287
      %v332 = vpack.c.bf16 %v291, %v290
      %v333 = vpack.c.bf16 %v294, %v293
      %v334 = vpack.c.bf16 %v297, %v296
      %v335 = vpack.c.bf16 %v300, %v299
      %v336 = vpack.c.bf16 %v303, %v302
      %v337 = vpack.c.bf16 %v306, %v305
      %v338 = vpack.c.bf16 %v309, %v308
      %v339 = vpack.c.bf16 %v312, %v311
      %v340 = vpack.c.bf16 %v315, %v314
      %v341 = vpack.c.bf16 %v318, %v317
      %v342 = vld [vmem:[%s1] sm:$0xf]
      %v343 = vld [vmem:[%s1 + $0x4] sm:$0xf]
      %v344 = vld [vmem:[%s1 + $0x8] sm:$0xf]
      %v345 = vld [vmem:[%s1 + $0xc] sm:$0xf]
      %v346 = vld [vmem:[%s1 + $0x10] sm:$0xf]
      %v347 = vld [vmem:[%s1 + $0x14] sm:$0xf]
      %v348 = vld [vmem:[%s1 + $0x18] sm:$0xf]
      %v349 = vld [vmem:[%s1 + $0x1c] sm:$0xf]
      %v350 = vld [vmem:[%s1 + $0x20] sm:$0xf]
      %v351 = vld [vmem:[%s1 + $0x24] sm:$0xf]
      %v352 = vld [vmem:[%s1 + $0x28] sm:$0xf]
      %v353 = vld [vmem:[%s1 + $0x2c] sm:$0xf]
      %v354 = vld [vmem:[%s1 + $0x30] sm:$0xf]
      %v355 = vld [vmem:[%s1 + $0x34] sm:$0xf]
      %v356 = vld [vmem:[%s1 + $0x38] sm:$0xf]
      %v357 = vld [vmem:[%s1 + $0x3c] sm:$0xf]
      %vm406 = vcmask 1046528
      %v407 = vrot.slane %v272, 1
      %v408 = vrot.slane %v273, 1
      %v409 = vsel %vm406, %v407, %v408
      %v410 = vrot.slane %v274, 1
      %v411 = vsel %vm406, %v408, %v410
      %v412 = vrot.slane %v275, 1
      %v413 = vrot.slane %v276, 1
      %v414 = vsel %vm406, %v412, %v413
      %v415 = vrot.slane %v277, 1
      %v416 = vsel %vm406, %v413, %v415
      %v417 = vrot.slane %v278, 1
      %v418 = vrot.slane %v279, 1
      %v419 = vsel %vm406, %v417, %v418
      %v420 = vrot.slane %v280, 1
      %v421 = vsel %vm406, %v418, %v420
      %v422 = vrot.slane %v281, 1
      %v423 = vrot.slane %v282, 1
      %v424 = vsel %vm406, %v422, %v423
      %v425 = vrot.slane %v283, 1
      %v426 = vsel %vm406, %v423, %v425
      %v427 = vrot.slane %v284, 1
      %v428 = vrot.slane %v285, 1
      %v429 = vsel %vm406, %v427, %v428
      %v430 = vrot.slane %v286, 1
      %v431 = vsel %vm406, %v428, %v430
      %v432 = vrot.slane %v287, 1
      %v433 = vrot.slane %v288, 1
      %v434 = vsel %vm406, %v432, %v433
      %v435 = vrot.slane %v289, 1
      %v436 = vsel %vm406, %v433, %v435
      %v437 = vrot.slane %v290, 1
      %v438 = vrot.slane %v291, 1
      %v439 = vsel %vm406, %v437, %v438
      %v440 = vrot.slane %v292, 1
      %v441 = vsel %vm406, %v438, %v440
      %v442 = vrot.slane %v293, 1
      %v443 = vrot.slane %v294, 1
      %v444 = vsel %vm406, %v442, %v443
      %v445 = vrot.slane %v295, 1
      %v446 = vsel %vm406, %v443, %v445
      %v447 = vrot.slane %v296, 1
      %v448 = vrot.slane %v297, 1
      %v449 = vsel %vm406, %v447, %v448
      %v450 = vrot.slane %v298, 1
      %v451 = vsel %vm406, %v448, %v450
      %v452 = vrot.slane %v299, 1
      %v453 = vrot.slane %v300, 1
      %v454 = vsel %vm406, %v452, %v453
      %v455 = vrot.slane %v301, 1
      %v456 = vsel %vm406, %v453, %v455
      %v457 = vrot.slane %v302, 1
      %v458 = vrot.slane %v303, 1
      %v459 = vsel %vm406, %v457, %v458
      %v460 = vrot.slane %v304, 1
      %v461 = vsel %vm406, %v458, %v460
      %v462 = vrot.slane %v305, 1
      %v463 = vrot.slane %v306, 1
      %v464 = vsel %vm406, %v462, %v463
      %v465 = vrot.slane %v307, 1
      %v466 = vsel %vm406, %v463, %v465
      %v467 = vrot.slane %v308, 1
      %v468 = vrot.slane %v309, 1
      %v469 = vsel %vm406, %v467, %v468
      %v470 = vrot.slane %v310, 1
      %v471 = vsel %vm406, %v468, %v470
      %v472 = vrot.slane %v311, 1
      %v473 = vrot.slane %v312, 1
      %v474 = vsel %vm406, %v472, %v473
      %v475 = vrot.slane %v313, 1
      %v476 = vsel %vm406, %v473, %v475
      %v477 = vrot.slane %v314, 1
      %v478 = vrot.slane %v315, 1
      %v479 = vsel %vm406, %v477, %v478
      %v480 = vrot.slane %v316, 1
      %v481 = vsel %vm406, %v478, %v480
      %v482 = vrot.slane %v317, 1
      %v483 = vrot.slane %v318, 1
      %v484 = vsel %vm406, %v482, %v483
      %v485 = vrot.slane %v319, 1
      %v486 = vsel %vm406, %v483, %v485
      %v519 = vpack.c.bf16 %v411, %v409
      %v520 = vpack.c.bf16 %v416, %v414
      %v521 = vpack.c.bf16 %v421, %v419
      %v522 = vpack.c.bf16 %v426, %v424
      %v523 = vpack.c.bf16 %v431, %v429
      %v524 = vpack.c.bf16 %v436, %v434
      %v525 = vpack.c.bf16 %v441, %v439
      %v526 = vpack.c.bf16 %v446, %v444
      %v527 = vpack.c.bf16 %v451, %v449
      %v528 = vpack.c.bf16 %v456, %v454
      %v529 = vpack.c.bf16 %v461, %v459
      %v530 = vpack.c.bf16 %v466, %v464
      %v531 = vpack.c.bf16 %v471, %v469
      %v532 = vpack.c.bf16 %v476, %v474
      %v533 = vpack.c.bf16 %v481, %v479
      %v534 = vpack.c.bf16 %v486, %v484
      %s535 = scalar_lea.vmem %s1, 64
      %v536 = vld [vmem:[%s535] sm:$0xf]
      %v537 = vld [vmem:[%s535 + $0x4] sm:$0xf]
      %v538 = vld [vmem:[%s535 + $0x8] sm:$0xf]
      %v539 = vld [vmem:[%s535 + $0xc] sm:$0xf]
      %v540 = vld [vmem:[%s535 + $0x10] sm:$0xf]
      %v541 = vld [vmem:[%s535 + $0x14] sm:$0xf]
      %v542 = vld [vmem:[%s535 + $0x18] sm:$0xf]
      %v543 = vld [vmem:[%s535 + $0x1c] sm:$0xf]
      %v544 = vld [vmem:[%s535 + $0x20] sm:$0xf]
      %v545 = vld [vmem:[%s535 + $0x24] sm:$0xf]
      %v546 = vld [vmem:[%s535 + $0x28] sm:$0xf]
      %v547 = vld [vmem:[%s535 + $0x2c] sm:$0xf]
      %v548 = vld [vmem:[%s535 + $0x30] sm:$0xf]
      %v549 = vld [vmem:[%s535 + $0x34] sm:$0xf]
      %v550 = vld [vmem:[%s535 + $0x38] sm:$0xf]
      %v551 = vld [vmem:[%s535 + $0x3c] sm:$0xf]
      %v568 = vunpack.c.l.b16 %v536
      %v569 = vunpack.c.l.b16 %v537
      %v570 = vunpack.c.l.b16 %v538
      %v571 = vunpack.c.l.b16 %v539
      %v572 = vunpack.c.l.b16 %v540
      %v573 = vunpack.c.l.b16 %v541
      %v574 = vunpack.c.l.b16 %v542
      %v575 = vunpack.c.l.b16 %v543
      %v576 = vunpack.c.l.b16 %v544
      %v577 = vunpack.c.l.b16 %v545
      %v578 = vunpack.c.l.b16 %v546
      %v579 = vunpack.c.l.b16 %v547
      %v580 = vunpack.c.l.b16 %v548
      %v581 = vunpack.c.l.b16 %v549
      %v582 = vunpack.c.l.b16 %v550
      %v583 = vunpack.c.l.b16 %v551
      %v584 = vpack.c.b16 %v569, %v568
      %v585 = vpack.c.b16 %v571, %v570
      %v586 = vpack.c.b16 %v573, %v572
      %v587 = vpack.c.b16 %v575, %v574
      %v588 = vpack.c.b16 %v577, %v576
      %v589 = vpack.c.b16 %v579, %v578
      %v590 = vpack.c.b16 %v581, %v580
      %v591 = vpack.c.b16 %v583, %v582
      %600 = vmatpush.bf16.msra.mxu0 %v591
      %601 = vmatpush.bf16.msra.mxu0 %v590
      %602 = vmatpush.bf16.msra.mxu0 %v589
      %603 = vmatpush.bf16.msra.mxu0 %v588
      %604 = vmatpush.bf16.msra.mxu0 %v587
      %605 = vmatpush.bf16.msra.mxu0 %v586
      %606 = vmatpush.bf16.msra.mxu0 %v585
      %607 = vmatpush.bf16.msra.mxu0 %v584
      %608 = vmatmul.bf16.gmra.mxu0 %v519
      %v609 = vpop.f32.mrf.mxu0
      %v610 = vadd.f32 0.0, %v609
      %v611 = vpop.f32.mrf.mxu0
      %v612 = vadd.f32 0.0, %v611
      %613 = vmatmul.bf16.gmra.mxu0 %v520
      %v614 = vpop.f32.mrf.mxu0
      %v615 = vadd.f32 0.0, %v614
      %v616 = vpop.f32.mrf.mxu0
      %v617 = vadd.f32 0.0, %v616
      %618 = vmatmul.bf16.gmra.mxu0 %v521
      %v619 = vpop.f32.mrf.mxu0
      %v620 = vadd.f32 0.0, %v619
      %v621 = vpop.f32.mrf.mxu0
      %v622 = vadd.f32 0.0, %v621
      %623 = vmatmul.bf16.gmra.mxu0 %v522
      %v624 = vpop.f32.mrf.mxu0
      %v625 = vadd.f32 0.0, %v624
      %v626 = vpop.f32.mrf.mxu0
      %v627 = vadd.f32 0.0, %v626
      %628 = vmatmul.bf16.gmra.mxu0 %v523
      %v629 = vpop.f32.mrf.mxu0
      %v630 = vadd.f32 0.0, %v629
      %v631 = vpop.f32.mrf.mxu0
      %v632 = vadd.f32 0.0, %v631
      %633 = vmatmul.bf16.gmra.mxu0 %v524
      %v634 = vpop.f32.mrf.mxu0
      %v635 = vadd.f32 0.0, %v634
      %v636 = vpop.f32.mrf.mxu0
      %v637 = vadd.f32 0.0, %v636
      %638 = vmatmul.bf16.gmra.mxu0 %v525
      %v639 = vpop.f32.mrf.mxu0
      %v640 = vadd.f32 0.0, %v639
      %v641 = vpop.f32.mrf.mxu0
      %v642 = vadd.f32 0.0, %v641
      %643 = vmatmul.bf16.gmra.mxu0 %v526
      %v644 = vpop.f32.mrf.mxu0
      %v645 = vadd.f32 0.0, %v644
      %v646 = vpop.f32.mrf.mxu0
      %v647 = vadd.f32 0.0, %v646
      %648 = vmatmul.bf16.gmra.mxu0 %v527
      %v649 = vpop.f32.mrf.mxu0
      %v650 = vadd.f32 0.0, %v649
      %v651 = vpop.f32.mrf.mxu0
      %v652 = vadd.f32 0.0, %v651
      %653 = vmatmul.bf16.gmra.mxu0 %v528
      %v654 = vpop.f32.mrf.mxu0
      %v655 = vadd.f32 0.0, %v654
      %v656 = vpop.f32.mrf.mxu0
      %v657 = vadd.f32 0.0, %v656
      %658 = vmatmul.bf16.gmra.mxu0 %v529
      %v659 = vpop.f32.mrf.mxu0
      %v660 = vadd.f32 0.0, %v659
      %v661 = vpop.f32.mrf.mxu0
      %v662 = vadd.f32 0.0, %v661
      %663 = vmatmul.bf16.gmra.mxu0 %v530
      %v664 = vpop.f32.mrf.mxu0
      %v665 = vadd.f32 0.0, %v664
      %v666 = vpop.f32.mrf.mxu0
      %v667 = vadd.f32 0.0, %v666
      %668 = vmatmul.bf16.gmra.mxu0 %v531
      %v669 = vpop.f32.mrf.mxu0
      %v670 = vadd.f32 0.0, %v669
      %v671 = vpop.f32.mrf.mxu0
      %v672 = vadd.f32 0.0, %v671
      %673 = vmatmul.bf16.gmra.mxu0 %v532
      %v674 = vpop.f32.mrf.mxu0
      %v675 = vadd.f32 0.0, %v674
      %v676 = vpop.f32.mrf.mxu0
      %v677 = vadd.f32 0.0, %v676
      %678 = vmatmul.bf16.gmra.mxu0 %v533
      %v679 = vpop.f32.mrf.mxu0
      %v680 = vadd.f32 0.0, %v679
      %v681 = vpop.f32.mrf.mxu0
      %v682 = vadd.f32 0.0, %v681
      %683 = vmatmul.bf16.gmra.mxu0 %v534
      %v684 = vpop.f32.mrf.mxu0
      %v685 = vadd.f32 0.0, %v684
      %v686 = vpop.f32.mrf.mxu0
      %v687 = vadd.f32 0.0, %v686
      %688 = vdwg.mxu0
      %v705 = vunpack.c.l.b16 %v342
      %v706 = vunpack.c.l.b16 %v343
      %v707 = vunpack.c.l.b16 %v344
      %v708 = vunpack.c.l.b16 %v345
      %v709 = vunpack.c.l.b16 %v346
      %v710 = vunpack.c.l.b16 %v347
      %v711 = vunpack.c.l.b16 %v348
      %v712 = vunpack.c.l.b16 %v349
      %v713 = vunpack.c.l.b16 %v350
      %v714 = vunpack.c.l.b16 %v351
      %v715 = vunpack.c.l.b16 %v352
      %v716 = vunpack.c.l.b16 %v353
      %v717 = vunpack.c.l.b16 %v354
      %v718 = vunpack.c.l.b16 %v355
      %v719 = vunpack.c.l.b16 %v356
      %v720 = vunpack.c.l.b16 %v357
      %v721 = vpack.c.b16 %v706, %v705
      %v722 = vpack.c.b16 %v708, %v707
      %v723 = vpack.c.b16 %v710, %v709
      %v724 = vpack.c.b16 %v712, %v711
      %v725 = vpack.c.b16 %v714, %v713
      %v726 = vpack.c.b16 %v716, %v715
      %v727 = vpack.c.b16 %v718, %v717
      %v728 = vpack.c.b16 %v720, %v719
      %737 = vmatpush.bf16.msra.mxu0 %v728
      %738 = vmatpush.bf16.msra.mxu0 %v727
      %739 = vmatpush.bf16.msra.mxu0 %v726
      %740 = vmatpush.bf16.msra.mxu0 %v725
      %741 = vmatpush.bf16.msra.mxu0 %v724
      %742 = vmatpush.bf16.msra.mxu0 %v723
      %743 = vmatpush.bf16.msra.mxu0 %v722
      %744 = vmatpush.bf16.msra.mxu0 %v721
      %745 = vmatmul.bf16.gmra.mxu0 %v326
      %v746 = vpop.f32.mrf.mxu0
      %v747 = vadd.f32 %v610, %v746
      %v748 = vpop.f32.mrf.mxu0
      %v749 = vadd.f32 %v612, %v748
      %750 = vmatmul.bf16.gmra.mxu0 %v327
      %v751 = vpop.f32.mrf.mxu0
      %v752 = vadd.f32 %v615, %v751
      %v753 = vpop.f32.mrf.mxu0
      %v754 = vadd.f32 %v617, %v753
      %755 = vmatmul.bf16.gmra.mxu0 %v328
      %v756 = vpop.f32.mrf.mxu0
      %v757 = vadd.f32 %v620, %v756
      %v758 = vpop.f32.mrf.mxu0
      %v759 = vadd.f32 %v622, %v758
      %760 = vmatmul.bf16.gmra.mxu0 %v329
      %v761 = vpop.f32.mrf.mxu0
      %v762 = vadd.f32 %v625, %v761
      %v763 = vpop.f32.mrf.mxu0
      %v764 = vadd.f32 %v627, %v763
      %765 = vmatmul.bf16.gmra.mxu0 %v330
      %v766 = vpop.f32.mrf.mxu0
      %v767 = vadd.f32 %v630, %v766
      %v768 = vpop.f32.mrf.mxu0
      %v769 = vadd.f32 %v632, %v768
      %770 = vmatmul.bf16.gmra.mxu0 %v331
      %v771 = vpop.f32.mrf.mxu0
      %v772 = vadd.f32 %v635, %v771
      %v773 = vpop.f32.mrf.mxu0
      %v774 = vadd.f32 %v637, %v773
      %775 = vmatmul.bf16.gmra.mxu0 %v332
      %v776 = vpop.f32.mrf.mxu0
      %v777 = vadd.f32 %v640, %v776
      %v778 = vpop.f32.mrf.mxu0
      %v779 = vadd.f32 %v642, %v778
      %780 = vmatmul.bf16.gmra.mxu0 %v333
      %v781 = vpop.f32.mrf.mxu0
      %v782 = vadd.f32 %v645, %v781
      %v783 = vpop.f32.mrf.mxu0
      %v784 = vadd.f32 %v647, %v783
      %785 = vmatmul.bf16.gmra.mxu0 %v334
      %v786 = vpop.f32.mrf.mxu0
      %v787 = vadd.f32 %v650, %v786
      %v788 = vpop.f32.mrf.mxu0
      %v789 = vadd.f32 %v652, %v788
      %790 = vmatmul.bf16.gmra.mxu0 %v335
      %v791 = vpop.f32.mrf.mxu0
      %v792 = vadd.f32 %v655, %v791
      %v793 = vpop.f32.mrf.mxu0
      %v794 = vadd.f32 %v657, %v793
      %795 = vmatmul.bf16.gmra.mxu0 %v336
      %v796 = vpop.f32.mrf.mxu0
      %v797 = vadd.f32 %v660, %v796
      %v798 = vpop.f32.mrf.mxu0
      %v799 = vadd.f32 %v662, %v798
      %800 = vmatmul.bf16.gmra.mxu0 %v337
      %v801 = vpop.f32.mrf.mxu0
      %v802 = vadd.f32 %v665, %v801
      %v803 = vpop.f32.mrf.mxu0
      %v804 = vadd.f32 %v667, %v803
      %805 = vmatmul.bf16.gmra.mxu0 %v338
      %v806 = vpop.f32.mrf.mxu0
      %v807 = vadd.f32 %v670, %v806
      %v808 = vpop.f32.mrf.mxu0
      %v809 = vadd.f32 %v672, %v808
      %810 = vmatmul.bf16.gmra.mxu0 %v339
      %v811 = vpop.f32.mrf.mxu0
      %v812 = vadd.f32 %v675, %v811
      %v813 = vpop.f32.mrf.mxu0
      %v814 = vadd.f32 %v677, %v813
      %815 = vmatmul.bf16.gmra.mxu0 %v340
      %v816 = vpop.f32.mrf.mxu0
      %v817 = vadd.f32 %v680, %v816
      %v818 = vpop.f32.mrf.mxu0
      %v819 = vadd.f32 %v682, %v818
      %820 = vmatmul.bf16.gmra.mxu0 %v341
      %v821 = vpop.f32.mrf.mxu0
      %v822 = vadd.f32 %v685, %v821
      %v823 = vpop.f32.mrf.mxu0
      %v824 = vadd.f32 %v687, %v823
      %825 = vdwg.mxu0
      %vm826 = vcmask 1045504
      %v827 = vrot.slane %v272, 2
      %v828 = vrot.slane %v273, 2
      %v829 = vsel %vm826, %v827, %v828
      %v830 = vrot.slane %v274, 2
      %v831 = vsel %vm826, %v828, %v830
      %v832 = vrot.slane %v275, 2
      %v833 = vrot.slane %v276, 2
      %v834 = vsel %vm826, %v832, %v833
      %v835 = vrot.slane %v277, 2
      %v836 = vsel %vm826, %v833, %v835
      %v837 = vrot.slane %v278, 2
      %v838 = vrot.slane %v279, 2
      %v839 = vsel %vm826, %v837, %v838
      %v840 = vrot.slane %v280, 2
      %v841 = vsel %vm826, %v838, %v840
      %v842 = vrot.slane %v281, 2
      %v843 = vrot.slane %v282, 2
      %v844 = vsel %vm826, %v842, %v843
      %v845 = vrot.slane %v283, 2
      %v846 = vsel %vm826, %v843, %v845
      %v847 = vrot.slane %v284, 2
      %v848 = vrot.slane %v285, 2
      %v849 = vsel %vm826, %v847, %v848
      %v850 = vrot.slane %v286, 2
      %v851 = vsel %vm826, %v848, %v850
      %v852 = vrot.slane %v287, 2
      %v853 = vrot.slane %v288, 2
      %v854 = vsel %vm826, %v852, %v853
      %v855 = vrot.slane %v289, 2
      %v856 = vsel %vm826, %v853, %v855
      %v857 = vrot.slane %v290, 2
      %v858 = vrot.slane %v291, 2
      %v859 = vsel %vm826, %v857, %v858
      %v860 = vrot.slane %v292, 2
      %v861 = vsel %vm826, %v858, %v860
      %v862 = vrot.slane %v293, 2
      %v863 = vrot.slane %v294, 2
      %v864 = vsel %vm826, %v862, %v863
      %v865 = vrot.slane %v295, 2
      %v866 = vsel %vm826, %v863, %v865
      %v867 = vrot.slane %v296, 2
      %v868 = vrot.slane %v297, 2
      %v869 = vsel %vm826, %v867, %v868
      %v870 = vrot.slane %v298, 2
      %v871 = vsel %vm826, %v868, %v870
      %v872 = vrot.slane %v299, 2
      %v873 = vrot.slane %v300, 2
      %v874 = vsel %vm826, %v872, %v873
      %v875 = vrot.slane %v301, 2
      %v876 = vsel %vm826, %v873, %v875
      %v877 = vrot.slane %v302, 2
      %v878 = vrot.slane %v303, 2
      %v879 = vsel %vm826, %v877, %v878
      %v880 = vrot.slane %v304, 2
      %v881 = vsel %vm826, %v878, %v880
      %v882 = vrot.slane %v305, 2
      %v883 = vrot.slane %v306, 2
      %v884 = vsel %vm826, %v882, %v883
      %v885 = vrot.slane %v307, 2
      %v886 = vsel %vm826, %v883, %v885
      %v887 = vrot.slane %v308, 2
      %v888 = vrot.slane %v309, 2
      %v889 = vsel %vm826, %v887, %v888
      %v890 = vrot.slane %v310, 2
      %v891 = vsel %vm826, %v888, %v890
      %v892 = vrot.slane %v311, 2
      %v893 = vrot.slane %v312, 2
      %v894 = vsel %vm826, %v892, %v893
      %v895 = vrot.slane %v313, 2
      %v896 = vsel %vm826, %v893, %v895
      %v897 = vrot.slane %v314, 2
      %v898 = vrot.slane %v315, 2
      %v899 = vsel %vm826, %v897, %v898
      %v900 = vrot.slane %v316, 2
      %v901 = vsel %vm826, %v898, %v900
      %v902 = vrot.slane %v317, 2
      %v903 = vrot.slane %v318, 2
      %v904 = vsel %vm826, %v902, %v903
      %v905 = vrot.slane %v319, 2
      %v906 = vsel %vm826, %v903, %v905
      %v939 = vpack.c.bf16 %v831, %v829
      %v940 = vpack.c.bf16 %v836, %v834
      %v941 = vpack.c.bf16 %v841, %v839
      %v942 = vpack.c.bf16 %v846, %v844
      %v943 = vpack.c.bf16 %v851, %v849
      %v944 = vpack.c.bf16 %v856, %v854
      %v945 = vpack.c.bf16 %v861, %v859
      %v946 = vpack.c.bf16 %v866, %v864
      %v947 = vpack.c.bf16 %v871, %v869
      %v948 = vpack.c.bf16 %v876, %v874
      %v949 = vpack.c.bf16 %v881, %v879
      %v950 = vpack.c.bf16 %v886, %v884
      %v951 = vpack.c.bf16 %v891, %v889
      %v952 = vpack.c.bf16 %v896, %v894
      %v953 = vpack.c.bf16 %v901, %v899
      %v954 = vpack.c.bf16 %v906, %v904
      %s955 = scalar_lea.vmem %s1, 128
      %v956 = vld [vmem:[%s955] sm:$0xf]
      %v957 = vld [vmem:[%s955 + $0x4] sm:$0xf]
      %v958 = vld [vmem:[%s955 + $0x8] sm:$0xf]
      %v959 = vld [vmem:[%s955 + $0xc] sm:$0xf]
      %v960 = vld [vmem:[%s955 + $0x10] sm:$0xf]
      %v961 = vld [vmem:[%s955 + $0x14] sm:$0xf]
      %v962 = vld [vmem:[%s955 + $0x18] sm:$0xf]
      %v963 = vld [vmem:[%s955 + $0x1c] sm:$0xf]
      %v964 = vld [vmem:[%s955 + $0x20] sm:$0xf]
      %v965 = vld [vmem:[%s955 + $0x24] sm:$0xf]
      %v966 = vld [vmem:[%s955 + $0x28] sm:$0xf]
      %v967 = vld [vmem:[%s955 + $0x2c] sm:$0xf]
      %v968 = vld [vmem:[%s955 + $0x30] sm:$0xf]
      %v969 = vld [vmem:[%s955 + $0x34] sm:$0xf]
      %v970 = vld [vmem:[%s955 + $0x38] sm:$0xf]
      %v971 = vld [vmem:[%s955 + $0x3c] sm:$0xf]
      %v988 = vunpack.c.l.b16 %v956
      %v989 = vunpack.c.l.b16 %v957
      %v990 = vunpack.c.l.b16 %v958
      %v991 = vunpack.c.l.b16 %v959
      %v992 = vunpack.c.l.b16 %v960
      %v993 = vunpack.c.l.b16 %v961
      %v994 = vunpack.c.l.b16 %v962
      %v995 = vunpack.c.l.b16 %v963
      %v996 = vunpack.c.l.b16 %v964
      %v997 = vunpack.c.l.b16 %v965
      %v998 = vunpack.c.l.b16 %v966
      %v999 = vunpack.c.l.b16 %v967
      %v1000 = vunpack.c.l.b16 %v968
      %v1001 = vunpack.c.l.b16 %v969
      %v1002 = vunpack.c.l.b16 %v970
      %v1003 = vunpack.c.l.b16 %v971
      %v1004 = vpack.c.b16 %v989, %v988
      %v1005 = vpack.c.b16 %v991, %v990
      %v1006 = vpack.c.b16 %v993, %v992
      %v1007 = vpack.c.b16 %v995, %v994
      %v1008 = vpack.c.b16 %v997, %v996
      %v1009 = vpack.c.b16 %v999, %v998
      %v1010 = vpack.c.b16 %v1001, %v1000
      %v1011 = vpack.c.b16 %v1003, %v1002
      %1020 = vmatpush.bf16.msra.mxu0 %v1011
      %1021 = vmatpush.bf16.msra.mxu0 %v1010
      %1022 = vmatpush.bf16.msra.mxu0 %v1009
      %1023 = vmatpush.bf16.msra.mxu0 %v1008
      %1024 = vmatpush.bf16.msra.mxu0 %v1007
      %1025 = vmatpush.bf16.msra.mxu0 %v1006
      %1026 = vmatpush.bf16.msra.mxu0 %v1005
      %1027 = vmatpush.bf16.msra.mxu0 %v1004
      %1028 = vmatmul.bf16.gmra.mxu0 %v939
      %v1029 = vpop.f32.mrf.mxu0
      %v1030 = vadd.f32 0.0, %v1029
      %v1031 = vpop.f32.mrf.mxu0
      %v1032 = vadd.f32 0.0, %v1031
      %1033 = vmatmul.bf16.gmra.mxu0 %v940
      %v1034 = vpop.f32.mrf.mxu0
      %v1035 = vadd.f32 0.0, %v1034
      %v1036 = vpop.f32.mrf.mxu0
      %v1037 = vadd.f32 0.0, %v1036
      %1038 = vmatmul.bf16.gmra.mxu0 %v941
      %v1039 = vpop.f32.mrf.mxu0
      %v1040 = vadd.f32 0.0, %v1039
      %v1041 = vpop.f32.mrf.mxu0
      %v1042 = vadd.f32 0.0, %v1041
      %1043 = vmatmul.bf16.gmra.mxu0 %v942
      %v1044 = vpop.f32.mrf.mxu0
      %v1045 = vadd.f32 0.0, %v1044
      %v1046 = vpop.f32.mrf.mxu0
      %v1047 = vadd.f32 0.0, %v1046
      %1048 = vmatmul.bf16.gmra.mxu0 %v943
      %v1049 = vpop.f32.mrf.mxu0
      %v1050 = vadd.f32 0.0, %v1049
      %v1051 = vpop.f32.mrf.mxu0
      %v1052 = vadd.f32 0.0, %v1051
      %1053 = vmatmul.bf16.gmra.mxu0 %v944
      %v1054 = vpop.f32.mrf.mxu0
      %v1055 = vadd.f32 0.0, %v1054
      %v1056 = vpop.f32.mrf.mxu0
      %v1057 = vadd.f32 0.0, %v1056
      %1058 = vmatmul.bf16.gmra.mxu0 %v945
      %v1059 = vpop.f32.mrf.mxu0
      %v1060 = vadd.f32 0.0, %v1059
      %v1061 = vpop.f32.mrf.mxu0
      %v1062 = vadd.f32 0.0, %v1061
      %1063 = vmatmul.bf16.gmra.mxu0 %v946
      %v1064 = vpop.f32.mrf.mxu0
      %v1065 = vadd.f32 0.0, %v1064
      %v1066 = vpop.f32.mrf.mxu0
      %v1067 = vadd.f32 0.0, %v1066
      %1068 = vmatmul.bf16.gmra.mxu0 %v947
      %v1069 = vpop.f32.mrf.mxu0
      %v1070 = vadd.f32 0.0, %v1069
      %v1071 = vpop.f32.mrf.mxu0
      %v1072 = vadd.f32 0.0, %v1071
      %1073 = vmatmul.bf16.gmra.mxu0 %v948
      %v1074 = vpop.f32.mrf.mxu0
      %v1075 = vadd.f32 0.0, %v1074
      %v1076 = vpop.f32.mrf.mxu0
      %v1077 = vadd.f32 0.0, %v1076
      %1078 = vmatmul.bf16.gmra.mxu0 %v949
      %v1079 = vpop.f32.mrf.mxu0
      %v1080 = vadd.f32 0.0, %v1079
      %v1081 = vpop.f32.mrf.mxu0
      %v1082 = vadd.f32 0.0, %v1081
      %1083 = vmatmul.bf16.gmra.mxu0 %v950
      %v1084 = vpop.f32.mrf.mxu0
      %v1085 = vadd.f32 0.0, %v1084
      %v1086 = vpop.f32.mrf.mxu0
      %v1087 = vadd.f32 0.0, %v1086
      %1088 = vmatmul.bf16.gmra.mxu0 %v951
      %v1089 = vpop.f32.mrf.mxu0
      %v1090 = vadd.f32 0.0, %v1089
      %v1091 = vpop.f32.mrf.mxu0
      %v1092 = vadd.f32 0.0, %v1091
      %1093 = vmatmul.bf16.gmra.mxu0 %v952
      %v1094 = vpop.f32.mrf.mxu0
      %v1095 = vadd.f32 0.0, %v1094
      %v1096 = vpop.f32.mrf.mxu0
      %v1097 = vadd.f32 0.0, %v1096
      %1098 = vmatmul.bf16.gmra.mxu0 %v953
      %v1099 = vpop.f32.mrf.mxu0
      %v1100 = vadd.f32 0.0, %v1099
      %v1101 = vpop.f32.mrf.mxu0
      %v1102 = vadd.f32 0.0, %v1101
      %1103 = vmatmul.bf16.gmra.mxu0 %v954
      %v1104 = vpop.f32.mrf.mxu0
      %v1105 = vadd.f32 0.0, %v1104
      %v1106 = vpop.f32.mrf.mxu0
      %v1107 = vadd.f32 0.0, %v1106
      %1108 = vdwg.mxu0
      %v1109 = vadd.f32 %v747, %v1030
      %v1110 = vadd.f32 %v749, %v1032
      %v1111 = vadd.f32 %v752, %v1035
      %v1112 = vadd.f32 %v754, %v1037
      %v1113 = vadd.f32 %v757, %v1040
      %v1114 = vadd.f32 %v759, %v1042
      %v1115 = vadd.f32 %v762, %v1045
      %v1116 = vadd.f32 %v764, %v1047
      %v1117 = vadd.f32 %v767, %v1050
      %v1118 = vadd.f32 %v769, %v1052
      %v1119 = vadd.f32 %v772, %v1055
      %v1120 = vadd.f32 %v774, %v1057
      %v1121 = vadd.f32 %v777, %v1060
      %v1122 = vadd.f32 %v779, %v1062
      %v1123 = vadd.f32 %v782, %v1065
      %v1124 = vadd.f32 %v784, %v1067
      %v1125 = vadd.f32 %v787, %v1070
      %v1126 = vadd.f32 %v789, %v1072
      %v1127 = vadd.f32 %v792, %v1075
      %v1128 = vadd.f32 %v794, %v1077
      %v1129 = vadd.f32 %v797, %v1080
      %v1130 = vadd.f32 %v799, %v1082
      %v1131 = vadd.f32 %v802, %v1085
      %v1132 = vadd.f32 %v804, %v1087
      %v1133 = vadd.f32 %v807, %v1090
      %v1134 = vadd.f32 %v809, %v1092
      %v1135 = vadd.f32 %v812, %v1095
      %v1136 = vadd.f32 %v814, %v1097
      %v1137 = vadd.f32 %v817, %v1100
      %v1138 = vadd.f32 %v819, %v1102
      %v1139 = vadd.f32 %v822, %v1105
      %v1140 = vadd.f32 %v824, %v1107
      %v1141 = vpack.c.bf16 %v321, %v320
      %s1142 = scalar_lea.vmem %s1, 192
      %v1143 = vld [vmem:[%s1142] sm:$0xf]
      %v1144 = vld [vmem:[%s1142 + $0x4] sm:$0xf]
      %v1145 = vld [vmem:[%s1142 + $0x8] sm:$0xf]
      %v1146 = vld [vmem:[%s1142 + $0xc] sm:$0xf]
      %v1147 = vld [vmem:[%s1142 + $0x10] sm:$0xf]
      %v1148 = vld [vmem:[%s1142 + $0x14] sm:$0xf]
      %v1149 = vld [vmem:[%s1142 + $0x18] sm:$0xf]
      %v1150 = vld [vmem:[%s1142 + $0x1c] sm:$0xf]
      %v1151 = vld [vmem:[%s1142 + $0x20] sm:$0xf]
      %v1152 = vld [vmem:[%s1142 + $0x24] sm:$0xf]
      %v1153 = vld [vmem:[%s1142 + $0x28] sm:$0xf]
      %v1154 = vld [vmem:[%s1142 + $0x2c] sm:$0xf]
      %v1155 = vld [vmem:[%s1142 + $0x30] sm:$0xf]
      %v1156 = vld [vmem:[%s1142 + $0x34] sm:$0xf]
      %v1157 = vld [vmem:[%s1142 + $0x38] sm:$0xf]
      %v1158 = vld [vmem:[%s1142 + $0x3c] sm:$0xf]
      %v1175 = vunpack.c.l.b16 %v1143
      %v1176 = vunpack.c.l.b16 %v1144
      %v1177 = vunpack.c.l.b16 %v1145
      %v1178 = vunpack.c.l.b16 %v1146
      %v1179 = vunpack.c.l.b16 %v1147
      %v1180 = vunpack.c.l.b16 %v1148
      %v1181 = vunpack.c.l.b16 %v1149
      %v1182 = vunpack.c.l.b16 %v1150
      %v1183 = vunpack.c.l.b16 %v1151
      %v1184 = vunpack.c.l.b16 %v1152
      %v1185 = vunpack.c.l.b16 %v1153
      %v1186 = vunpack.c.l.b16 %v1154
      %v1187 = vunpack.c.l.b16 %v1155
      %v1188 = vunpack.c.l.b16 %v1156
      %v1189 = vunpack.c.l.b16 %v1157
      %v1190 = vunpack.c.l.b16 %v1158
      %v1191 = vpack.c.b16 %v1176, %v1175
      %v1192 = vpack.c.b16 %v1178, %v1177
      %v1193 = vpack.c.b16 %v1180, %v1179
      %v1194 = vpack.c.b16 %v1182, %v1181
      %v1195 = vpack.c.b16 %v1184, %v1183
      %v1196 = vpack.c.b16 %v1186, %v1185
      %v1197 = vpack.c.b16 %v1188, %v1187
      %v1198 = vpack.c.b16 %v1190, %v1189
      %1207 = vmatpush.bf16.msra.mxu0 %v1198
      %1208 = vmatpush.bf16.msra.mxu0 %v1197
      %1209 = vmatpush.bf16.msra.mxu0 %v1196
      %1210 = vmatpush.bf16.msra.mxu0 %v1195
      %1211 = vmatpush.bf16.msra.mxu0 %v1194
      %1212 = vmatpush.bf16.msra.mxu0 %v1193
      %1213 = vmatpush.bf16.msra.mxu0 %v1192
      %1214 = vmatpush.bf16.msra.mxu0 %v1191
      %1215 = vmatmul.bf16.gmra.mxu0 %v327
      %v1216 = vpop.f32.mrf.mxu0
      %v1217 = vadd.f32 0.0, %v1216
      %v1218 = vpop.f32.mrf.mxu0
      %v1219 = vadd.f32 0.0, %v1218
      %1220 = vmatmul.bf16.gmra.mxu0 %v328
      %v1221 = vpop.f32.mrf.mxu0
      %v1222 = vadd.f32 0.0, %v1221
      %v1223 = vpop.f32.mrf.mxu0
      %v1224 = vadd.f32 0.0, %v1223
      %1225 = vmatmul.bf16.gmra.mxu0 %v329
      %v1226 = vpop.f32.mrf.mxu0
      %v1227 = vadd.f32 0.0, %v1226
      %v1228 = vpop.f32.mrf.mxu0
      %v1229 = vadd.f32 0.0, %v1228
      %1230 = vmatmul.bf16.gmra.mxu0 %v330
      %v1231 = vpop.f32.mrf.mxu0
      %v1232 = vadd.f32 0.0, %v1231
      %v1233 = vpop.f32.mrf.mxu0
      %v1234 = vadd.f32 0.0, %v1233
      %1235 = vmatmul.bf16.gmra.mxu0 %v331
      %v1236 = vpop.f32.mrf.mxu0
      %v1237 = vadd.f32 0.0, %v1236
      %v1238 = vpop.f32.mrf.mxu0
      %v1239 = vadd.f32 0.0, %v1238
      %1240 = vmatmul.bf16.gmra.mxu0 %v332
      %v1241 = vpop.f32.mrf.mxu0
      %v1242 = vadd.f32 0.0, %v1241
      %v1243 = vpop.f32.mrf.mxu0
      %v1244 = vadd.f32 0.0, %v1243
      %1245 = vmatmul.bf16.gmra.mxu0 %v333
      %v1246 = vpop.f32.mrf.mxu0
      %v1247 = vadd.f32 0.0, %v1246
      %v1248 = vpop.f32.mrf.mxu0
      %v1249 = vadd.f32 0.0, %v1248
      %1250 = vmatmul.bf16.gmra.mxu0 %v334
      %v1251 = vpop.f32.mrf.mxu0
      %v1252 = vadd.f32 0.0, %v1251
      %v1253 = vpop.f32.mrf.mxu0
      %v1254 = vadd.f32 0.0, %v1253
      %1255 = vmatmul.bf16.gmra.mxu0 %v335
      %v1256 = vpop.f32.mrf.mxu0
      %v1257 = vadd.f32 0.0, %v1256
      %v1258 = vpop.f32.mrf.mxu0
      %v1259 = vadd.f32 0.0, %v1258
      %1260 = vmatmul.bf16.gmra.mxu0 %v336
      %v1261 = vpop.f32.mrf.mxu0
      %v1262 = vadd.f32 0.0, %v1261
      %v1263 = vpop.f32.mrf.mxu0
      %v1264 = vadd.f32 0.0, %v1263
      %1265 = vmatmul.bf16.gmra.mxu0 %v337
      %v1266 = vpop.f32.mrf.mxu0
      %v1267 = vadd.f32 0.0, %v1266
      %v1268 = vpop.f32.mrf.mxu0
      %v1269 = vadd.f32 0.0, %v1268
      %1270 = vmatmul.bf16.gmra.mxu0 %v338
      %v1271 = vpop.f32.mrf.mxu0
      %v1272 = vadd.f32 0.0, %v1271
      %v1273 = vpop.f32.mrf.mxu0
      %v1274 = vadd.f32 0.0, %v1273
      %1275 = vmatmul.bf16.gmra.mxu0 %v339
      %v1276 = vpop.f32.mrf.mxu0
      %v1277 = vadd.f32 0.0, %v1276
      %v1278 = vpop.f32.mrf.mxu0
      %v1279 = vadd.f32 0.0, %v1278
      %1280 = vmatmul.bf16.gmra.mxu0 %v340
      %v1281 = vpop.f32.mrf.mxu0
      %v1282 = vadd.f32 0.0, %v1281
      %v1283 = vpop.f32.mrf.mxu0
      %v1284 = vadd.f32 0.0, %v1283
      %1285 = vmatmul.bf16.gmra.mxu0 %v341
      %v1286 = vpop.f32.mrf.mxu0
      %v1287 = vadd.f32 0.0, %v1286
      %v1288 = vpop.f32.mrf.mxu0
      %v1289 = vadd.f32 0.0, %v1288
      %1290 = vmatmul.bf16.gmra.mxu0 %v1141
      %v1291 = vpop.f32.mrf.mxu0
      %v1292 = vadd.f32 0.0, %v1291
      %v1293 = vpop.f32.mrf.mxu0
      %v1294 = vadd.f32 0.0, %v1293
      %1295 = vdwg.mxu0
      %v1296 = vadd.f32 %v1109, %v1217
      %v1297 = vadd.f32 %v1110, %v1219
      %v1298 = vadd.f32 %v1111, %v1222
      %v1299 = vadd.f32 %v1112, %v1224
      %v1300 = vadd.f32 %v1113, %v1227
      %v1301 = vadd.f32 %v1114, %v1229
      %v1302 = vadd.f32 %v1115, %v1232
      %v1303 = vadd.f32 %v1116, %v1234
      %v1304 = vadd.f32 %v1117, %v1237
      %v1305 = vadd.f32 %v1118, %v1239
      %v1306 = vadd.f32 %v1119, %v1242
      %v1307 = vadd.f32 %v1120, %v1244
      %v1308 = vadd.f32 %v1121, %v1247
      %v1309 = vadd.f32 %v1122, %v1249
      %v1310 = vadd.f32 %v1123, %v1252
      %v1311 = vadd.f32 %v1124, %v1254
      %v1312 = vadd.f32 %v1125, %v1257
      %v1313 = vadd.f32 %v1126, %v1259
      %v1314 = vadd.f32 %v1127, %v1262
      %v1315 = vadd.f32 %v1128, %v1264
      %v1316 = vadd.f32 %v1129, %v1267
      %v1317 = vadd.f32 %v1130, %v1269
      %v1318 = vadd.f32 %v1131, %v1272
      %v1319 = vadd.f32 %v1132, %v1274
      %v1320 = vadd.f32 %v1133, %v1277
      %v1321 = vadd.f32 %v1134, %v1279
      %v1322 = vadd.f32 %v1135, %v1282
      %v1323 = vadd.f32 %v1136, %v1284
      %v1324 = vadd.f32 %v1137, %v1287
      %v1325 = vadd.f32 %v1138, %v1289
      %v1326 = vadd.f32 %v1139, %v1292
      %v1327 = vadd.f32 %v1140, %v1294
      %v1331 = vrot.slane %v320, 1
      %v1332 = vrot.slane %v321, 1
      %v1333 = vsel %vm406, %v1331, %v1332
      %v1334 = vrot.slane %v322, 1
      %v1335 = vsel %vm406, %v1332, %v1334
      %v1338 = vpack.c.bf16 %v1335, %v1333
      %s1339 = scalar_lea.vmem %s1, 256
      %v1340 = vld [vmem:[%s1339] sm:$0xf]
      %v1341 = vld [vmem:[%s1339 + $0x4] sm:$0xf]
      %v1342 = vld [vmem:[%s1339 + $0x8] sm:$0xf]
      %v1343 = vld [vmem:[%s1339 + $0xc] sm:$0xf]
      %v1344 = vld [vmem:[%s1339 + $0x10] sm:$0xf]
      %v1345 = vld [vmem:[%s1339 + $0x14] sm:$0xf]
      %v1346 = vld [vmem:[%s1339 + $0x18] sm:$0xf]
      %v1347 = vld [vmem:[%s1339 + $0x1c] sm:$0xf]
      %v1348 = vld [vmem:[%s1339 + $0x20] sm:$0xf]
      %v1349 = vld [vmem:[%s1339 + $0x24] sm:$0xf]
      %v1350 = vld [vmem:[%s1339 + $0x28] sm:$0xf]
      %v1351 = vld [vmem:[%s1339 + $0x2c] sm:$0xf]
      %v1352 = vld [vmem:[%s1339 + $0x30] sm:$0xf]
      %v1353 = vld [vmem:[%s1339 + $0x34] sm:$0xf]
      %v1354 = vld [vmem:[%s1339 + $0x38] sm:$0xf]
      %v1355 = vld [vmem:[%s1339 + $0x3c] sm:$0xf]
      %v1372 = vunpack.c.l.b16 %v1340
      %v1373 = vunpack.c.l.b16 %v1341
      %v1374 = vunpack.c.l.b16 %v1342
      %v1375 = vunpack.c.l.b16 %v1343
      %v1376 = vunpack.c.l.b16 %v1344
      %v1377 = vunpack.c.l.b16 %v1345
      %v1378 = vunpack.c.l.b16 %v1346
      %v1379 = vunpack.c.l.b16 %v1347
      %v1380 = vunpack.c.l.b16 %v1348
      %v1381 = vunpack.c.l.b16 %v1349
      %v1382 = vunpack.c.l.b16 %v1350
      %v1383 = vunpack.c.l.b16 %v1351
      %v1384 = vunpack.c.l.b16 %v1352
      %v1385 = vunpack.c.l.b16 %v1353
      %v1386 = vunpack.c.l.b16 %v1354
      %v1387 = vunpack.c.l.b16 %v1355
      %v1388 = vpack.c.b16 %v1373, %v1372
      %v1389 = vpack.c.b16 %v1375, %v1374
      %v1390 = vpack.c.b16 %v1377, %v1376
      %v1391 = vpack.c.b16 %v1379, %v1378
      %v1392 = vpack.c.b16 %v1381, %v1380
      %v1393 = vpack.c.b16 %v1383, %v1382
      %v1394 = vpack.c.b16 %v1385, %v1384
      %v1395 = vpack.c.b16 %v1387, %v1386
      %1404 = vmatpush.bf16.msra.mxu0 %v1395
      %1405 = vmatpush.bf16.msra.mxu0 %v1394
      %1406 = vmatpush.bf16.msra.mxu0 %v1393
      %1407 = vmatpush.bf16.msra.mxu0 %v1392
      %1408 = vmatpush.bf16.msra.mxu0 %v1391
      %1409 = vmatpush.bf16.msra.mxu0 %v1390
      %1410 = vmatpush.bf16.msra.mxu0 %v1389
      %1411 = vmatpush.bf16.msra.mxu0 %v1388
      %1412 = vmatmul.bf16.gmra.mxu0 %v520
      %v1413 = vpop.f32.mrf.mxu0
      %v1414 = vadd.f32 0.0, %v1413
      %v1415 = vpop.f32.mrf.mxu0
      %v1416 = vadd.f32 0.0, %v1415
      %1417 = vmatmul.bf16.gmra.mxu0 %v521
      %v1418 = vpop.f32.mrf.mxu0
      %v1419 = vadd.f32 0.0, %v1418
      %v1420 = vpop.f32.mrf.mxu0
      %v1421 = vadd.f32 0.0, %v1420
      %1422 = vmatmul.bf16.gmra.mxu0 %v522
      %v1423 = vpop.f32.mrf.mxu0
      %v1424 = vadd.f32 0.0, %v1423
      %v1425 = vpop.f32.mrf.mxu0
      %v1426 = vadd.f32 0.0, %v1425
      %1427 = vmatmul.bf16.gmra.mxu0 %v523
      %v1428 = vpop.f32.mrf.mxu0
      %v1429 = vadd.f32 0.0, %v1428
      %v1430 = vpop.f32.mrf.mxu0
      %v1431 = vadd.f32 0.0, %v1430
      %1432 = vmatmul.bf16.gmra.mxu0 %v524
      %v1433 = vpop.f32.mrf.mxu0
      %v1434 = vadd.f32 0.0, %v1433
      %v1435 = vpop.f32.mrf.mxu0
      %v1436 = vadd.f32 0.0, %v1435
      %1437 = vmatmul.bf16.gmra.mxu0 %v525
      %v1438 = vpop.f32.mrf.mxu0
      %v1439 = vadd.f32 0.0, %v1438
      %v1440 = vpop.f32.mrf.mxu0
      %v1441 = vadd.f32 0.0, %v1440
      %1442 = vmatmul.bf16.gmra.mxu0 %v526
      %v1443 = vpop.f32.mrf.mxu0
      %v1444 = vadd.f32 0.0, %v1443
      %v1445 = vpop.f32.mrf.mxu0
      %v1446 = vadd.f32 0.0, %v1445
      %1447 = vmatmul.bf16.gmra.mxu0 %v527
      %v1448 = vpop.f32.mrf.mxu0
      %v1449 = vadd.f32 0.0, %v1448
      %v1450 = vpop.f32.mrf.mxu0
      %v1451 = vadd.f32 0.0, %v1450
      %1452 = vmatmul.bf16.gmra.mxu0 %v528
      %v1453 = vpop.f32.mrf.mxu0
      %v1454 = vadd.f32 0.0, %v1453
      %v1455 = vpop.f32.mrf.mxu0
      %v1456 = vadd.f32 0.0, %v1455
      %1457 = vmatmul.bf16.gmra.mxu0 %v529
      %v1458 = vpop.f32.mrf.mxu0
      %v1459 = vadd.f32 0.0, %v1458
      %v1460 = vpop.f32.mrf.mxu0
      %v1461 = vadd.f32 0.0, %v1460
      %1462 = vmatmul.bf16.gmra.mxu0 %v530
      %v1463 = vpop.f32.mrf.mxu0
      %v1464 = vadd.f32 0.0, %v1463
      %v1465 = vpop.f32.mrf.mxu0
      %v1466 = vadd.f32 0.0, %v1465
      %1467 = vmatmul.bf16.gmra.mxu0 %v531
      %v1468 = vpop.f32.mrf.mxu0
      %v1469 = vadd.f32 0.0, %v1468
      %v1470 = vpop.f32.mrf.mxu0
      %v1471 = vadd.f32 0.0, %v1470
      %1472 = vmatmul.bf16.gmra.mxu0 %v532
      %v1473 = vpop.f32.mrf.mxu0
      %v1474 = vadd.f32 0.0, %v1473
      %v1475 = vpop.f32.mrf.mxu0
      %v1476 = vadd.f32 0.0, %v1475
      %1477 = vmatmul.bf16.gmra.mxu0 %v533
      %v1478 = vpop.f32.mrf.mxu0
      %v1479 = vadd.f32 0.0, %v1478
      %v1480 = vpop.f32.mrf.mxu0
      %v1481 = vadd.f32 0.0, %v1480
      %1482 = vmatmul.bf16.gmra.mxu0 %v534
      %v1483 = vpop.f32.mrf.mxu0
      %v1484 = vadd.f32 0.0, %v1483
      %v1485 = vpop.f32.mrf.mxu0
      %v1486 = vadd.f32 0.0, %v1485
      %1487 = vmatmul.bf16.gmra.mxu0 %v1338
      %v1488 = vpop.f32.mrf.mxu0
      %v1489 = vadd.f32 0.0, %v1488
      %v1490 = vpop.f32.mrf.mxu0
      %v1491 = vadd.f32 0.0, %v1490
      %1492 = vdwg.mxu0
      %v1493 = vadd.f32 %v1296, %v1414
      %v1494 = vadd.f32 %v1297, %v1416
      %v1495 = vadd.f32 %v1298, %v1419
      %v1496 = vadd.f32 %v1299, %v1421
      %v1497 = vadd.f32 %v1300, %v1424
      %v1498 = vadd.f32 %v1301, %v1426
      %v1499 = vadd.f32 %v1302, %v1429
      %v1500 = vadd.f32 %v1303, %v1431
      %v1501 = vadd.f32 %v1304, %v1434
      %v1502 = vadd.f32 %v1305, %v1436
      %v1503 = vadd.f32 %v1306, %v1439
      %v1504 = vadd.f32 %v1307, %v1441
      %v1505 = vadd.f32 %v1308, %v1444
      %v1506 = vadd.f32 %v1309, %v1446
      %v1507 = vadd.f32 %v1310, %v1449
      %v1508 = vadd.f32 %v1311, %v1451
      %v1509 = vadd.f32 %v1312, %v1454
      %v1510 = vadd.f32 %v1313, %v1456
      %v1511 = vadd.f32 %v1314, %v1459
      %v1512 = vadd.f32 %v1315, %v1461
      %v1513 = vadd.f32 %v1316, %v1464
      %v1514 = vadd.f32 %v1317, %v1466
      %v1515 = vadd.f32 %v1318, %v1469
      %v1516 = vadd.f32 %v1319, %v1471
      %v1517 = vadd.f32 %v1320, %v1474
      %v1518 = vadd.f32 %v1321, %v1476
      %v1519 = vadd.f32 %v1322, %v1479
      %v1520 = vadd.f32 %v1323, %v1481
      %v1521 = vadd.f32 %v1324, %v1484
      %v1522 = vadd.f32 %v1325, %v1486
      %v1523 = vadd.f32 %v1326, %v1489
      %v1524 = vadd.f32 %v1327, %v1491
      %v1525 = vrot.slane %v320, 2
      %v1526 = vrot.slane %v321, 2
      %v1527 = vsel %vm826, %v1525, %v1526
      %v1528 = vrot.slane %v322, 2
      %v1529 = vsel %vm826, %v1526, %v1528
      %v1532 = vpack.c.bf16 %v1529, %v1527
      %s1533 = scalar_lea.vmem %s1, 320
      %v1534 = vld [vmem:[%s1533] sm:$0xf]
      %v1535 = vld [vmem:[%s1533 + $0x4] sm:$0xf]
      %v1536 = vld [vmem:[%s1533 + $0x8] sm:$0xf]
      %v1537 = vld [vmem:[%s1533 + $0xc] sm:$0xf]
      %v1538 = vld [vmem:[%s1533 + $0x10] sm:$0xf]
      %v1539 = vld [vmem:[%s1533 + $0x14] sm:$0xf]
      %v1540 = vld [vmem:[%s1533 + $0x18] sm:$0xf]
      %v1541 = vld [vmem:[%s1533 + $0x1c] sm:$0xf]
      %v1542 = vld [vmem:[%s1533 + $0x20] sm:$0xf]
      %v1543 = vld [vmem:[%s1533 + $0x24] sm:$0xf]
      %v1544 = vld [vmem:[%s1533 + $0x28] sm:$0xf]
      %v1545 = vld [vmem:[%s1533 + $0x2c] sm:$0xf]
      %v1546 = vld [vmem:[%s1533 + $0x30] sm:$0xf]
      %v1547 = vld [vmem:[%s1533 + $0x34] sm:$0xf]
      %v1548 = vld [vmem:[%s1533 + $0x38] sm:$0xf]
      %v1549 = vld [vmem:[%s1533 + $0x3c] sm:$0xf]
      %v1566 = vunpack.c.l.b16 %v1534
      %v1567 = vunpack.c.l.b16 %v1535
      %v1568 = vunpack.c.l.b16 %v1536
      %v1569 = vunpack.c.l.b16 %v1537
      %v1570 = vunpack.c.l.b16 %v1538
      %v1571 = vunpack.c.l.b16 %v1539
      %v1572 = vunpack.c.l.b16 %v1540
      %v1573 = vunpack.c.l.b16 %v1541
      %v1574 = vunpack.c.l.b16 %v1542
      %v1575 = vunpack.c.l.b16 %v1543
      %v1576 = vunpack.c.l.b16 %v1544
      %v1577 = vunpack.c.l.b16 %v1545
      %v1578 = vunpack.c.l.b16 %v1546
      %v1579 = vunpack.c.l.b16 %v1547
      %v1580 = vunpack.c.l.b16 %v1548
      %v1581 = vunpack.c.l.b16 %v1549
      %v1582 = vpack.c.b16 %v1567, %v1566
      %v1583 = vpack.c.b16 %v1569, %v1568
      %v1584 = vpack.c.b16 %v1571, %v1570
      %v1585 = vpack.c.b16 %v1573, %v1572
      %v1586 = vpack.c.b16 %v1575, %v1574
      %v1587 = vpack.c.b16 %v1577, %v1576
      %v1588 = vpack.c.b16 %v1579, %v1578
      %v1589 = vpack.c.b16 %v1581, %v1580
      %1598 = vmatpush.bf16.msra.mxu0 %v1589
      %1599 = vmatpush.bf16.msra.mxu0 %v1588
      %1600 = vmatpush.bf16.msra.mxu0 %v1587
      %1601 = vmatpush.bf16.msra.mxu0 %v1586
      %1602 = vmatpush.bf16.msra.mxu0 %v1585
      %1603 = vmatpush.bf16.msra.mxu0 %v1584
      %1604 = vmatpush.bf16.msra.mxu0 %v1583
      %1605 = vmatpush.bf16.msra.mxu0 %v1582
      %1606 = vmatmul.bf16.gmra.mxu0 %v940
      %v1607 = vpop.f32.mrf.mxu0
      %v1608 = vadd.f32 0.0, %v1607
      %v1609 = vpop.f32.mrf.mxu0
      %v1610 = vadd.f32 0.0, %v1609
      %1611 = vmatmul.bf16.gmra.mxu0 %v941
      %v1612 = vpop.f32.mrf.mxu0
      %v1613 = vadd.f32 0.0, %v1612
      %v1614 = vpop.f32.mrf.mxu0
      %v1615 = vadd.f32 0.0, %v1614
      %1616 = vmatmul.bf16.gmra.mxu0 %v942
      %v1617 = vpop.f32.mrf.mxu0
      %v1618 = vadd.f32 0.0, %v1617
      %v1619 = vpop.f32.mrf.mxu0
      %v1620 = vadd.f32 0.0, %v1619
      %1621 = vmatmul.bf16.gmra.mxu0 %v943
      %v1622 = vpop.f32.mrf.mxu0
      %v1623 = vadd.f32 0.0, %v1622
      %v1624 = vpop.f32.mrf.mxu0
      %v1625 = vadd.f32 0.0, %v1624
      %1626 = vmatmul.bf16.gmra.mxu0 %v944
      %v1627 = vpop.f32.mrf.mxu0
      %v1628 = vadd.f32 0.0, %v1627
      %v1629 = vpop.f32.mrf.mxu0
      %v1630 = vadd.f32 0.0, %v1629
      %1631 = vmatmul.bf16.gmra.mxu0 %v945
      %v1632 = vpop.f32.mrf.mxu0
      %v1633 = vadd.f32 0.0, %v1632
      %v1634 = vpop.f32.mrf.mxu0
      %v1635 = vadd.f32 0.0, %v1634
      %1636 = vmatmul.bf16.gmra.mxu0 %v946
      %v1637 = vpop.f32.mrf.mxu0
      %v1638 = vadd.f32 0.0, %v1637
      %v1639 = vpop.f32.mrf.mxu0
      %v1640 = vadd.f32 0.0, %v1639
      %1641 = vmatmul.bf16.gmra.mxu0 %v947
      %v1642 = vpop.f32.mrf.mxu0
      %v1643 = vadd.f32 0.0, %v1642
      %v1644 = vpop.f32.mrf.mxu0
      %v1645 = vadd.f32 0.0, %v1644
      %1646 = vmatmul.bf16.gmra.mxu0 %v948
      %v1647 = vpop.f32.mrf.mxu0
      %v1648 = vadd.f32 0.0, %v1647
      %v1649 = vpop.f32.mrf.mxu0
      %v1650 = vadd.f32 0.0, %v1649
      %1651 = vmatmul.bf16.gmra.mxu0 %v949
      %v1652 = vpop.f32.mrf.mxu0
      %v1653 = vadd.f32 0.0, %v1652
      %v1654 = vpop.f32.mrf.mxu0
      %v1655 = vadd.f32 0.0, %v1654
      %1656 = vmatmul.bf16.gmra.mxu0 %v950
      %v1657 = vpop.f32.mrf.mxu0
      %v1658 = vadd.f32 0.0, %v1657
      %v1659 = vpop.f32.mrf.mxu0
      %v1660 = vadd.f32 0.0, %v1659
      %1661 = vmatmul.bf16.gmra.mxu0 %v951
      %v1662 = vpop.f32.mrf.mxu0
      %v1663 = vadd.f32 0.0, %v1662
      %v1664 = vpop.f32.mrf.mxu0
      %v1665 = vadd.f32 0.0, %v1664
      %1666 = vmatmul.bf16.gmra.mxu0 %v952
      %v1667 = vpop.f32.mrf.mxu0
      %v1668 = vadd.f32 0.0, %v1667
      %v1669 = vpop.f32.mrf.mxu0
      %v1670 = vadd.f32 0.0, %v1669
      %1671 = vmatmul.bf16.gmra.mxu0 %v953
      %v1672 = vpop.f32.mrf.mxu0
      %v1673 = vadd.f32 0.0, %v1672
      %v1674 = vpop.f32.mrf.mxu0
      %v1675 = vadd.f32 0.0, %v1674
      %1676 = vmatmul.bf16.gmra.mxu0 %v954
      %v1677 = vpop.f32.mrf.mxu0
      %v1678 = vadd.f32 0.0, %v1677
      %v1679 = vpop.f32.mrf.mxu0
      %v1680 = vadd.f32 0.0, %v1679
      %1681 = vmatmul.bf16.gmra.mxu0 %v1532
      %v1682 = vpop.f32.mrf.mxu0
      %v1683 = vadd.f32 0.0, %v1682
      %v1684 = vpop.f32.mrf.mxu0
      %v1685 = vadd.f32 0.0, %v1684
      %1686 = vdwg.mxu0
      %v1687 = vadd.f32 %v1493, %v1608
      %v1688 = vadd.f32 %v1494, %v1610
      %v1689 = vadd.f32 %v1495, %v1613
      %v1690 = vadd.f32 %v1496, %v1615
      %v1691 = vadd.f32 %v1497, %v1618
      %v1692 = vadd.f32 %v1498, %v1620
      %v1693 = vadd.f32 %v1499, %v1623
      %v1694 = vadd.f32 %v1500, %v1625
      %v1695 = vadd.f32 %v1501, %v1628
      %v1696 = vadd.f32 %v1502, %v1630
      %v1697 = vadd.f32 %v1503, %v1633
      %v1698 = vadd.f32 %v1504, %v1635
      %v1699 = vadd.f32 %v1505, %v1638
      %v1700 = vadd.f32 %v1506, %v1640
      %v1701 = vadd.f32 %v1507, %v1643
      %v1702 = vadd.f32 %v1508, %v1645
      %v1703 = vadd.f32 %v1509, %v1648
      %v1704 = vadd.f32 %v1510, %v1650
      %v1705 = vadd.f32 %v1511, %v1653
      %v1706 = vadd.f32 %v1512, %v1655
      %v1707 = vadd.f32 %v1513, %v1658
      %v1708 = vadd.f32 %v1514, %v1660
      %v1709 = vadd.f32 %v1515, %v1663
      %v1710 = vadd.f32 %v1516, %v1665
      %v1711 = vadd.f32 %v1517, %v1668
      %v1712 = vadd.f32 %v1518, %v1670
      %v1713 = vadd.f32 %v1519, %v1673
      %v1714 = vadd.f32 %v1520, %v1675
      %v1715 = vadd.f32 %v1521, %v1678
      %v1716 = vadd.f32 %v1522, %v1680
      %v1717 = vadd.f32 %v1523, %v1683
      %v1718 = vadd.f32 %v1524, %v1685
      %v1719 = vpack.c.bf16 %v324, %v323
      %s1720 = scalar_lea.vmem %s1, 384
      %v1721 = vld [vmem:[%s1720] sm:$0xf]
      %v1722 = vld [vmem:[%s1720 + $0x4] sm:$0xf]
      %v1723 = vld [vmem:[%s1720 + $0x8] sm:$0xf]
      %v1724 = vld [vmem:[%s1720 + $0xc] sm:$0xf]
      %v1725 = vld [vmem:[%s1720 + $0x10] sm:$0xf]
      %v1726 = vld [vmem:[%s1720 + $0x14] sm:$0xf]
      %v1727 = vld [vmem:[%s1720 + $0x18] sm:$0xf]
      %v1728 = vld [vmem:[%s1720 + $0x1c] sm:$0xf]
      %v1729 = vld [vmem:[%s1720 + $0x20] sm:$0xf]
      %v1730 = vld [vmem:[%s1720 + $0x24] sm:$0xf]
      %v1731 = vld [vmem:[%s1720 + $0x28] sm:$0xf]
      %v1732 = vld [vmem:[%s1720 + $0x2c] sm:$0xf]
      %v1733 = vld [vmem:[%s1720 + $0x30] sm:$0xf]
      %v1734 = vld [vmem:[%s1720 + $0x34] sm:$0xf]
      %v1735 = vld [vmem:[%s1720 + $0x38] sm:$0xf]
      %v1736 = vld [vmem:[%s1720 + $0x3c] sm:$0xf]
      %v1753 = vunpack.c.l.b16 %v1721
      %v1754 = vunpack.c.l.b16 %v1722
      %v1755 = vunpack.c.l.b16 %v1723
      %v1756 = vunpack.c.l.b16 %v1724
      %v1757 = vunpack.c.l.b16 %v1725
      %v1758 = vunpack.c.l.b16 %v1726
      %v1759 = vunpack.c.l.b16 %v1727
      %v1760 = vunpack.c.l.b16 %v1728
      %v1761 = vunpack.c.l.b16 %v1729
      %v1762 = vunpack.c.l.b16 %v1730
      %v1763 = vunpack.c.l.b16 %v1731
      %v1764 = vunpack.c.l.b16 %v1732
      %v1765 = vunpack.c.l.b16 %v1733
      %v1766 = vunpack.c.l.b16 %v1734
      %v1767 = vunpack.c.l.b16 %v1735
      %v1768 = vunpack.c.l.b16 %v1736
      %v1769 = vpack.c.b16 %v1754, %v1753
      %v1770 = vpack.c.b16 %v1756, %v1755
      %v1771 = vpack.c.b16 %v1758, %v1757
      %v1772 = vpack.c.b16 %v1760, %v1759
      %v1773 = vpack.c.b16 %v1762, %v1761
      %v1774 = vpack.c.b16 %v1764, %v1763
      %v1775 = vpack.c.b16 %v1766, %v1765
      %v1776 = vpack.c.b16 %v1768, %v1767
      %1785 = vmatpush.bf16.msra.mxu0 %v1776
      %1786 = vmatpush.bf16.msra.mxu0 %v1775
      %1787 = vmatpush.bf16.msra.mxu0 %v1774
      %1788 = vmatpush.bf16.msra.mxu0 %v1773
      %1789 = vmatpush.bf16.msra.mxu0 %v1772
      %1790 = vmatpush.bf16.msra.mxu0 %v1771
      %1791 = vmatpush.bf16.msra.mxu0 %v1770
      %1792 = vmatpush.bf16.msra.mxu0 %v1769
      %1793 = vmatmul.bf16.gmra.mxu0 %v328
      %v1794 = vpop.f32.mrf.mxu0
      %v1795 = vadd.f32 0.0, %v1794
      %v1796 = vpop.f32.mrf.mxu0
      %v1797 = vadd.f32 0.0, %v1796
      %1798 = vmatmul.bf16.gmra.mxu0 %v329
      %v1799 = vpop.f32.mrf.mxu0
      %v1800 = vadd.f32 0.0, %v1799
      %v1801 = vpop.f32.mrf.mxu0
      %v1802 = vadd.f32 0.0, %v1801
      %1803 = vmatmul.bf16.gmra.mxu0 %v330
      %v1804 = vpop.f32.mrf.mxu0
      %v1805 = vadd.f32 0.0, %v1804
      %v1806 = vpop.f32.mrf.mxu0
      %v1807 = vadd.f32 0.0, %v1806
      %1808 = vmatmul.bf16.gmra.mxu0 %v331
      %v1809 = vpop.f32.mrf.mxu0
      %v1810 = vadd.f32 0.0, %v1809
      %v1811 = vpop.f32.mrf.mxu0
      %v1812 = vadd.f32 0.0, %v1811
      %1813 = vmatmul.bf16.gmra.mxu0 %v332
      %v1814 = vpop.f32.mrf.mxu0
      %v1815 = vadd.f32 0.0, %v1814
      %v1816 = vpop.f32.mrf.mxu0
      %v1817 = vadd.f32 0.0, %v1816
      %1818 = vmatmul.bf16.gmra.mxu0 %v333
      %v1819 = vpop.f32.mrf.mxu0
      %v1820 = vadd.f32 0.0, %v1819
      %v1821 = vpop.f32.mrf.mxu0
      %v1822 = vadd.f32 0.0, %v1821
      %1823 = vmatmul.bf16.gmra.mxu0 %v334
      %v1824 = vpop.f32.mrf.mxu0
      %v1825 = vadd.f32 0.0, %v1824
      %v1826 = vpop.f32.mrf.mxu0
      %v1827 = vadd.f32 0.0, %v1826
      %1828 = vmatmul.bf16.gmra.mxu0 %v335
      %v1829 = vpop.f32.mrf.mxu0
      %v1830 = vadd.f32 0.0, %v1829
      %v1831 = vpop.f32.mrf.mxu0
      %v1832 = vadd.f32 0.0, %v1831
      %1833 = vmatmul.bf16.gmra.mxu0 %v336
      %v1834 = vpop.f32.mrf.mxu0
      %v1835 = vadd.f32 0.0, %v1834
      %v1836 = vpop.f32.mrf.mxu0
      %v1837 = vadd.f32 0.0, %v1836
      %1838 = vmatmul.bf16.gmra.mxu0 %v337
      %v1839 = vpop.f32.mrf.mxu0
      %v1840 = vadd.f32 0.0, %v1839
      %v1841 = vpop.f32.mrf.mxu0
      %v1842 = vadd.f32 0.0, %v1841
      %1843 = vmatmul.bf16.gmra.mxu0 %v338
      %v1844 = vpop.f32.mrf.mxu0
      %v1845 = vadd.f32 0.0, %v1844
      %v1846 = vpop.f32.mrf.mxu0
      %v1847 = vadd.f32 0.0, %v1846
      %1848 = vmatmul.bf16.gmra.mxu0 %v339
      %v1849 = vpop.f32.mrf.mxu0
      %v1850 = vadd.f32 0.0, %v1849
      %v1851 = vpop.f32.mrf.mxu0
      %v1852 = vadd.f32 0.0, %v1851
      %1853 = vmatmul.bf16.gmra.mxu0 %v340
      %v1854 = vpop.f32.mrf.mxu0
      %v1855 = vadd.f32 0.0, %v1854
      %v1856 = vpop.f32.mrf.mxu0
      %v1857 = vadd.f32 0.0, %v1856
      %1858 = vmatmul.bf16.gmra.mxu0 %v341
      %v1859 = vpop.f32.mrf.mxu0
      %v1860 = vadd.f32 0.0, %v1859
      %v1861 = vpop.f32.mrf.mxu0
      %v1862 = vadd.f32 0.0, %v1861
      %1863 = vmatmul.bf16.gmra.mxu0 %v1141
      %v1864 = vpop.f32.mrf.mxu0
      %v1865 = vadd.f32 0.0, %v1864
      %v1866 = vpop.f32.mrf.mxu0
      %v1867 = vadd.f32 0.0, %v1866
      %1868 = vmatmul.bf16.gmra.mxu0 %v1719
      %v1869 = vpop.f32.mrf.mxu0
      %v1870 = vadd.f32 0.0, %v1869
      %v1871 = vpop.f32.mrf.mxu0
      %v1872 = vadd.f32 0.0, %v1871
      %1873 = vdwg.mxu0
      %v1874 = vadd.f32 %v1687, %v1795
      %v1875 = vadd.f32 %v1688, %v1797
      %v1876 = vadd.f32 %v1689, %v1800
      %v1877 = vadd.f32 %v1690, %v1802
      %v1878 = vadd.f32 %v1691, %v1805
      %v1879 = vadd.f32 %v1692, %v1807
      %v1880 = vadd.f32 %v1693, %v1810
      %v1881 = vadd.f32 %v1694, %v1812
      %v1882 = vadd.f32 %v1695, %v1815
      %v1883 = vadd.f32 %v1696, %v1817
      %v1884 = vadd.f32 %v1697, %v1820
      %v1885 = vadd.f32 %v1698, %v1822
      %v1886 = vadd.f32 %v1699, %v1825
      %v1887 = vadd.f32 %v1700, %v1827
      %v1888 = vadd.f32 %v1701, %v1830
      %v1889 = vadd.f32 %v1702, %v1832
      %v1890 = vadd.f32 %v1703, %v1835
      %v1891 = vadd.f32 %v1704, %v1837
      %v1892 = vadd.f32 %v1705, %v1840
      %v1893 = vadd.f32 %v1706, %v1842
      %v1894 = vadd.f32 %v1707, %v1845
      %v1895 = vadd.f32 %v1708, %v1847
      %v1896 = vadd.f32 %v1709, %v1850
      %v1897 = vadd.f32 %v1710, %v1852
      %v1898 = vadd.f32 %v1711, %v1855
      %v1899 = vadd.f32 %v1712, %v1857
      %v1900 = vadd.f32 %v1713, %v1860
      %v1901 = vadd.f32 %v1714, %v1862
      %v1902 = vadd.f32 %v1715, %v1865
      %v1903 = vadd.f32 %v1716, %v1867
      %v1904 = vadd.f32 %v1717, %v1870
      %v1905 = vadd.f32 %v1718, %v1872
      %v1909 = vrot.slane %v323, 1
      %v1910 = vrot.slane %v324, 1
      %v1911 = vsel %vm406, %v1909, %v1910
      %v1912 = vrot.slane %v325, 1
      %v1913 = vsel %vm406, %v1910, %v1912
      %v1916 = vpack.c.bf16 %v1913, %v1911
      %s1917 = scalar_lea.vmem %s1, 448
      %v1918 = vld [vmem:[%s1917] sm:$0xf]
      %v1919 = vld [vmem:[%s1917 + $0x4] sm:$0xf]
      %v1920 = vld [vmem:[%s1917 + $0x8] sm:$0xf]
      %v1921 = vld [vmem:[%s1917 + $0xc] sm:$0xf]
      %v1922 = vld [vmem:[%s1917 + $0x10] sm:$0xf]
      %v1923 = vld [vmem:[%s1917 + $0x14] sm:$0xf]
      %v1924 = vld [vmem:[%s1917 + $0x18] sm:$0xf]
      %v1925 = vld [vmem:[%s1917 + $0x1c] sm:$0xf]
      %v1926 = vld [vmem:[%s1917 + $0x20] sm:$0xf]
      %v1927 = vld [vmem:[%s1917 + $0x24] sm:$0xf]
      %v1928 = vld [vmem:[%s1917 + $0x28] sm:$0xf]
      %v1929 = vld [vmem:[%s1917 + $0x2c] sm:$0xf]
      %v1930 = vld [vmem:[%s1917 + $0x30] sm:$0xf]
      %v1931 = vld [vmem:[%s1917 + $0x34] sm:$0xf]
      %v1932 = vld [vmem:[%s1917 + $0x38] sm:$0xf]
      %v1933 = vld [vmem:[%s1917 + $0x3c] sm:$0xf]
      %v1950 = vunpack.c.l.b16 %v1918
      %v1951 = vunpack.c.l.b16 %v1919
      %v1952 = vunpack.c.l.b16 %v1920
      %v1953 = vunpack.c.l.b16 %v1921
      %v1954 = vunpack.c.l.b16 %v1922
      %v1955 = vunpack.c.l.b16 %v1923
      %v1956 = vunpack.c.l.b16 %v1924
      %v1957 = vunpack.c.l.b16 %v1925
      %v1958 = vunpack.c.l.b16 %v1926
      %v1959 = vunpack.c.l.b16 %v1927
      %v1960 = vunpack.c.l.b16 %v1928
      %v1961 = vunpack.c.l.b16 %v1929
      %v1962 = vunpack.c.l.b16 %v1930
      %v1963 = vunpack.c.l.b16 %v1931
      %v1964 = vunpack.c.l.b16 %v1932
      %v1965 = vunpack.c.l.b16 %v1933
      %v1966 = vpack.c.b16 %v1951, %v1950
      %v1967 = vpack.c.b16 %v1953, %v1952
      %v1968 = vpack.c.b16 %v1955, %v1954
      %v1969 = vpack.c.b16 %v1957, %v1956
      %v1970 = vpack.c.b16 %v1959, %v1958
      %v1971 = vpack.c.b16 %v1961, %v1960
      %v1972 = vpack.c.b16 %v1963, %v1962
      %v1973 = vpack.c.b16 %v1965, %v1964
      %1982 = vmatpush.bf16.msra.mxu0 %v1973
      %1983 = vmatpush.bf16.msra.mxu0 %v1972
      %1984 = vmatpush.bf16.msra.mxu0 %v1971
      %1985 = vmatpush.bf16.msra.mxu0 %v1970
      %1986 = vmatpush.bf16.msra.mxu0 %v1969
      %1987 = vmatpush.bf16.msra.mxu0 %v1968
      %1988 = vmatpush.bf16.msra.mxu0 %v1967
      %1989 = vmatpush.bf16.msra.mxu0 %v1966
      %1990 = vmatmul.bf16.gmra.mxu0 %v521
      %v1991 = vpop.f32.mrf.mxu0
      %v1992 = vadd.f32 0.0, %v1991
      %v1993 = vpop.f32.mrf.mxu0
      %v1994 = vadd.f32 0.0, %v1993
      %1995 = vmatmul.bf16.gmra.mxu0 %v522
      %v1996 = vpop.f32.mrf.mxu0
      %v1997 = vadd.f32 0.0, %v1996
      %v1998 = vpop.f32.mrf.mxu0
      %v1999 = vadd.f32 0.0, %v1998
      %2000 = vmatmul.bf16.gmra.mxu0 %v523
      %v2001 = vpop.f32.mrf.mxu0
      %v2002 = vadd.f32 0.0, %v2001
      %v2003 = vpop.f32.mrf.mxu0
      %v2004 = vadd.f32 0.0, %v2003
      %2005 = vmatmul.bf16.gmra.mxu0 %v524
      %v2006 = vpop.f32.mrf.mxu0
      %v2007 = vadd.f32 0.0, %v2006
      %v2008 = vpop.f32.mrf.mxu0
      %v2009 = vadd.f32 0.0, %v2008
      %2010 = vmatmul.bf16.gmra.mxu0 %v525
      %v2011 = vpop.f32.mrf.mxu0
      %v2012 = vadd.f32 0.0, %v2011
      %v2013 = vpop.f32.mrf.mxu0
      %v2014 = vadd.f32 0.0, %v2013
      %2015 = vmatmul.bf16.gmra.mxu0 %v526
      %v2016 = vpop.f32.mrf.mxu0
      %v2017 = vadd.f32 0.0, %v2016
      %v2018 = vpop.f32.mrf.mxu0
      %v2019 = vadd.f32 0.0, %v2018
      %2020 = vmatmul.bf16.gmra.mxu0 %v527
      %v2021 = vpop.f32.mrf.mxu0
      %v2022 = vadd.f32 0.0, %v2021
      %v2023 = vpop.f32.mrf.mxu0
      %v2024 = vadd.f32 0.0, %v2023
      %2025 = vmatmul.bf16.gmra.mxu0 %v528
      %v2026 = vpop.f32.mrf.mxu0
      %v2027 = vadd.f32 0.0, %v2026
      %v2028 = vpop.f32.mrf.mxu0
      %v2029 = vadd.f32 0.0, %v2028
      %2030 = vmatmul.bf16.gmra.mxu0 %v529
      %v2031 = vpop.f32.mrf.mxu0
      %v2032 = vadd.f32 0.0, %v2031
      %v2033 = vpop.f32.mrf.mxu0
      %v2034 = vadd.f32 0.0, %v2033
      %2035 = vmatmul.bf16.gmra.mxu0 %v530
      %v2036 = vpop.f32.mrf.mxu0
      %v2037 = vadd.f32 0.0, %v2036
      %v2038 = vpop.f32.mrf.mxu0
      %v2039 = vadd.f32 0.0, %v2038
      %2040 = vmatmul.bf16.gmra.mxu0 %v531
      %v2041 = vpop.f32.mrf.mxu0
      %v2042 = vadd.f32 0.0, %v2041
      %v2043 = vpop.f32.mrf.mxu0
      %v2044 = vadd.f32 0.0, %v2043
      %2045 = vmatmul.bf16.gmra.mxu0 %v532
      %v2046 = vpop.f32.mrf.mxu0
      %v2047 = vadd.f32 0.0, %v2046
      %v2048 = vpop.f32.mrf.mxu0
      %v2049 = vadd.f32 0.0, %v2048
      %2050 = vmatmul.bf16.gmra.mxu0 %v533
      %v2051 = vpop.f32.mrf.mxu0
      %v2052 = vadd.f32 0.0, %v2051
      %v2053 = vpop.f32.mrf.mxu0
      %v2054 = vadd.f32 0.0, %v2053
      %2055 = vmatmul.bf16.gmra.mxu0 %v534
      %v2056 = vpop.f32.mrf.mxu0
      %v2057 = vadd.f32 0.0, %v2056
      %v2058 = vpop.f32.mrf.mxu0
      %v2059 = vadd.f32 0.0, %v2058
      %2060 = vmatmul.bf16.gmra.mxu0 %v1338
      %v2061 = vpop.f32.mrf.mxu0
      %v2062 = vadd.f32 0.0, %v2061
      %v2063 = vpop.f32.mrf.mxu0
      %v2064 = vadd.f32 0.0, %v2063
      %2065 = vmatmul.bf16.gmra.mxu0 %v1916
      %v2066 = vpop.f32.mrf.mxu0
      %v2067 = vadd.f32 0.0, %v2066
      %v2068 = vpop.f32.mrf.mxu0
      %v2069 = vadd.f32 0.0, %v2068
      %2070 = vdwg.mxu0
      %v2071 = vadd.f32 %v1874, %v1992
      %v2072 = vadd.f32 %v1875, %v1994
      %v2073 = vadd.f32 %v1876, %v1997
      %v2074 = vadd.f32 %v1877, %v1999
      %v2075 = vadd.f32 %v1878, %v2002
      %v2076 = vadd.f32 %v1879, %v2004
      %v2077 = vadd.f32 %v1880, %v2007
      %v2078 = vadd.f32 %v1881, %v2009
      %v2079 = vadd.f32 %v1882, %v2012
      %v2080 = vadd.f32 %v1883, %v2014
      %v2081 = vadd.f32 %v1884, %v2017
      %v2082 = vadd.f32 %v1885, %v2019
      %v2083 = vadd.f32 %v1886, %v2022
      %v2084 = vadd.f32 %v1887, %v2024
      %v2085 = vadd.f32 %v1888, %v2027
      %v2086 = vadd.f32 %v1889, %v2029
      %v2087 = vadd.f32 %v1890, %v2032
      %v2088 = vadd.f32 %v1891, %v2034
      %v2089 = vadd.f32 %v1892, %v2037
      %v2090 = vadd.f32 %v1893, %v2039
      %v2091 = vadd.f32 %v1894, %v2042
      %v2092 = vadd.f32 %v1895, %v2044
      %v2093 = vadd.f32 %v1896, %v2047
      %v2094 = vadd.f32 %v1897, %v2049
      %v2095 = vadd.f32 %v1898, %v2052
      %v2096 = vadd.f32 %v1899, %v2054
      %v2097 = vadd.f32 %v1900, %v2057
      %v2098 = vadd.f32 %v1901, %v2059
      %v2099 = vadd.f32 %v1902, %v2062
      %v2100 = vadd.f32 %v1903, %v2064
      %v2101 = vadd.f32 %v1904, %v2067
      %v2102 = vadd.f32 %v1905, %v2069
      %v2103 = vrot.slane %v323, 2
      %v2104 = vrot.slane %v324, 2
      %v2105 = vsel %vm826, %v2103, %v2104
      %v2106 = vrot.slane %v325, 2
      %v2107 = vsel %vm826, %v2104, %v2106
      %v2110 = vpack.c.bf16 %v2107, %v2105
      %s2111 = scalar_lea.vmem %s1, 512
      %v2112 = vld [vmem:[%s2111] sm:$0xf]
      %v2113 = vld [vmem:[%s2111 + $0x4] sm:$0xf]
      %v2114 = vld [vmem:[%s2111 + $0x8] sm:$0xf]
      %v2115 = vld [vmem:[%s2111 + $0xc] sm:$0xf]
      %v2116 = vld [vmem:[%s2111 + $0x10] sm:$0xf]
      %v2117 = vld [vmem:[%s2111 + $0x14] sm:$0xf]
      %v2118 = vld [vmem:[%s2111 + $0x18] sm:$0xf]
      %v2119 = vld [vmem:[%s2111 + $0x1c] sm:$0xf]
      %v2120 = vld [vmem:[%s2111 + $0x20] sm:$0xf]
      %v2121 = vld [vmem:[%s2111 + $0x24] sm:$0xf]
      %v2122 = vld [vmem:[%s2111 + $0x28] sm:$0xf]
      %v2123 = vld [vmem:[%s2111 + $0x2c] sm:$0xf]
      %v2124 = vld [vmem:[%s2111 + $0x30] sm:$0xf]
      %v2125 = vld [vmem:[%s2111 + $0x34] sm:$0xf]
      %v2126 = vld [vmem:[%s2111 + $0x38] sm:$0xf]
      %v2127 = vld [vmem:[%s2111 + $0x3c] sm:$0xf]
      %v2144 = vunpack.c.l.b16 %v2112
      %v2145 = vunpack.c.l.b16 %v2113
      %v2146 = vunpack.c.l.b16 %v2114
      %v2147 = vunpack.c.l.b16 %v2115
      %v2148 = vunpack.c.l.b16 %v2116
      %v2149 = vunpack.c.l.b16 %v2117
      %v2150 = vunpack.c.l.b16 %v2118
      %v2151 = vunpack.c.l.b16 %v2119
      %v2152 = vunpack.c.l.b16 %v2120
      %v2153 = vunpack.c.l.b16 %v2121
      %v2154 = vunpack.c.l.b16 %v2122
      %v2155 = vunpack.c.l.b16 %v2123
      %v2156 = vunpack.c.l.b16 %v2124
      %v2157 = vunpack.c.l.b16 %v2125
      %v2158 = vunpack.c.l.b16 %v2126
      %v2159 = vunpack.c.l.b16 %v2127
      %v2160 = vpack.c.b16 %v2145, %v2144
      %v2161 = vpack.c.b16 %v2147, %v2146
      %v2162 = vpack.c.b16 %v2149, %v2148
      %v2163 = vpack.c.b16 %v2151, %v2150
      %v2164 = vpack.c.b16 %v2153, %v2152
      %v2165 = vpack.c.b16 %v2155, %v2154
      %v2166 = vpack.c.b16 %v2157, %v2156
      %v2167 = vpack.c.b16 %v2159, %v2158
      %2176 = vmatpush.bf16.msra.mxu0 %v2167
      %2177 = vmatpush.bf16.msra.mxu0 %v2166
      %2178 = vmatpush.bf16.msra.mxu0 %v2165
      %2179 = vmatpush.bf16.msra.mxu0 %v2164
      %2180 = vmatpush.bf16.msra.mxu0 %v2163
      %2181 = vmatpush.bf16.msra.mxu0 %v2162
      %2182 = vmatpush.bf16.msra.mxu0 %v2161
      %2183 = vmatpush.bf16.msra.mxu0 %v2160
      %2184 = vmatmul.bf16.gmra.mxu0 %v941
      %v2185 = vpop.f32.mrf.mxu0
      %v2186 = vadd.f32 0.0, %v2185
      %v2187 = vpop.f32.mrf.mxu0
      %v2188 = vadd.f32 0.0, %v2187
      %2189 = vmatmul.bf16.gmra.mxu0 %v942
      %v2190 = vpop.f32.mrf.mxu0
      %v2191 = vadd.f32 0.0, %v2190
      %v2192 = vpop.f32.mrf.mxu0
      %v2193 = vadd.f32 0.0, %v2192
      %2194 = vmatmul.bf16.gmra.mxu0 %v943
      %v2195 = vpop.f32.mrf.mxu0
      %v2196 = vadd.f32 0.0, %v2195
      %v2197 = vpop.f32.mrf.mxu0
      %v2198 = vadd.f32 0.0, %v2197
      %2199 = vmatmul.bf16.gmra.mxu0 %v944
      %v2200 = vpop.f32.mrf.mxu0
      %v2201 = vadd.f32 0.0, %v2200
      %v2202 = vpop.f32.mrf.mxu0
      %v2203 = vadd.f32 0.0, %v2202
      %2204 = vmatmul.bf16.gmra.mxu0 %v945
      %v2205 = vpop.f32.mrf.mxu0
      %v2206 = vadd.f32 0.0, %v2205
      %v2207 = vpop.f32.mrf.mxu0
      %v2208 = vadd.f32 0.0, %v2207
      %2209 = vmatmul.bf16.gmra.mxu0 %v946
      %v2210 = vpop.f32.mrf.mxu0
      %v2211 = vadd.f32 0.0, %v2210
      %v2212 = vpop.f32.mrf.mxu0
      %v2213 = vadd.f32 0.0, %v2212
      %2214 = vmatmul.bf16.gmra.mxu0 %v947
      %v2215 = vpop.f32.mrf.mxu0
      %v2216 = vadd.f32 0.0, %v2215
      %v2217 = vpop.f32.mrf.mxu0
      %v2218 = vadd.f32 0.0, %v2217
      %2219 = vmatmul.bf16.gmra.mxu0 %v948
      %v2220 = vpop.f32.mrf.mxu0
      %v2221 = vadd.f32 0.0, %v2220
      %v2222 = vpop.f32.mrf.mxu0
      %v2223 = vadd.f32 0.0, %v2222
      %2224 = vmatmul.bf16.gmra.mxu0 %v949
      %v2225 = vpop.f32.mrf.mxu0
      %v2226 = vadd.f32 0.0, %v2225
      %v2227 = vpop.f32.mrf.mxu0
      %v2228 = vadd.f32 0.0, %v2227
      %2229 = vmatmul.bf16.gmra.mxu0 %v950
      %v2230 = vpop.f32.mrf.mxu0
      %v2231 = vadd.f32 0.0, %v2230
      %v2232 = vpop.f32.mrf.mxu0
      %v2233 = vadd.f32 0.0, %v2232
      %2234 = vmatmul.bf16.gmra.mxu0 %v951
      %v2235 = vpop.f32.mrf.mxu0
      %v2236 = vadd.f32 0.0, %v2235
      %v2237 = vpop.f32.mrf.mxu0
      %v2238 = vadd.f32 0.0, %v2237
      %2239 = vmatmul.bf16.gmra.mxu0 %v952
      %v2240 = vpop.f32.mrf.mxu0
      %v2241 = vadd.f32 0.0, %v2240
      %v2242 = vpop.f32.mrf.mxu0
      %v2243 = vadd.f32 0.0, %v2242
      %2244 = vmatmul.bf16.gmra.mxu0 %v953
      %v2245 = vpop.f32.mrf.mxu0
      %v2246 = vadd.f32 0.0, %v2245
      %v2247 = vpop.f32.mrf.mxu0
      %v2248 = vadd.f32 0.0, %v2247
      %2249 = vmatmul.bf16.gmra.mxu0 %v954
      %v2250 = vpop.f32.mrf.mxu0
      %v2251 = vadd.f32 0.0, %v2250
      %v2252 = vpop.f32.mrf.mxu0
      %v2253 = vadd.f32 0.0, %v2252
      %2254 = vmatmul.bf16.gmra.mxu0 %v1532
      %v2255 = vpop.f32.mrf.mxu0
      %v2256 = vadd.f32 0.0, %v2255
      %v2257 = vpop.f32.mrf.mxu0
      %v2258 = vadd.f32 0.0, %v2257
      %2259 = vmatmul.bf16.gmra.mxu0 %v2110
      %v2260 = vpop.f32.mrf.mxu0
      %v2261 = vadd.f32 0.0, %v2260
      %v2262 = vpop.f32.mrf.mxu0
      %v2263 = vadd.f32 0.0, %v2262
      %2264 = vdwg.mxu0
      %v2265 = vadd.f32 %v2071, %v2186
      %v2266 = vadd.f32 %v2072, %v2188
      %v2267 = vadd.f32 %v2073, %v2191
      %v2268 = vadd.f32 %v2074, %v2193
      %v2269 = vadd.f32 %v2075, %v2196
      %v2270 = vadd.f32 %v2076, %v2198
      %v2271 = vadd.f32 %v2077, %v2201
      %v2272 = vadd.f32 %v2078, %v2203
      %v2273 = vadd.f32 %v2079, %v2206
      %v2274 = vadd.f32 %v2080, %v2208
      %v2275 = vadd.f32 %v2081, %v2211
      %v2276 = vadd.f32 %v2082, %v2213
      %v2277 = vadd.f32 %v2083, %v2216
      %v2278 = vadd.f32 %v2084, %v2218
      %v2279 = vadd.f32 %v2085, %v2221
      %v2280 = vadd.f32 %v2086, %v2223
      %v2281 = vadd.f32 %v2087, %v2226
      %v2282 = vadd.f32 %v2088, %v2228
      %v2283 = vadd.f32 %v2089, %v2231
      %v2284 = vadd.f32 %v2090, %v2233
      %v2285 = vadd.f32 %v2091, %v2236
      %v2286 = vadd.f32 %v2092, %v2238
      %v2287 = vadd.f32 %v2093, %v2241
      %v2288 = vadd.f32 %v2094, %v2243
      %v2289 = vadd.f32 %v2095, %v2246
      %v2290 = vadd.f32 %v2096, %v2248
      %v2291 = vadd.f32 %v2097, %v2251
      %v2292 = vadd.f32 %v2098, %v2253
      %v2293 = vadd.f32 %v2099, %v2256
      %v2294 = vadd.f32 %v2100, %v2258
      %v2295 = vadd.f32 %v2101, %v2261
      %v2296 = vadd.f32 %v2102, %v2263
      %v2297 = vadd.f32 %v2265, %v2266
      %v2298 = vadd.f32 %v2297, %v2267
      %v2299 = vadd.f32 %v2298, %v2268
      %v2300 = vadd.f32 %v2299, %v2269
      %v2301 = vadd.f32 %v2300, %v2270
      %v2302 = vadd.f32 %v2301, %v2271
      %v2303 = vadd.f32 %v2302, %v2272
      %v2304 = vadd.f32 %v2303, %v2273
      %v2305 = vadd.f32 %v2304, %v2274
      %v2306 = vadd.f32 %v2305, %v2275
      %v2307 = vadd.f32 %v2306, %v2276
      %v2308 = vadd.f32 %v2307, %v2277
      %v2309 = vadd.f32 %v2308, %v2278
      %v2310 = vadd.f32 %v2309, %v2279
      %v2311 = vadd.f32 %v2310, %v2280
      %v2312 = vadd.f32 %v2311, %v2281
      %v2313 = vadd.f32 %v2312, %v2282
      %v2314 = vadd.f32 %v2313, %v2283
      %v2315 = vadd.f32 %v2314, %v2284
      %v2316 = vadd.f32 %v2315, %v2285
      %v2317 = vadd.f32 %v2316, %v2286
      %v2318 = vadd.f32 %v2317, %v2287
      %v2319 = vadd.f32 %v2318, %v2288
      %v2320 = vadd.f32 %v2319, %v2289
      %v2321 = vadd.f32 %v2320, %v2290
      %v2322 = vadd.f32 %v2321, %v2291
      %v2323 = vadd.f32 %v2322, %v2292
      %v2324 = vadd.f32 %v2323, %v2293
      %v2325 = vadd.f32 %v2324, %v2294
      %v2326 = vadd.f32 %v2325, %v2295
      %v2327 = vadd.f32 %v2326, %v2296
      %v2328 = vrot.slane %v2327, 4
      %v2329 = vadd.f32 %v2327, %v2328
      %v2330 = vrot.slane %v2329, 2
      %v2331 = vadd.f32 %v2329, %v2330
      %v2332 = vrot.slane %v2331, 1
      %v2333 = vadd.f32 %v2331, %v2332
      %v2334 = vrcp.pop 256.0
      %v2335 = vmul.f32 256.0, %v2334
      %v2336 = vsub.f32 1.0, %v2335
      %v2337 = vmul.f32 %v2334, %v2336
      %v2338 = vadd.f32 %v2334, %v2337
      %vm2339 = vweird.f32 %v2334
      %v2340 = vsel %vm2339, %v2334, %v2338
      %v2341 = vmul.f32 %v2333, %v2340
      %v2342 = vsub.f32 %v2265, %v2341
      %v2343 = vsub.f32 %v2266, %v2341
      %v2344 = vsub.f32 %v2267, %v2341
      %v2345 = vsub.f32 %v2268, %v2341
      %v2346 = vsub.f32 %v2269, %v2341
      %v2347 = vsub.f32 %v2270, %v2341
      %v2348 = vsub.f32 %v2271, %v2341
      %v2349 = vsub.f32 %v2272, %v2341
      %v2350 = vsub.f32 %v2273, %v2341
      %v2351 = vsub.f32 %v2274, %v2341
      %v2352 = vsub.f32 %v2275, %v2341
      %v2353 = vsub.f32 %v2276, %v2341
      %v2354 = vsub.f32 %v2277, %v2341
      %v2355 = vsub.f32 %v2278, %v2341
      %v2356 = vsub.f32 %v2279, %v2341
      %v2357 = vsub.f32 %v2280, %v2341
      %v2358 = vsub.f32 %v2281, %v2341
      %v2359 = vsub.f32 %v2282, %v2341
      %v2360 = vsub.f32 %v2283, %v2341
      %v2361 = vsub.f32 %v2284, %v2341
      %v2362 = vsub.f32 %v2285, %v2341
      %v2363 = vsub.f32 %v2286, %v2341
      %v2364 = vsub.f32 %v2287, %v2341
      %v2365 = vsub.f32 %v2288, %v2341
      %v2366 = vsub.f32 %v2289, %v2341
      %v2367 = vsub.f32 %v2290, %v2341
      %v2368 = vsub.f32 %v2291, %v2341
      %v2369 = vsub.f32 %v2292, %v2341
      %v2370 = vsub.f32 %v2293, %v2341
      %v2371 = vsub.f32 %v2294, %v2341
      %v2372 = vsub.f32 %v2295, %v2341
      %v2373 = vsub.f32 %v2296, %v2341
      %v2374 = vmul.f32 %v2342, %v2342
      %v2375 = vmul.f32 %v2343, %v2343
      %v2376 = vmul.f32 %v2344, %v2344
      %v2377 = vmul.f32 %v2345, %v2345
      %v2378 = vmul.f32 %v2346, %v2346
      %v2379 = vmul.f32 %v2347, %v2347
      %v2380 = vmul.f32 %v2348, %v2348
      %v2381 = vmul.f32 %v2349, %v2349
      %v2382 = vmul.f32 %v2350, %v2350
      %v2383 = vmul.f32 %v2351, %v2351
      %v2384 = vmul.f32 %v2352, %v2352
      %v2385 = vmul.f32 %v2353, %v2353
      %v2386 = vmul.f32 %v2354, %v2354
      %v2387 = vmul.f32 %v2355, %v2355
      %v2388 = vmul.f32 %v2356, %v2356
      %v2389 = vmul.f32 %v2357, %v2357
      %v2390 = vmul.f32 %v2358, %v2358
      %v2391 = vmul.f32 %v2359, %v2359
      %v2392 = vmul.f32 %v2360, %v2360
      %v2393 = vmul.f32 %v2361, %v2361
      %v2394 = vmul.f32 %v2362, %v2362
      %v2395 = vmul.f32 %v2363, %v2363
      %v2396 = vmul.f32 %v2364, %v2364
      %v2397 = vmul.f32 %v2365, %v2365
      %v2398 = vmul.f32 %v2366, %v2366
      %v2399 = vmul.f32 %v2367, %v2367
      %v2400 = vmul.f32 %v2368, %v2368
      %v2401 = vmul.f32 %v2369, %v2369
      %v2402 = vmul.f32 %v2370, %v2370
      %v2403 = vmul.f32 %v2371, %v2371
      %v2404 = vmul.f32 %v2372, %v2372
      %v2405 = vmul.f32 %v2373, %v2373
      %v2406 = vadd.f32 %v2374, %v2375
      %v2407 = vadd.f32 %v2406, %v2376
      %v2408 = vadd.f32 %v2407, %v2377
      %v2409 = vadd.f32 %v2408, %v2378
      %v2410 = vadd.f32 %v2409, %v2379
      %v2411 = vadd.f32 %v2410, %v2380
      %v2412 = vadd.f32 %v2411, %v2381
      %v2413 = vadd.f32 %v2412, %v2382
      %v2414 = vadd.f32 %v2413, %v2383
      %v2415 = vadd.f32 %v2414, %v2384
      %v2416 = vadd.f32 %v2415, %v2385
      %v2417 = vadd.f32 %v2416, %v2386
      %v2418 = vadd.f32 %v2417, %v2387
      %v2419 = vadd.f32 %v2418, %v2388
      %v2420 = vadd.f32 %v2419, %v2389
      %v2421 = vadd.f32 %v2420, %v2390
      %v2422 = vadd.f32 %v2421, %v2391
      %v2423 = vadd.f32 %v2422, %v2392
      %v2424 = vadd.f32 %v2423, %v2393
      %v2425 = vadd.f32 %v2424, %v2394
      %v2426 = vadd.f32 %v2425, %v2395
      %v2427 = vadd.f32 %v2426, %v2396
      %v2428 = vadd.f32 %v2427, %v2397
      %v2429 = vadd.f32 %v2428, %v2398
      %v2430 = vadd.f32 %v2429, %v2399
      %v2431 = vadd.f32 %v2430, %v2400
      %v2432 = vadd.f32 %v2431, %v2401
      %v2433 = vadd.f32 %v2432, %v2402
      %v2434 = vadd.f32 %v2433, %v2403
      %v2435 = vadd.f32 %v2434, %v2404
      %v2436 = vadd.f32 %v2435, %v2405
      %v2437 = vrot.slane %v2436, 4
      %v2438 = vadd.f32 %v2436, %v2437
      %v2439 = vrot.slane %v2438, 2
      %v2440 = vadd.f32 %v2438, %v2439
      %v2441 = vrot.slane %v2440, 1
      %v2442 = vadd.f32 %v2440, %v2441
      %v2443 = vmul.f32 %v2442, %v2340
      %v2444 = vadd.f32 %v2443, 1e-05
      %v2445 = vrsqrt.pop %v2444
      %v2446 = vmul.f32 %v2445, %v2444
      %v2447 = vmul.f32 %v2446, %v2445
      %v2448 = vmul.f32 0.5, %v2447
      %v2449 = vsub.f32 1.5, %v2448
      %v2450 = vmul.f32 %v2445, %v2449
      %vm2451 = vweird.f32 %v2444
      %vm2452 = vweird.f32 %v2445
      %vm2453 = vmor %vm2451, %vm2452
      %v2454 = vsel %vm2453, %v2445, %v2450
      %v2455 = vmul.f32 %v2342, %v2454
      %v2456 = vmul.f32 %v2343, %v2454
      %v2457 = vmul.f32 %v2344, %v2454
      %v2458 = vmul.f32 %v2345, %v2454
      %v2459 = vmul.f32 %v2346, %v2454
      %v2460 = vmul.f32 %v2347, %v2454
      %v2461 = vmul.f32 %v2348, %v2454
      %v2462 = vmul.f32 %v2349, %v2454
      %v2463 = vmul.f32 %v2350, %v2454
      %v2464 = vmul.f32 %v2351, %v2454
      %v2465 = vmul.f32 %v2352, %v2454
      %v2466 = vmul.f32 %v2353, %v2454
      %v2467 = vmul.f32 %v2354, %v2454
      %v2468 = vmul.f32 %v2355, %v2454
      %v2469 = vmul.f32 %v2356, %v2454
      %v2470 = vmul.f32 %v2357, %v2454
      %v2471 = vmul.f32 %v2358, %v2454
      %v2472 = vmul.f32 %v2359, %v2454
      %v2473 = vmul.f32 %v2360, %v2454
      %v2474 = vmul.f32 %v2361, %v2454
      %v2475 = vmul.f32 %v2362, %v2454
      %v2476 = vmul.f32 %v2363, %v2454
      %v2477 = vmul.f32 %v2364, %v2454
      %v2478 = vmul.f32 %v2365, %v2454
      %v2479 = vmul.f32 %v2366, %v2454
      %v2480 = vmul.f32 %v2367, %v2454
      %v2481 = vmul.f32 %v2368, %v2454
      %v2482 = vmul.f32 %v2369, %v2454
      %v2483 = vmul.f32 %v2370, %v2454
      %v2484 = vmul.f32 %v2371, %v2454
      %v2485 = vmul.f32 %v2372, %v2454
      %v2486 = vmul.f32 %v2373, %v2454
      %v2487 = vmax.f32 %v2455, 0.0
      %v2488 = vmax.f32 %v2456, 0.0
      %v2489 = vmax.f32 %v2457, 0.0
      %v2490 = vmax.f32 %v2458, 0.0
      %v2491 = vmax.f32 %v2459, 0.0
      %v2492 = vmax.f32 %v2460, 0.0
      %v2493 = vmax.f32 %v2461, 0.0
      %v2494 = vmax.f32 %v2462, 0.0
      %v2495 = vmax.f32 %v2463, 0.0
      %v2496 = vmax.f32 %v2464, 0.0
      %v2497 = vmax.f32 %v2465, 0.0
      %v2498 = vmax.f32 %v2466, 0.0
      %v2499 = vmax.f32 %v2467, 0.0
      %v2500 = vmax.f32 %v2468, 0.0
      %v2501 = vmax.f32 %v2469, 0.0
      %v2502 = vmax.f32 %v2470, 0.0
      %v2503 = vmax.f32 %v2471, 0.0
      %v2504 = vmax.f32 %v2472, 0.0
      %v2505 = vmax.f32 %v2473, 0.0
      %v2506 = vmax.f32 %v2474, 0.0
      %v2507 = vmax.f32 %v2475, 0.0
      %v2508 = vmax.f32 %v2476, 0.0
      %v2509 = vmax.f32 %v2477, 0.0
      %v2510 = vmax.f32 %v2478, 0.0
      %v2511 = vmax.f32 %v2479, 0.0
      %v2512 = vmax.f32 %v2480, 0.0
      %v2513 = vmax.f32 %v2481, 0.0
      %v2514 = vmax.f32 %v2482, 0.0
      %v2515 = vmax.f32 %v2483, 0.0
      %v2516 = vmax.f32 %v2484, 0.0
      %v2517 = vmax.f32 %v2485, 0.0
      %v2518 = vmax.f32 %v2486, 0.0
      %s2519 = scalar_lea.vmem [#allocation2], 24
      %2520 = vst [vmem:[%s2519 + $0x1] sm:$0xff] %v2487
      %2521 = vst [vmem:[%s2519 + $0x9] sm:$0xff] %v2488
      %2522 = vst [vmem:[%s2519 + $0x19] sm:$0xff] %v2489
      %2523 = vst [vmem:[%s2519 + $0x21] sm:$0xff] %v2490
      %2524 = vst [vmem:[%s2519 + $0x31] sm:$0xff] %v2491
      %2525 = vst [vmem:[%s2519 + $0x39] sm:$0xff] %v2492
      %2526 = vst [vmem:[%s2519 + $0x49] sm:$0xff] %v2493
      %2527 = vst [vmem:[%s2519 + $0x51] sm:$0xff] %v2494
      %2528 = vst [vmem:[%s2519 + $0x61] sm:$0xff] %v2495
      %2529 = vst [vmem:[%s2519 + $0x69] sm:$0xff] %v2496
      %2530 = vst [vmem:[%s2519 + $0x79] sm:$0xff] %v2497
      %2531 = vst [vmem:[%s2519 + $0x81] sm:$0xff] %v2498
      %2532 = vst [vmem:[%s2519 + $0x91] sm:$0xff] %v2499
      %2533 = vst [vmem:[%s2519 + $0x99] sm:$0xff] %v2500
      %2534 = vst [vmem:[%s2519 + $0xa9] sm:$0xff] %v2501
      %2535 = vst [vmem:[%s2519 + $0xb1] sm:$0xff] %v2502
      %2536 = vst [vmem:[%s2519 + $0xc1] sm:$0xff] %v2503
      %2537 = vst [vmem:[%s2519 + $0xc9] sm:$0xff] %v2504
      %2538 = vst [vmem:[%s2519 + $0xd9] sm:$0xff] %v2505
      %2539 = vst [vmem:[%s2519 + $0xe1] sm:$0xff] %v2506
      %2540 = vst [vmem:[%s2519 + $0xf1] sm:$0xff] %v2507
      %2541 = vst [vmem:[%s2519 + $0xf9] sm:$0xff] %v2508
      %2542 = vst [vmem:[%s2519 + $0x109] sm:$0xff] %v2509
      %2543 = vst [vmem:[%s2519 + $0x111] sm:$0xff] %v2510
      %2544 = vst [vmem:[%s2519 + $0x121] sm:$0xff] %v2511
      %2545 = vst [vmem:[%s2519 + $0x129] sm:$0xff] %v2512
      %2546 = vst [vmem:[%s2519 + $0x139] sm:$0xff] %v2513
      %2547 = vst [vmem:[%s2519 + $0x141] sm:$0xff] %v2514
      %2548 = vst [vmem:[%s2519 + $0x151] sm:$0xff] %v2515
      %2549 = vst [vmem:[%s2519 + $0x159] sm:$0xff] %v2516
      %2550 = vst [vmem:[%s2519 + $0x169] sm:$0xff] %v2517
      %2551 = vst [vmem:[%s2519 + $0x171] sm:$0xff] %v2518
      %2552 = vst [vmem:[#allocation2 + $0x1] sm:$0xff] %v2489
      %2553 = vst [vmem:[#allocation2 + $0x9] sm:$0xff] %v2490
      %s2554 = scalar_lea.vmem [#allocation2], 408
      %2555 = vst [vmem:[%s2554 + $0x1] sm:$0xff] %v2515
      %2556 = vst [vmem:[%s2554 + $0x9] sm:$0xff] %v2516
      %2557 = vst [vmem:[%s2519 - $0x1] sm:$0x2] %v2487
      %2558 = vst [vmem:[%s2519 + $0x17] sm:$0x2] %v2489
      %2559 = vst [vmem:[%s2519 + $0x2f] sm:$0x2] %v2491
      %2560 = vst [vmem:[%s2519 + $0x47] sm:$0x2] %v2493
      %2561 = vst [vmem:[%s2519 + $0x5f] sm:$0x2] %v2495
      %2562 = vst [vmem:[%s2519 + $0x77] sm:$0x2] %v2497
      %2563 = vst [vmem:[%s2519 + $0x8f] sm:$0x2] %v2499
      %2564 = vst [vmem:[%s2519 + $0xa7] sm:$0x2] %v2501
      %2565 = vst [vmem:[%s2519 + $0xbf] sm:$0x2] %v2503
      %2566 = vst [vmem:[%s2519 + $0xd7] sm:$0x2] %v2505
      %2567 = vst [vmem:[%s2519 + $0xef] sm:$0x2] %v2507
      %2568 = vst [vmem:[%s2519 + $0x107] sm:$0x2] %v2509
      %2569 = vst [vmem:[%s2519 + $0x11f] sm:$0x2] %v2511
      %2570 = vst [vmem:[%s2519 + $0x137] sm:$0x2] %v2513
      %2571 = vst [vmem:[%s2519 + $0x14f] sm:$0x2] %v2515
      %2572 = vst [vmem:[%s2519 + $0x167] sm:$0x2] %v2517
      %2573 = vst [vmem:[%s2519 + $0xb] sm:$0x40] %v2488
      %2574 = vst [vmem:[%s2519 + $0x23] sm:$0x40] %v2490
      %2575 = vst [vmem:[%s2519 + $0x3b] sm:$0x40] %v2492
      %2576 = vst [vmem:[%s2519 + $0x53] sm:$0x40] %v2494
      %2577 = vst [vmem:[%s2519 + $0x6b] sm:$0x40] %v2496
      %2578 = vst [vmem:[%s2519 + $0x83] sm:$0x40] %v2498
      %2579 = vst [vmem:[%s2519 + $0x9b] sm:$0x40] %v2500
      %2580 = vst [vmem:[%s2519 + $0xb3] sm:$0x40] %v2502
      %2581 = vst [vmem:[%s2519 + $0xcb] sm:$0x40] %v2504
      %2582 = vst [vmem:[%s2519 + $0xe3] sm:$0x40] %v2506
      %2583 = vst [vmem:[%s2519 + $0xfb] sm:$0x40] %v2508
      %2584 = vst [vmem:[%s2519 + $0x113] sm:$0x40] %v2510
      %2585 = vst [vmem:[%s2519 + $0x12b] sm:$0x40] %v2512
      %2586 = vst [vmem:[%s2519 + $0x143] sm:$0x40] %v2514
      %2587 = vst [vmem:[%s2519 + $0x15b] sm:$0x40] %v2516
      %2588 = vst [vmem:[%s2519 + $0x173] sm:$0x40] %v2518
      %2589 = vst [vmem:[#allocation2 - $0x1] sm:$0x2] %v2489
      %2590 = vst [vmem:[#allocation2 + $0xb] sm:$0x40] %v2490
      %2591 = vst [vmem:[%s2554 - $0x1] sm:$0x2] %v2515
      %2592 = vst [vmem:[%s2554 + $0xb] sm:$0x40] %v2516
      %v2593 = vld [vmem:[#allocation2] sm:$0xff]
      %v2594 = vld [vmem:[#allocation2 + $0x8] sm:$0xff]
      %v2595 = vld [vmem:[#allocation2 + $0x10] sm:$0x3]
      %v2596 = vld [vmem:[#allocation2 + $0x18] sm:$0xff]
      %v2597 = vld [vmem:[#allocation2 + $0x20] sm:$0xff]
      %v2598 = vld [vmem:[#allocation2 + $0x28] sm:$0x3]
      %v2599 = vld [vmem:[#allocation2 + $0x30] sm:$0xff]
      %v2600 = vld [vmem:[#allocation2 + $0x38] sm:$0xff]
      %v2601 = vld [vmem:[#allocation2 + $0x40] sm:$0x3]
      %v2602 = vld [vmem:[#allocation2 + $0x48] sm:$0xff]
      %v2603 = vld [vmem:[#allocation2 + $0x50] sm:$0xff]
      %v2604 = vld [vmem:[#allocation2 + $0x58] sm:$0x3]
      %v2605 = vld [vmem:[#allocation2 + $0x60] sm:$0xff]
      %v2606 = vld [vmem:[#allocation2 + $0x68] sm:$0xff]
      %v2607 = vld [vmem:[#allocation2 + $0x70] sm:$0x3]
      %v2608 = vld [vmem:[#allocation2 + $0x78] sm:$0xff]
      %v2609 = vld [vmem:[#allocation2 + $0x80] sm:$0xff]
      %v2610 = vld [vmem:[#allocation2 + $0x88] sm:$0x3]
      %v2611 = vld [vmem:[#allocation2 + $0x90] sm:$0xff]
      %v2612 = vld [vmem:[#allocation2 + $0x98] sm:$0xff]
      %v2613 = vld [vmem:[#allocation2 + $0xa0] sm:$0x3]
      %v2614 = vld [vmem:[#allocation2 + $0xa8] sm:$0xff]
      %v2615 = vld [vmem:[#allocation2 + $0xb0] sm:$0xff]
      %v2616 = vld [vmem:[#allocation2 + $0xb8] sm:$0x3]
      %v2617 = vld [vmem:[#allocation2 + $0xc0] sm:$0xff]
      %v2618 = vld [vmem:[#allocation2 + $0xc8] sm:$0xff]
      %v2619 = vld [vmem:[#allocation2 + $0xd0] sm:$0x3]
      %v2620 = vld [vmem:[#allocation2 + $0xd8] sm:$0xff]
      %v2621 = vld [vmem:[#allocation2 + $0xe0] sm:$0xff]
      %v2622 = vld [vmem:[#allocation2 + $0xe8] sm:$0x3]
      %v2623 = vld [vmem:[#allocation2 + $0xf0] sm:$0xff]
      %v2624 = vld [vmem:[#allocation2 + $0xf8] sm:$0xff]
      %v2625 = vld [vmem:[#allocation2 + $0x100] sm:$0x3]
      %v2626 = vld [vmem:[#allocation2 + $0x108] sm:$0xff]
      %v2627 = vld [vmem:[#allocation2 + $0x110] sm:$0xff]
      %v2628 = vld [vmem:[#allocation2 + $0x118] sm:$0x3]
      %v2629 = vld [vmem:[#allocation2 + $0x120] sm:$0xff]
      %v2630 = vld [vmem:[#allocation2 + $0x128] sm:$0xff]
      %v2631 = vld [vmem:[#allocation2 + $0x130] sm:$0x3]
      %v2632 = vld [vmem:[#allocation2 + $0x138] sm:$0xff]
      %v2633 = vld [vmem:[#allocation2 + $0x140] sm:$0xff]
      %v2634 = vld [vmem:[#allocation2 + $0x148] sm:$0x3]
      %v2635 = vld [vmem:[#allocation2 + $0x150] sm:$0xff]
      %v2636 = vld [vmem:[#allocation2 + $0x158] sm:$0xff]
      %v2637 = vld [vmem:[#allocation2 + $0x160] sm:$0x3]
      %v2638 = vld [vmem:[#allocation2 + $0x168] sm:$0xff]
      %v2639 = vld [vmem:[#allocation2 + $0x170] sm:$0xff]
      %v2640 = vld [vmem:[#allocation2 + $0x178] sm:$0x3]
      %v2641 = vld [vmem:[#allocation2 + $0x180] sm:$0xff]
      %v2642 = vld [vmem:[#allocation2 + $0x188] sm:$0xff]
      %v2643 = vld [vmem:[#allocation2 + $0x190] sm:$0x3]
      %v2644 = vld [vmem:[#allocation2 + $0x198] sm:$0xff]
      %v2645 = vld [vmem:[#allocation2 + $0x1a0] sm:$0xff]
      %v2646 = vld [vmem:[#allocation2 + $0x1a8] sm:$0x3]
      %v2647 = vpack.c.bf16 %v2594, %v2593
      %v2648 = vpack.c.bf16 %v2597, %v2596
      %v2649 = vpack.c.bf16 %v2600, %v2599
      %v2650 = vpack.c.bf16 %v2603, %v2602
      %v2651 = vpack.c.bf16 %v2606, %v2605
      %v2652 = vpack.c.bf16 %v2609, %v2608
      %v2653 = vpack.c.bf16 %v2612, %v2611
      %v2654 = vpack.c.bf16 %v2615, %v2614
      %v2655 = vpack.c.bf16 %v2618, %v2617
      %v2656 = vpack.c.bf16 %v2621, %v2620
      %v2657 = vpack.c.bf16 %v2624, %v2623
      %v2658 = vpack.c.bf16 %v2627, %v2626
      %v2659 = vpack.c.bf16 %v2630, %v2629
      %v2660 = vpack.c.bf16 %v2633, %v2632
      %v2661 = vpack.c.bf16 %v2636, %v2635
      %v2662 = vpack.c.bf16 %v2639, %v2638
      %v2663 = vld [vmem:[%s2] sm:$0xf]
      %v2664 = vld [vmem:[%s2 + $0x4] sm:$0xf]
      %v2665 = vld [vmem:[%s2 + $0x8] sm:$0xf]
      %v2666 = vld [vmem:[%s2 + $0xc] sm:$0xf]
      %v2667 = vld [vmem:[%s2 + $0x10] sm:$0xf]
      %v2668 = vld [vmem:[%s2 + $0x14] sm:$0xf]
      %v2669 = vld [vmem:[%s2 + $0x18] sm:$0xf]
      %v2670 = vld [vmem:[%s2 + $0x1c] sm:$0xf]
      %v2671 = vld [vmem:[%s2 + $0x20] sm:$0xf]
      %v2672 = vld [vmem:[%s2 + $0x24] sm:$0xf]
      %v2673 = vld [vmem:[%s2 + $0x28] sm:$0xf]
      %v2674 = vld [vmem:[%s2 + $0x2c] sm:$0xf]
      %v2675 = vld [vmem:[%s2 + $0x30] sm:$0xf]
      %v2676 = vld [vmem:[%s2 + $0x34] sm:$0xf]
      %v2677 = vld [vmem:[%s2 + $0x38] sm:$0xf]
      %v2678 = vld [vmem:[%s2 + $0x3c] sm:$0xf]
      %v2727 = vrot.slane %v2593, 1
      %v2728 = vrot.slane %v2594, 1
      %v2729 = vsel %vm406, %v2727, %v2728
      %v2730 = vrot.slane %v2595, 1
      %v2731 = vsel %vm406, %v2728, %v2730
      %v2732 = vrot.slane %v2596, 1
      %v2733 = vrot.slane %v2597, 1
      %v2734 = vsel %vm406, %v2732, %v2733
      %v2735 = vrot.slane %v2598, 1
      %v2736 = vsel %vm406, %v2733, %v2735
      %v2737 = vrot.slane %v2599, 1
      %v2738 = vrot.slane %v2600, 1
      %v2739 = vsel %vm406, %v2737, %v2738
      %v2740 = vrot.slane %v2601, 1
      %v2741 = vsel %vm406, %v2738, %v2740
      %v2742 = vrot.slane %v2602, 1
      %v2743 = vrot.slane %v2603, 1
      %v2744 = vsel %vm406, %v2742, %v2743
      %v2745 = vrot.slane %v2604, 1
      %v2746 = vsel %vm406, %v2743, %v2745
      %v2747 = vrot.slane %v2605, 1
      %v2748 = vrot.slane %v2606, 1
      %v2749 = vsel %vm406, %v2747, %v2748
      %v2750 = vrot.slane %v2607, 1
      %v2751 = vsel %vm406, %v2748, %v2750
      %v2752 = vrot.slane %v2608, 1
      %v2753 = vrot.slane %v2609, 1
      %v2754 = vsel %vm406, %v2752, %v2753
      %v2755 = vrot.slane %v2610, 1
      %v2756 = vsel %vm406, %v2753, %v2755
      %v2757 = vrot.slane %v2611, 1
      %v2758 = vrot.slane %v2612, 1
      %v2759 = vsel %vm406, %v2757, %v2758
      %v2760 = vrot.slane %v2613, 1
      %v2761 = vsel %vm406, %v2758, %v2760
      %v2762 = vrot.slane %v2614, 1
      %v2763 = vrot.slane %v2615, 1
      %v2764 = vsel %vm406, %v2762, %v2763
      %v2765 = vrot.slane %v2616, 1
      %v2766 = vsel %vm406, %v2763, %v2765
      %v2767 = vrot.slane %v2617, 1
      %v2768 = vrot.slane %v2618, 1
      %v2769 = vsel %vm406, %v2767, %v2768
      %v2770 = vrot.slane %v2619, 1
      %v2771 = vsel %vm406, %v2768, %v2770
      %v2772 = vrot.slane %v2620, 1
      %v2773 = vrot.slane %v2621, 1
      %v2774 = vsel %vm406, %v2772, %v2773
      %v2775 = vrot.slane %v2622, 1
      %v2776 = vsel %vm406, %v2773, %v2775
      %v2777 = vrot.slane %v2623, 1
      %v2778 = vrot.slane %v2624, 1
      %v2779 = vsel %vm406, %v2777, %v2778
      %v2780 = vrot.slane %v2625, 1
      %v2781 = vsel %vm406, %v2778, %v2780
      %v2782 = vrot.slane %v2626, 1
      %v2783 = vrot.slane %v2627, 1
      %v2784 = vsel %vm406, %v2782, %v2783
      %v2785 = vrot.slane %v2628, 1
      %v2786 = vsel %vm406, %v2783, %v2785
      %v2787 = vrot.slane %v2629, 1
      %v2788 = vrot.slane %v2630, 1
      %v2789 = vsel %vm406, %v2787, %v2788
      %v2790 = vrot.slane %v2631, 1
      %v2791 = vsel %vm406, %v2788, %v2790
      %v2792 = vrot.slane %v2632, 1
      %v2793 = vrot.slane %v2633, 1
      %v2794 = vsel %vm406, %v2792, %v2793
      %v2795 = vrot.slane %v2634, 1
      %v2796 = vsel %vm406, %v2793, %v2795
      %v2797 = vrot.slane %v2635, 1
      %v2798 = vrot.slane %v2636, 1
      %v2799 = vsel %vm406, %v2797, %v2798
      %v2800 = vrot.slane %v2637, 1
      %v2801 = vsel %vm406, %v2798, %v2800
      %v2802 = vrot.slane %v2638, 1
      %v2803 = vrot.slane %v2639, 1
      %v2804 = vsel %vm406, %v2802, %v2803
      %v2805 = vrot.slane %v2640, 1
      %v2806 = vsel %vm406, %v2803, %v2805
      %v2839 = vpack.c.bf16 %v2731, %v2729
      %v2840 = vpack.c.bf16 %v2736, %v2734
      %v2841 = vpack.c.bf16 %v2741, %v2739
      %v2842 = vpack.c.bf16 %v2746, %v2744
      %v2843 = vpack.c.bf16 %v2751, %v2749
      %v2844 = vpack.c.bf16 %v2756, %v2754
      %v2845 = vpack.c.bf16 %v2761, %v2759
      %v2846 = vpack.c.bf16 %v2766, %v2764
      %v2847 = vpack.c.bf16 %v2771, %v2769
      %v2848 = vpack.c.bf16 %v2776, %v2774
      %v2849 = vpack.c.bf16 %v2781, %v2779
      %v2850 = vpack.c.bf16 %v2786, %v2784
      %v2851 = vpack.c.bf16 %v2791, %v2789
      %v2852 = vpack.c.bf16 %v2796, %v2794
      %v2853 = vpack.c.bf16 %v2801, %v2799
      %v2854 = vpack.c.bf16 %v2806, %v2804
      %s2855 = scalar_lea.vmem %s2, 64
      %v2856 = vld [vmem:[%s2855] sm:$0xf]
      %v2857 = vld [vmem:[%s2855 + $0x4] sm:$0xf]
      %v2858 = vld [vmem:[%s2855 + $0x8] sm:$0xf]
      %v2859 = vld [vmem:[%s2855 + $0xc] sm:$0xf]
      %v2860 = vld [vmem:[%s2855 + $0x10] sm:$0xf]
      %v2861 = vld [vmem:[%s2855 + $0x14] sm:$0xf]
      %v2862 = vld [vmem:[%s2855 + $0x18] sm:$0xf]
      %v2863 = vld [vmem:[%s2855 + $0x1c] sm:$0xf]
      %v2864 = vld [vmem:[%s2855 + $0x20] sm:$0xf]
      %v2865 = vld [vmem:[%s2855 + $0x24] sm:$0xf]
      %v2866 = vld [vmem:[%s2855 + $0x28] sm:$0xf]
      %v2867 = vld [vmem:[%s2855 + $0x2c] sm:$0xf]
      %v2868 = vld [vmem:[%s2855 + $0x30] sm:$0xf]
      %v2869 = vld [vmem:[%s2855 + $0x34] sm:$0xf]
      %v2870 = vld [vmem:[%s2855 + $0x38] sm:$0xf]
      %v2871 = vld [vmem:[%s2855 + $0x3c] sm:$0xf]
      %v2888 = vunpack.c.l.b16 %v2856
      %v2889 = vunpack.c.l.b16 %v2857
      %v2890 = vunpack.c.l.b16 %v2858
      %v2891 = vunpack.c.l.b16 %v2859
      %v2892 = vunpack.c.l.b16 %v2860
      %v2893 = vunpack.c.l.b16 %v2861
      %v2894 = vunpack.c.l.b16 %v2862
      %v2895 = vunpack.c.l.b16 %v2863
      %v2896 = vunpack.c.l.b16 %v2864
      %v2897 = vunpack.c.l.b16 %v2865
      %v2898 = vunpack.c.l.b16 %v2866
      %v2899 = vunpack.c.l.b16 %v2867
      %v2900 = vunpack.c.l.b16 %v2868
      %v2901 = vunpack.c.l.b16 %v2869
      %v2902 = vunpack.c.l.b16 %v2870
      %v2903 = vunpack.c.l.b16 %v2871
      %v2904 = vpack.c.b16 %v2889, %v2888
      %v2905 = vpack.c.b16 %v2891, %v2890
      %v2906 = vpack.c.b16 %v2893, %v2892
      %v2907 = vpack.c.b16 %v2895, %v2894
      %v2908 = vpack.c.b16 %v2897, %v2896
      %v2909 = vpack.c.b16 %v2899, %v2898
      %v2910 = vpack.c.b16 %v2901, %v2900
      %v2911 = vpack.c.b16 %v2903, %v2902
      %2920 = vmatpush.bf16.msra.mxu0 %v2911
      %2921 = vmatpush.bf16.msra.mxu0 %v2910
      %2922 = vmatpush.bf16.msra.mxu0 %v2909
      %2923 = vmatpush.bf16.msra.mxu0 %v2908
      %2924 = vmatpush.bf16.msra.mxu0 %v2907
      %2925 = vmatpush.bf16.msra.mxu0 %v2906
      %2926 = vmatpush.bf16.msra.mxu0 %v2905
      %2927 = vmatpush.bf16.msra.mxu0 %v2904
      %2928 = vmatmul.bf16.gmra.mxu0 %v2839
      %v2929 = vpop.f32.mrf.mxu0
      %v2930 = vadd.f32 0.0, %v2929
      %v2931 = vpop.f32.mrf.mxu0
      %v2932 = vadd.f32 0.0, %v2931
      %2933 = vmatmul.bf16.gmra.mxu0 %v2840
      %v2934 = vpop.f32.mrf.mxu0
      %v2935 = vadd.f32 0.0, %v2934
      %v2936 = vpop.f32.mrf.mxu0
      %v2937 = vadd.f32 0.0, %v2936
      %2938 = vmatmul.bf16.gmra.mxu0 %v2841
      %v2939 = vpop.f32.mrf.mxu0
      %v2940 = vadd.f32 0.0, %v2939
      %v2941 = vpop.f32.mrf.mxu0
      %v2942 = vadd.f32 0.0, %v2941
      %2943 = vmatmul.bf16.gmra.mxu0 %v2842
      %v2944 = vpop.f32.mrf.mxu0
      %v2945 = vadd.f32 0.0, %v2944
      %v2946 = vpop.f32.mrf.mxu0
      %v2947 = vadd.f32 0.0, %v2946
      %2948 = vmatmul.bf16.gmra.mxu0 %v2843
      %v2949 = vpop.f32.mrf.mxu0
      %v2950 = vadd.f32 0.0, %v2949
      %v2951 = vpop.f32.mrf.mxu0
      %v2952 = vadd.f32 0.0, %v2951
      %2953 = vmatmul.bf16.gmra.mxu0 %v2844
      %v2954 = vpop.f32.mrf.mxu0
      %v2955 = vadd.f32 0.0, %v2954
      %v2956 = vpop.f32.mrf.mxu0
      %v2957 = vadd.f32 0.0, %v2956
      %2958 = vmatmul.bf16.gmra.mxu0 %v2845
      %v2959 = vpop.f32.mrf.mxu0
      %v2960 = vadd.f32 0.0, %v2959
      %v2961 = vpop.f32.mrf.mxu0
      %v2962 = vadd.f32 0.0, %v2961
      %2963 = vmatmul.bf16.gmra.mxu0 %v2846
      %v2964 = vpop.f32.mrf.mxu0
      %v2965 = vadd.f32 0.0, %v2964
      %v2966 = vpop.f32.mrf.mxu0
      %v2967 = vadd.f32 0.0, %v2966
      %2968 = vmatmul.bf16.gmra.mxu0 %v2847
      %v2969 = vpop.f32.mrf.mxu0
      %v2970 = vadd.f32 0.0, %v2969
      %v2971 = vpop.f32.mrf.mxu0
      %v2972 = vadd.f32 0.0, %v2971
      %2973 = vmatmul.bf16.gmra.mxu0 %v2848
      %v2974 = vpop.f32.mrf.mxu0
      %v2975 = vadd.f32 0.0, %v2974
      %v2976 = vpop.f32.mrf.mxu0
      %v2977 = vadd.f32 0.0, %v2976
      %2978 = vmatmul.bf16.gmra.mxu0 %v2849
      %v2979 = vpop.f32.mrf.mxu0
      %v2980 = vadd.f32 0.0, %v2979
      %v2981 = vpop.f32.mrf.mxu0
      %v2982 = vadd.f32 0.0, %v2981
      %2983 = vmatmul.bf16.gmra.mxu0 %v2850
      %v2984 = vpop.f32.mrf.mxu0
      %v2985 = vadd.f32 0.0, %v2984
      %v2986 = vpop.f32.mrf.mxu0
      %v2987 = vadd.f32 0.0, %v2986
      %2988 = vmatmul.bf16.gmra.mxu0 %v2851
      %v2989 = vpop.f32.mrf.mxu0
      %v2990 = vadd.f32 0.0, %v2989
      %v2991 = vpop.f32.mrf.mxu0
      %v2992 = vadd.f32 0.0, %v2991
      %2993 = vmatmul.bf16.gmra.mxu0 %v2852
      %v2994 = vpop.f32.mrf.mxu0
      %v2995 = vadd.f32 0.0, %v2994
      %v2996 = vpop.f32.mrf.mxu0
      %v2997 = vadd.f32 0.0, %v2996
      %2998 = vmatmul.bf16.gmra.mxu0 %v2853
      %v2999 = vpop.f32.mrf.mxu0
      %v3000 = vadd.f32 0.0, %v2999
      %v3001 = vpop.f32.mrf.mxu0
      %v3002 = vadd.f32 0.0, %v3001
      %3003 = vmatmul.bf16.gmra.mxu0 %v2854
      %v3004 = vpop.f32.mrf.mxu0
      %v3005 = vadd.f32 0.0, %v3004
      %v3006 = vpop.f32.mrf.mxu0
      %v3007 = vadd.f32 0.0, %v3006
      %3008 = vdwg.mxu0
      %v3025 = vunpack.c.l.b16 %v2663
      %v3026 = vunpack.c.l.b16 %v2664
      %v3027 = vunpack.c.l.b16 %v2665
      %v3028 = vunpack.c.l.b16 %v2666
      %v3029 = vunpack.c.l.b16 %v2667
      %v3030 = vunpack.c.l.b16 %v2668
      %v3031 = vunpack.c.l.b16 %v2669
      %v3032 = vunpack.c.l.b16 %v2670
      %v3033 = vunpack.c.l.b16 %v2671
      %v3034 = vunpack.c.l.b16 %v2672
      %v3035 = vunpack.c.l.b16 %v2673
      %v3036 = vunpack.c.l.b16 %v2674
      %v3037 = vunpack.c.l.b16 %v2675
      %v3038 = vunpack.c.l.b16 %v2676
      %v3039 = vunpack.c.l.b16 %v2677
      %v3040 = vunpack.c.l.b16 %v2678
      %v3041 = vpack.c.b16 %v3026, %v3025
      %v3042 = vpack.c.b16 %v3028, %v3027
      %v3043 = vpack.c.b16 %v3030, %v3029
      %v3044 = vpack.c.b16 %v3032, %v3031
      %v3045 = vpack.c.b16 %v3034, %v3033
      %v3046 = vpack.c.b16 %v3036, %v3035
      %v3047 = vpack.c.b16 %v3038, %v3037
      %v3048 = vpack.c.b16 %v3040, %v3039
      %3057 = vmatpush.bf16.msra.mxu0 %v3048
      %3058 = vmatpush.bf16.msra.mxu0 %v3047
      %3059 = vmatpush.bf16.msra.mxu0 %v3046
      %3060 = vmatpush.bf16.msra.mxu0 %v3045
      %3061 = vmatpush.bf16.msra.mxu0 %v3044
      %3062 = vmatpush.bf16.msra.mxu0 %v3043
      %3063 = vmatpush.bf16.msra.mxu0 %v3042
      %3064 = vmatpush.bf16.msra.mxu0 %v3041
      %3065 = vmatmul.bf16.gmra.mxu0 %v2647
      %v3066 = vpop.f32.mrf.mxu0
      %v3067 = vadd.f32 %v2930, %v3066
      %v3068 = vpop.f32.mrf.mxu0
      %v3069 = vadd.f32 %v2932, %v3068
      %3070 = vmatmul.bf16.gmra.mxu0 %v2648
      %v3071 = vpop.f32.mrf.mxu0
      %v3072 = vadd.f32 %v2935, %v3071
      %v3073 = vpop.f32.mrf.mxu0
      %v3074 = vadd.f32 %v2937, %v3073
      %3075 = vmatmul.bf16.gmra.mxu0 %v2649
      %v3076 = vpop.f32.mrf.mxu0
      %v3077 = vadd.f32 %v2940, %v3076
      %v3078 = vpop.f32.mrf.mxu0
      %v3079 = vadd.f32 %v2942, %v3078
      %3080 = vmatmul.bf16.gmra.mxu0 %v2650
      %v3081 = vpop.f32.mrf.mxu0
      %v3082 = vadd.f32 %v2945, %v3081
      %v3083 = vpop.f32.mrf.mxu0
      %v3084 = vadd.f32 %v2947, %v3083
      %3085 = vmatmul.bf16.gmra.mxu0 %v2651
      %v3086 = vpop.f32.mrf.mxu0
      %v3087 = vadd.f32 %v2950, %v3086
      %v3088 = vpop.f32.mrf.mxu0
      %v3089 = vadd.f32 %v2952, %v3088
      %3090 = vmatmul.bf16.gmra.mxu0 %v2652
      %v3091 = vpop.f32.mrf.mxu0
      %v3092 = vadd.f32 %v2955, %v3091
      %v3093 = vpop.f32.mrf.mxu0
      %v3094 = vadd.f32 %v2957, %v3093
      %3095 = vmatmul.bf16.gmra.mxu0 %v2653
      %v3096 = vpop.f32.mrf.mxu0
      %v3097 = vadd.f32 %v2960, %v3096
      %v3098 = vpop.f32.mrf.mxu0
      %v3099 = vadd.f32 %v2962, %v3098
      %3100 = vmatmul.bf16.gmra.mxu0 %v2654
      %v3101 = vpop.f32.mrf.mxu0
      %v3102 = vadd.f32 %v2965, %v3101
      %v3103 = vpop.f32.mrf.mxu0
      %v3104 = vadd.f32 %v2967, %v3103
      %3105 = vmatmul.bf16.gmra.mxu0 %v2655
      %v3106 = vpop.f32.mrf.mxu0
      %v3107 = vadd.f32 %v2970, %v3106
      %v3108 = vpop.f32.mrf.mxu0
      %v3109 = vadd.f32 %v2972, %v3108
      %3110 = vmatmul.bf16.gmra.mxu0 %v2656
      %v3111 = vpop.f32.mrf.mxu0
      %v3112 = vadd.f32 %v2975, %v3111
      %v3113 = vpop.f32.mrf.mxu0
      %v3114 = vadd.f32 %v2977, %v3113
      %3115 = vmatmul.bf16.gmra.mxu0 %v2657
      %v3116 = vpop.f32.mrf.mxu0
      %v3117 = vadd.f32 %v2980, %v3116
      %v3118 = vpop.f32.mrf.mxu0
      %v3119 = vadd.f32 %v2982, %v3118
      %3120 = vmatmul.bf16.gmra.mxu0 %v2658
      %v3121 = vpop.f32.mrf.mxu0
      %v3122 = vadd.f32 %v2985, %v3121
      %v3123 = vpop.f32.mrf.mxu0
      %v3124 = vadd.f32 %v2987, %v3123
      %3125 = vmatmul.bf16.gmra.mxu0 %v2659
      %v3126 = vpop.f32.mrf.mxu0
      %v3127 = vadd.f32 %v2990, %v3126
      %v3128 = vpop.f32.mrf.mxu0
      %v3129 = vadd.f32 %v2992, %v3128
      %3130 = vmatmul.bf16.gmra.mxu0 %v2660
      %v3131 = vpop.f32.mrf.mxu0
      %v3132 = vadd.f32 %v2995, %v3131
      %v3133 = vpop.f32.mrf.mxu0
      %v3134 = vadd.f32 %v2997, %v3133
      %3135 = vmatmul.bf16.gmra.mxu0 %v2661
      %v3136 = vpop.f32.mrf.mxu0
      %v3137 = vadd.f32 %v3000, %v3136
      %v3138 = vpop.f32.mrf.mxu0
      %v3139 = vadd.f32 %v3002, %v3138
      %3140 = vmatmul.bf16.gmra.mxu0 %v2662
      %v3141 = vpop.f32.mrf.mxu0
      %v3142 = vadd.f32 %v3005, %v3141
      %v3143 = vpop.f32.mrf.mxu0
      %v3144 = vadd.f32 %v3007, %v3143
      %3145 = vdwg.mxu0
      %v3146 = vrot.slane %v2593, 2
      %v3147 = vrot.slane %v2594, 2
      %v3148 = vsel %vm826, %v3146, %v3147
      %v3149 = vrot.slane %v2595, 2
      %v3150 = vsel %vm826, %v3147, %v3149
      %v3151 = vrot.slane %v2596, 2
      %v3152 = vrot.slane %v2597, 2
      %v3153 = vsel %vm826, %v3151, %v3152
      %v3154 = vrot.slane %v2598, 2
      %v3155 = vsel %vm826, %v3152, %v3154
      %v3156 = vrot.slane %v2599, 2
      %v3157 = vrot.slane %v2600, 2
      %v3158 = vsel %vm826, %v3156, %v3157
      %v3159 = vrot.slane %v2601, 2
      %v3160 = vsel %vm826, %v3157, %v3159
      %v3161 = vrot.slane %v2602, 2
      %v3162 = vrot.slane %v2603, 2
      %v3163 = vsel %vm826, %v3161, %v3162
      %v3164 = vrot.slane %v2604, 2
      %v3165 = vsel %vm826, %v3162, %v3164
      %v3166 = vrot.slane %v2605, 2
      %v3167 = vrot.slane %v2606, 2
      %v3168 = vsel %vm826, %v3166, %v3167
      %v3169 = vrot.slane %v2607, 2
      %v3170 = vsel %vm826, %v3167, %v3169
      %v3171 = vrot.slane %v2608, 2
      %v3172 = vrot.slane %v2609, 2
      %v3173 = vsel %vm826, %v3171, %v3172
      %v3174 = vrot.slane %v2610, 2
      %v3175 = vsel %vm826, %v3172, %v3174
      %v3176 = vrot.slane %v2611, 2
      %v3177 = vrot.slane %v2612, 2
      %v3178 = vsel %vm826, %v3176, %v3177
      %v3179 = vrot.slane %v2613, 2
      %v3180 = vsel %vm826, %v3177, %v3179
      %v3181 = vrot.slane %v2614, 2
      %v3182 = vrot.slane %v2615, 2
      %v3183 = vsel %vm826, %v3181, %v3182
      %v3184 = vrot.slane %v2616, 2
      %v3185 = vsel %vm826, %v3182, %v3184
      %v3186 = vrot.slane %v2617, 2
      %v3187 = vrot.slane %v2618, 2
      %v3188 = vsel %vm826, %v3186, %v3187
      %v3189 = vrot.slane %v2619, 2
      %v3190 = vsel %vm826, %v3187, %v3189
      %v3191 = vrot.slane %v2620, 2
      %v3192 = vrot.slane %v2621, 2
      %v3193 = vsel %vm826, %v3191, %v3192
      %v3194 = vrot.slane %v2622, 2
      %v3195 = vsel %vm826, %v3192, %v3194
      %v3196 = vrot.slane %v2623, 2
      %v3197 = vrot.slane %v2624, 2
      %v3198 = vsel %vm826, %v3196, %v3197
      %v3199 = vrot.slane %v2625, 2
      %v3200 = vsel %vm826, %v3197, %v3199
      %v3201 = vrot.slane %v2626, 2
      %v3202 = vrot.slane %v2627, 2
      %v3203 = vsel %vm826, %v3201, %v3202
      %v3204 = vrot.slane %v2628, 2
      %v3205 = vsel %vm826, %v3202, %v3204
      %v3206 = vrot.slane %v2629, 2
      %v3207 = vrot.slane %v2630, 2
      %v3208 = vsel %vm826, %v3206, %v3207
      %v3209 = vrot.slane %v2631, 2
      %v3210 = vsel %vm826, %v3207, %v3209
      %v3211 = vrot.slane %v2632, 2
      %v3212 = vrot.slane %v2633, 2
      %v3213 = vsel %vm826, %v3211, %v3212
      %v3214 = vrot.slane %v2634, 2
      %v3215 = vsel %vm826, %v3212, %v3214
      %v3216 = vrot.slane %v2635, 2
      %v3217 = vrot.slane %v2636, 2
      %v3218 = vsel %vm826, %v3216, %v3217
      %v3219 = vrot.slane %v2637, 2
      %v3220 = vsel %vm826, %v3217, %v3219
      %v3221 = vrot.slane %v2638, 2
      %v3222 = vrot.slane %v2639, 2
      %v3223 = vsel %vm826, %v3221, %v3222
      %v3224 = vrot.slane %v2640, 2
      %v3225 = vsel %vm826, %v3222, %v3224
      %v3258 = vpack.c.bf16 %v3150, %v3148
      %v3259 = vpack.c.bf16 %v3155, %v3153
      %v3260 = vpack.c.bf16 %v3160, %v3158
      %v3261 = vpack.c.bf16 %v3165, %v3163
      %v3262 = vpack.c.bf16 %v3170, %v3168
      %v3263 = vpack.c.bf16 %v3175, %v3173
      %v3264 = vpack.c.bf16 %v3180, %v3178
      %v3265 = vpack.c.bf16 %v3185, %v3183
      %v3266 = vpack.c.bf16 %v3190, %v3188
      %v3267 = vpack.c.bf16 %v3195, %v3193
      %v3268 = vpack.c.bf16 %v3200, %v3198
      %v3269 = vpack.c.bf16 %v3205, %v3203
      %v3270 = vpack.c.bf16 %v3210, %v3208
      %v3271 = vpack.c.bf16 %v3215, %v3213
      %v3272 = vpack.c.bf16 %v3220, %v3218
      %v3273 = vpack.c.bf16 %v3225, %v3223
      %s3274 = scalar_lea.vmem %s2, 128
      %v3275 = vld [vmem:[%s3274] sm:$0xf]
      %v3276 = vld [vmem:[%s3274 + $0x4] sm:$0xf]
      %v3277 = vld [vmem:[%s3274 + $0x8] sm:$0xf]
      %v3278 = vld [vmem:[%s3274 + $0xc] sm:$0xf]
      %v3279 = vld [vmem:[%s3274 + $0x10] sm:$0xf]
      %v3280 = vld [vmem:[%s3274 + $0x14] sm:$0xf]
      %v3281 = vld [vmem:[%s3274 + $0x18] sm:$0xf]
      %v3282 = vld [vmem:[%s3274 + $0x1c] sm:$0xf]
      %v3283 = vld [vmem:[%s3274 + $0x20] sm:$0xf]
      %v3284 = vld [vmem:[%s3274 + $0x24] sm:$0xf]
      %v3285 = vld [vmem:[%s3274 + $0x28] sm:$0xf]
      %v3286 = vld [vmem:[%s3274 + $0x2c] sm:$0xf]
      %v3287 = vld [vmem:[%s3274 + $0x30] sm:$0xf]
      %v3288 = vld [vmem:[%s3274 + $0x34] sm:$0xf]
      %v3289 = vld [vmem:[%s3274 + $0x38] sm:$0xf]
      %v3290 = vld [vmem:[%s3274 + $0x3c] sm:$0xf]
      %v3307 = vunpack.c.l.b16 %v3275
      %v3308 = vunpack.c.l.b16 %v3276
      %v3309 = vunpack.c.l.b16 %v3277
      %v3310 = vunpack.c.l.b16 %v3278
      %v3311 = vunpack.c.l.b16 %v3279
      %v3312 = vunpack.c.l.b16 %v3280
      %v3313 = vunpack.c.l.b16 %v3281
      %v3314 = vunpack.c.l.b16 %v3282
      %v3315 = vunpack.c.l.b16 %v3283
      %v3316 = vunpack.c.l.b16 %v3284
      %v3317 = vunpack.c.l.b16 %v3285
      %v3318 = vunpack.c.l.b16 %v3286
      %v3319 = vunpack.c.l.b16 %v3287
      %v3320 = vunpack.c.l.b16 %v3288
      %v3321 = vunpack.c.l.b16 %v3289
      %v3322 = vunpack.c.l.b16 %v3290
      %v3323 = vpack.c.b16 %v3308, %v3307
      %v3324 = vpack.c.b16 %v3310, %v3309
      %v3325 = vpack.c.b16 %v3312, %v3311
      %v3326 = vpack.c.b16 %v3314, %v3313
      %v3327 = vpack.c.b16 %v3316, %v3315
      %v3328 = vpack.c.b16 %v3318, %v3317
      %v3329 = vpack.c.b16 %v3320, %v3319
      %v3330 = vpack.c.b16 %v3322, %v3321
      %3339 = vmatpush.bf16.msra.mxu0 %v3330
      %3340 = vmatpush.bf16.msra.mxu0 %v3329
      %3341 = vmatpush.bf16.msra.mxu0 %v3328
      %3342 = vmatpush.bf16.msra.mxu0 %v3327
      %3343 = vmatpush.bf16.msra.mxu0 %v3326
      %3344 = vmatpush.bf16.msra.mxu0 %v3325
      %3345 = vmatpush.bf16.msra.mxu0 %v3324
      %3346 = vmatpush.bf16.msra.mxu0 %v3323
      %3347 = vmatmul.bf16.gmra.mxu0 %v3258
      %v3348 = vpop.f32.mrf.mxu0
      %v3349 = vadd.f32 0.0, %v3348
      %v3350 = vpop.f32.mrf.mxu0
      %v3351 = vadd.f32 0.0, %v3350
      %3352 = vmatmul.bf16.gmra.mxu0 %v3259
      %v3353 = vpop.f32.mrf.mxu0
      %v3354 = vadd.f32 0.0, %v3353
      %v3355 = vpop.f32.mrf.mxu0
      %v3356 = vadd.f32 0.0, %v3355
      %3357 = vmatmul.bf16.gmra.mxu0 %v3260
      %v3358 = vpop.f32.mrf.mxu0
      %v3359 = vadd.f32 0.0, %v3358
      %v3360 = vpop.f32.mrf.mxu0
      %v3361 = vadd.f32 0.0, %v3360
      %3362 = vmatmul.bf16.gmra.mxu0 %v3261
      %v3363 = vpop.f32.mrf.mxu0
      %v3364 = vadd.f32 0.0, %v3363
      %v3365 = vpop.f32.mrf.mxu0
      %v3366 = vadd.f32 0.0, %v3365
      %3367 = vmatmul.bf16.gmra.mxu0 %v3262
      %v3368 = vpop.f32.mrf.mxu0
      %v3369 = vadd.f32 0.0, %v3368
      %v3370 = vpop.f32.mrf.mxu0
      %v3371 = vadd.f32 0.0, %v3370
      %3372 = vmatmul.bf16.gmra.mxu0 %v3263
      %v3373 = vpop.f32.mrf.mxu0
      %v3374 = vadd.f32 0.0, %v3373
      %v3375 = vpop.f32.mrf.mxu0
      %v3376 = vadd.f32 0.0, %v3375
      %3377 = vmatmul.bf16.gmra.mxu0 %v3264
      %v3378 = vpop.f32.mrf.mxu0
      %v3379 = vadd.f32 0.0, %v3378
      %v3380 = vpop.f32.mrf.mxu0
      %v3381 = vadd.f32 0.0, %v3380
      %3382 = vmatmul.bf16.gmra.mxu0 %v3265
      %v3383 = vpop.f32.mrf.mxu0
      %v3384 = vadd.f32 0.0, %v3383
      %v3385 = vpop.f32.mrf.mxu0
      %v3386 = vadd.f32 0.0, %v3385
      %3387 = vmatmul.bf16.gmra.mxu0 %v3266
      %v3388 = vpop.f32.mrf.mxu0
      %v3389 = vadd.f32 0.0, %v3388
      %v3390 = vpop.f32.mrf.mxu0
      %v3391 = vadd.f32 0.0, %v3390
      %3392 = vmatmul.bf16.gmra.mxu0 %v3267
      %v3393 = vpop.f32.mrf.mxu0
      %v3394 = vadd.f32 0.0, %v3393
      %v3395 = vpop.f32.mrf.mxu0
      %v3396 = vadd.f32 0.0, %v3395
      %3397 = vmatmul.bf16.gmra.mxu0 %v3268
      %v3398 = vpop.f32.mrf.mxu0
      %v3399 = vadd.f32 0.0, %v3398
      %v3400 = vpop.f32.mrf.mxu0
      %v3401 = vadd.f32 0.0, %v3400
      %3402 = vmatmul.bf16.gmra.mxu0 %v3269
      %v3403 = vpop.f32.mrf.mxu0
      %v3404 = vadd.f32 0.0, %v3403
      %v3405 = vpop.f32.mrf.mxu0
      %v3406 = vadd.f32 0.0, %v3405
      %3407 = vmatmul.bf16.gmra.mxu0 %v3270
      %v3408 = vpop.f32.mrf.mxu0
      %v3409 = vadd.f32 0.0, %v3408
      %v3410 = vpop.f32.mrf.mxu0
      %v3411 = vadd.f32 0.0, %v3410
      %3412 = vmatmul.bf16.gmra.mxu0 %v3271
      %v3413 = vpop.f32.mrf.mxu0
      %v3414 = vadd.f32 0.0, %v3413
      %v3415 = vpop.f32.mrf.mxu0
      %v3416 = vadd.f32 0.0, %v3415
      %3417 = vmatmul.bf16.gmra.mxu0 %v3272
      %v3418 = vpop.f32.mrf.mxu0
      %v3419 = vadd.f32 0.0, %v3418
      %v3420 = vpop.f32.mrf.mxu0
      %v3421 = vadd.f32 0.0, %v3420
      %3422 = vmatmul.bf16.gmra.mxu0 %v3273
      %v3423 = vpop.f32.mrf.mxu0
      %v3424 = vadd.f32 0.0, %v3423
      %v3425 = vpop.f32.mrf.mxu0
      %v3426 = vadd.f32 0.0, %v3425
      %3427 = vdwg.mxu0
      %v3428 = vadd.f32 %v3067, %v3349
      %v3429 = vadd.f32 %v3069, %v3351
      %v3430 = vadd.f32 %v3072, %v3354
      %v3431 = vadd.f32 %v3074, %v3356
      %v3432 = vadd.f32 %v3077, %v3359
      %v3433 = vadd.f32 %v3079, %v3361
      %v3434 = vadd.f32 %v3082, %v3364
      %v3435 = vadd.f32 %v3084, %v3366
      %v3436 = vadd.f32 %v3087, %v3369
      %v3437 = vadd.f32 %v3089, %v3371
      %v3438 = vadd.f32 %v3092, %v3374
      %v3439 = vadd.f32 %v3094, %v3376
      %v3440 = vadd.f32 %v3097, %v3379
      %v3441 = vadd.f32 %v3099, %v3381
      %v3442 = vadd.f32 %v3102, %v3384
      %v3443 = vadd.f32 %v3104, %v3386
      %v3444 = vadd.f32 %v3107, %v3389
      %v3445 = vadd.f32 %v3109, %v3391
      %v3446 = vadd.f32 %v3112, %v3394
      %v3447 = vadd.f32 %v3114, %v3396
      %v3448 = vadd.f32 %v3117, %v3399
      %v3449 = vadd.f32 %v3119, %v3401
      %v3450 = vadd.f32 %v3122, %v3404
      %v3451 = vadd.f32 %v3124, %v3406
      %v3452 = vadd.f32 %v3127, %v3409
      %v3453 = vadd.f32 %v3129, %v3411
      %v3454 = vadd.f32 %v3132, %v3414
      %v3455 = vadd.f32 %v3134, %v3416
      %v3456 = vadd.f32 %v3137, %v3419
      %v3457 = vadd.f32 %v3139, %v3421
      %v3458 = vadd.f32 %v3142, %v3424
      %v3459 = vadd.f32 %v3144, %v3426
      %v3460 = vpack.c.bf16 %v2642, %v2641
      %s3461 = scalar_lea.vmem %s2, 192
      %v3462 = vld [vmem:[%s3461] sm:$0xf]
      %v3463 = vld [vmem:[%s3461 + $0x4] sm:$0xf]
      %v3464 = vld [vmem:[%s3461 + $0x8] sm:$0xf]
      %v3465 = vld [vmem:[%s3461 + $0xc] sm:$0xf]
      %v3466 = vld [vmem:[%s3461 + $0x10] sm:$0xf]
      %v3467 = vld [vmem:[%s3461 + $0x14] sm:$0xf]
      %v3468 = vld [vmem:[%s3461 + $0x18] sm:$0xf]
      %v3469 = vld [vmem:[%s3461 + $0x1c] sm:$0xf]
      %v3470 = vld [vmem:[%s3461 + $0x20] sm:$0xf]
      %v3471 = vld [vmem:[%s3461 + $0x24] sm:$0xf]
      %v3472 = vld [vmem:[%s3461 + $0x28] sm:$0xf]
      %v3473 = vld [vmem:[%s3461 + $0x2c] sm:$0xf]
      %v3474 = vld [vmem:[%s3461 + $0x30] sm:$0xf]
      %v3475 = vld [vmem:[%s3461 + $0x34] sm:$0xf]
      %v3476 = vld [vmem:[%s3461 + $0x38] sm:$0xf]
      %v3477 = vld [vmem:[%s3461 + $0x3c] sm:$0xf]
      %v3494 = vunpack.c.l.b16 %v3462
      %v3495 = vunpack.c.l.b16 %v3463
      %v3496 = vunpack.c.l.b16 %v3464
      %v3497 = vunpack.c.l.b16 %v3465
      %v3498 = vunpack.c.l.b16 %v3466
      %v3499 = vunpack.c.l.b16 %v3467
      %v3500 = vunpack.c.l.b16 %v3468
      %v3501 = vunpack.c.l.b16 %v3469
      %v3502 = vunpack.c.l.b16 %v3470
      %v3503 = vunpack.c.l.b16 %v3471
      %v3504 = vunpack.c.l.b16 %v3472
      %v3505 = vunpack.c.l.b16 %v3473
      %v3506 = vunpack.c.l.b16 %v3474
      %v3507 = vunpack.c.l.b16 %v3475
      %v3508 = vunpack.c.l.b16 %v3476
      %v3509 = vunpack.c.l.b16 %v3477
      %v3510 = vpack.c.b16 %v3495, %v3494
      %v3511 = vpack.c.b16 %v3497, %v3496
      %v3512 = vpack.c.b16 %v3499, %v3498
      %v3513 = vpack.c.b16 %v3501, %v3500
      %v3514 = vpack.c.b16 %v3503, %v3502
      %v3515 = vpack.c.b16 %v3505, %v3504
      %v3516 = vpack.c.b16 %v3507, %v3506
      %v3517 = vpack.c.b16 %v3509, %v3508
      %3526 = vmatpush.bf16.msra.mxu0 %v3517
      %3527 = vmatpush.bf16.msra.mxu0 %v3516
      %3528 = vmatpush.bf16.msra.mxu0 %v3515
      %3529 = vmatpush.bf16.msra.mxu0 %v3514
      %3530 = vmatpush.bf16.msra.mxu0 %v3513
      %3531 = vmatpush.bf16.msra.mxu0 %v3512
      %3532 = vmatpush.bf16.msra.mxu0 %v3511
      %3533 = vmatpush.bf16.msra.mxu0 %v3510
      %3534 = vmatmul.bf16.gmra.mxu0 %v2648
      %v3535 = vpop.f32.mrf.mxu0
      %v3536 = vadd.f32 0.0, %v3535
      %v3537 = vpop.f32.mrf.mxu0
      %v3538 = vadd.f32 0.0, %v3537
      %3539 = vmatmul.bf16.gmra.mxu0 %v2649
      %v3540 = vpop.f32.mrf.mxu0
      %v3541 = vadd.f32 0.0, %v3540
      %v3542 = vpop.f32.mrf.mxu0
      %v3543 = vadd.f32 0.0, %v3542
      %3544 = vmatmul.bf16.gmra.mxu0 %v2650
      %v3545 = vpop.f32.mrf.mxu0
      %v3546 = vadd.f32 0.0, %v3545
      %v3547 = vpop.f32.mrf.mxu0
      %v3548 = vadd.f32 0.0, %v3547
      %3549 = vmatmul.bf16.gmra.mxu0 %v2651
      %v3550 = vpop.f32.mrf.mxu0
      %v3551 = vadd.f32 0.0, %v3550
      %v3552 = vpop.f32.mrf.mxu0
      %v3553 = vadd.f32 0.0, %v3552
      %3554 = vmatmul.bf16.gmra.mxu0 %v2652
      %v3555 = vpop.f32.mrf.mxu0
      %v3556 = vadd.f32 0.0, %v3555
      %v3557 = vpop.f32.mrf.mxu0
      %v3558 = vadd.f32 0.0, %v3557
      %3559 = vmatmul.bf16.gmra.mxu0 %v2653
      %v3560 = vpop.f32.mrf.mxu0
      %v3561 = vadd.f32 0.0, %v3560
      %v3562 = vpop.f32.mrf.mxu0
      %v3563 = vadd.f32 0.0, %v3562
      %3564 = vmatmul.bf16.gmra.mxu0 %v2654
      %v3565 = vpop.f32.mrf.mxu0
      %v3566 = vadd.f32 0.0, %v3565
      %v3567 = vpop.f32.mrf.mxu0
      %v3568 = vadd.f32 0.0, %v3567
      %3569 = vmatmul.bf16.gmra.mxu0 %v2655
      %v3570 = vpop.f32.mrf.mxu0
      %v3571 = vadd.f32 0.0, %v3570
      %v3572 = vpop.f32.mrf.mxu0
      %v3573 = vadd.f32 0.0, %v3572
      %3574 = vmatmul.bf16.gmra.mxu0 %v2656
      %v3575 = vpop.f32.mrf.mxu0
      %v3576 = vadd.f32 0.0, %v3575
      %v3577 = vpop.f32.mrf.mxu0
      %v3578 = vadd.f32 0.0, %v3577
      %3579 = vmatmul.bf16.gmra.mxu0 %v2657
      %v3580 = vpop.f32.mrf.mxu0
      %v3581 = vadd.f32 0.0, %v3580
      %v3582 = vpop.f32.mrf.mxu0
      %v3583 = vadd.f32 0.0, %v3582
      %3584 = vmatmul.bf16.gmra.mxu0 %v2658
      %v3585 = vpop.f32.mrf.mxu0
      %v3586 = vadd.f32 0.0, %v3585
      %v3587 = vpop.f32.mrf.mxu0
      %v3588 = vadd.f32 0.0, %v3587
      %3589 = vmatmul.bf16.gmra.mxu0 %v2659
      %v3590 = vpop.f32.mrf.mxu0
      %v3591 = vadd.f32 0.0, %v3590
      %v3592 = vpop.f32.mrf.mxu0
      %v3593 = vadd.f32 0.0, %v3592
      %3594 = vmatmul.bf16.gmra.mxu0 %v2660
      %v3595 = vpop.f32.mrf.mxu0
      %v3596 = vadd.f32 0.0, %v3595
      %v3597 = vpop.f32.mrf.mxu0
      %v3598 = vadd.f32 0.0, %v3597
      %3599 = vmatmul.bf16.gmra.mxu0 %v2661
      %v3600 = vpop.f32.mrf.mxu0
      %v3601 = vadd.f32 0.0, %v3600
      %v3602 = vpop.f32.mrf.mxu0
      %v3603 = vadd.f32 0.0, %v3602
      %3604 = vmatmul.bf16.gmra.mxu0 %v2662
      %v3605 = vpop.f32.mrf.mxu0
      %v3606 = vadd.f32 0.0, %v3605
      %v3607 = vpop.f32.mrf.mxu0
      %v3608 = vadd.f32 0.0, %v3607
      %3609 = vmatmul.bf16.gmra.mxu0 %v3460
      %v3610 = vpop.f32.mrf.mxu0
      %v3611 = vadd.f32 0.0, %v3610
      %v3612 = vpop.f32.mrf.mxu0
      %v3613 = vadd.f32 0.0, %v3612
      %3614 = vdwg.mxu0
      %v3615 = vadd.f32 %v3428, %v3536
      %v3616 = vadd.f32 %v3429, %v3538
      %v3617 = vadd.f32 %v3430, %v3541
      %v3618 = vadd.f32 %v3431, %v3543
      %v3619 = vadd.f32 %v3432, %v3546
      %v3620 = vadd.f32 %v3433, %v3548
      %v3621 = vadd.f32 %v3434, %v3551
      %v3622 = vadd.f32 %v3435, %v3553
      %v3623 = vadd.f32 %v3436, %v3556
      %v3624 = vadd.f32 %v3437, %v3558
      %v3625 = vadd.f32 %v3438, %v3561
      %v3626 = vadd.f32 %v3439, %v3563
      %v3627 = vadd.f32 %v3440, %v3566
      %v3628 = vadd.f32 %v3441, %v3568
      %v3629 = vadd.f32 %v3442, %v3571
      %v3630 = vadd.f32 %v3443, %v3573
      %v3631 = vadd.f32 %v3444, %v3576
      %v3632 = vadd.f32 %v3445, %v3578
      %v3633 = vadd.f32 %v3446, %v3581
      %v3634 = vadd.f32 %v3447, %v3583
      %v3635 = vadd.f32 %v3448, %v3586
      %v3636 = vadd.f32 %v3449, %v3588
      %v3637 = vadd.f32 %v3450, %v3591
      %v3638 = vadd.f32 %v3451, %v3593
      %v3639 = vadd.f32 %v3452, %v3596
      %v3640 = vadd.f32 %v3453, %v3598
      %v3641 = vadd.f32 %v3454, %v3601
      %v3642 = vadd.f32 %v3455, %v3603
      %v3643 = vadd.f32 %v3456, %v3606
      %v3644 = vadd.f32 %v3457, %v3608
      %v3645 = vadd.f32 %v3458, %v3611
      %v3646 = vadd.f32 %v3459, %v3613
      %v3650 = vrot.slane %v2641, 1
      %v3651 = vrot.slane %v2642, 1
      %v3652 = vsel %vm406, %v3650, %v3651
      %v3653 = vrot.slane %v2643, 1
      %v3654 = vsel %vm406, %v3651, %v3653
      %v3657 = vpack.c.bf16 %v3654, %v3652
      %s3658 = scalar_lea.vmem %s2, 256
      %v3659 = vld [vmem:[%s3658] sm:$0xf]
      %v3660 = vld [vmem:[%s3658 + $0x4] sm:$0xf]
      %v3661 = vld [vmem:[%s3658 + $0x8] sm:$0xf]
      %v3662 = vld [vmem:[%s3658 + $0xc] sm:$0xf]
      %v3663 = vld [vmem:[%s3658 + $0x10] sm:$0xf]
      %v3664 = vld [vmem:[%s3658 + $0x14] sm:$0xf]
      %v3665 = vld [vmem:[%s3658 + $0x18] sm:$0xf]
      %v3666 = vld [vmem:[%s3658 + $0x1c] sm:$0xf]
      %v3667 = vld [vmem:[%s3658 + $0x20] sm:$0xf]
      %v3668 = vld [vmem:[%s3658 + $0x24] sm:$0xf]
      %v3669 = vld [vmem:[%s3658 + $0x28] sm:$0xf]
      %v3670 = vld [vmem:[%s3658 + $0x2c] sm:$0xf]
      %v3671 = vld [vmem:[%s3658 + $0x30] sm:$0xf]
      %v3672 = vld [vmem:[%s3658 + $0x34] sm:$0xf]
      %v3673 = vld [vmem:[%s3658 + $0x38] sm:$0xf]
      %v3674 = vld [vmem:[%s3658 + $0x3c] sm:$0xf]
      %v3691 = vunpack.c.l.b16 %v3659
      %v3692 = vunpack.c.l.b16 %v3660
      %v3693 = vunpack.c.l.b16 %v3661
      %v3694 = vunpack.c.l.b16 %v3662
      %v3695 = vunpack.c.l.b16 %v3663
      %v3696 = vunpack.c.l.b16 %v3664
      %v3697 = vunpack.c.l.b16 %v3665
      %v3698 = vunpack.c.l.b16 %v3666
      %v3699 = vunpack.c.l.b16 %v3667
      %v3700 = vunpack.c.l.b16 %v3668
      %v3701 = vunpack.c.l.b16 %v3669
      %v3702 = vunpack.c.l.b16 %v3670
      %v3703 = vunpack.c.l.b16 %v3671
      %v3704 = vunpack.c.l.b16 %v3672
      %v3705 = vunpack.c.l.b16 %v3673
      %v3706 = vunpack.c.l.b16 %v3674
      %v3707 = vpack.c.b16 %v3692, %v3691
      %v3708 = vpack.c.b16 %v3694, %v3693
      %v3709 = vpack.c.b16 %v3696, %v3695
      %v3710 = vpack.c.b16 %v3698, %v3697
      %v3711 = vpack.c.b16 %v3700, %v3699
      %v3712 = vpack.c.b16 %v3702, %v3701
      %v3713 = vpack.c.b16 %v3704, %v3703
      %v3714 = vpack.c.b16 %v3706, %v3705
      %3723 = vmatpush.bf16.msra.mxu0 %v3714
      %3724 = vmatpush.bf16.msra.mxu0 %v3713
      %3725 = vmatpush.bf16.msra.mxu0 %v3712
      %3726 = vmatpush.bf16.msra.mxu0 %v3711
      %3727 = vmatpush.bf16.msra.mxu0 %v3710
      %3728 = vmatpush.bf16.msra.mxu0 %v3709
      %3729 = vmatpush.bf16.msra.mxu0 %v3708
      %3730 = vmatpush.bf16.msra.mxu0 %v3707
      %3731 = vmatmul.bf16.gmra.mxu0 %v2840
      %v3732 = vpop.f32.mrf.mxu0
      %v3733 = vadd.f32 0.0, %v3732
      %v3734 = vpop.f32.mrf.mxu0
      %v3735 = vadd.f32 0.0, %v3734
      %3736 = vmatmul.bf16.gmra.mxu0 %v2841
      %v3737 = vpop.f32.mrf.mxu0
      %v3738 = vadd.f32 0.0, %v3737
      %v3739 = vpop.f32.mrf.mxu0
      %v3740 = vadd.f32 0.0, %v3739
      %3741 = vmatmul.bf16.gmra.mxu0 %v2842
      %v3742 = vpop.f32.mrf.mxu0
      %v3743 = vadd.f32 0.0, %v3742
      %v3744 = vpop.f32.mrf.mxu0
      %v3745 = vadd.f32 0.0, %v3744
      %3746 = vmatmul.bf16.gmra.mxu0 %v2843
      %v3747 = vpop.f32.mrf.mxu0
      %v3748 = vadd.f32 0.0, %v3747
      %v3749 = vpop.f32.mrf.mxu0
      %v3750 = vadd.f32 0.0, %v3749
      %3751 = vmatmul.bf16.gmra.mxu0 %v2844
      %v3752 = vpop.f32.mrf.mxu0
      %v3753 = vadd.f32 0.0, %v3752
      %v3754 = vpop.f32.mrf.mxu0
      %v3755 = vadd.f32 0.0, %v3754
      %3756 = vmatmul.bf16.gmra.mxu0 %v2845
      %v3757 = vpop.f32.mrf.mxu0
      %v3758 = vadd.f32 0.0, %v3757
      %v3759 = vpop.f32.mrf.mxu0
      %v3760 = vadd.f32 0.0, %v3759
      %3761 = vmatmul.bf16.gmra.mxu0 %v2846
      %v3762 = vpop.f32.mrf.mxu0
      %v3763 = vadd.f32 0.0, %v3762
      %v3764 = vpop.f32.mrf.mxu0
      %v3765 = vadd.f32 0.0, %v3764
      %3766 = vmatmul.bf16.gmra.mxu0 %v2847
      %v3767 = vpop.f32.mrf.mxu0
      %v3768 = vadd.f32 0.0, %v3767
      %v3769 = vpop.f32.mrf.mxu0
      %v3770 = vadd.f32 0.0, %v3769
      %3771 = vmatmul.bf16.gmra.mxu0 %v2848
      %v3772 = vpop.f32.mrf.mxu0
      %v3773 = vadd.f32 0.0, %v3772
      %v3774 = vpop.f32.mrf.mxu0
      %v3775 = vadd.f32 0.0, %v3774
      %3776 = vmatmul.bf16.gmra.mxu0 %v2849
      %v3777 = vpop.f32.mrf.mxu0
      %v3778 = vadd.f32 0.0, %v3777
      %v3779 = vpop.f32.mrf.mxu0
      %v3780 = vadd.f32 0.0, %v3779
      %3781 = vmatmul.bf16.gmra.mxu0 %v2850
      %v3782 = vpop.f32.mrf.mxu0
      %v3783 = vadd.f32 0.0, %v3782
      %v3784 = vpop.f32.mrf.mxu0
      %v3785 = vadd.f32 0.0, %v3784
      %3786 = vmatmul.bf16.gmra.mxu0 %v2851
      %v3787 = vpop.f32.mrf.mxu0
      %v3788 = vadd.f32 0.0, %v3787
      %v3789 = vpop.f32.mrf.mxu0
      %v3790 = vadd.f32 0.0, %v3789
      %3791 = vmatmul.bf16.gmra.mxu0 %v2852
      %v3792 = vpop.f32.mrf.mxu0
      %v3793 = vadd.f32 0.0, %v3792
      %v3794 = vpop.f32.mrf.mxu0
      %v3795 = vadd.f32 0.0, %v3794
      %3796 = vmatmul.bf16.gmra.mxu0 %v2853
      %v3797 = vpop.f32.mrf.mxu0
      %v3798 = vadd.f32 0.0, %v3797
      %v3799 = vpop.f32.mrf.mxu0
      %v3800 = vadd.f32 0.0, %v3799
      %3801 = vmatmul.bf16.gmra.mxu0 %v2854
      %v3802 = vpop.f32.mrf.mxu0
      %v3803 = vadd.f32 0.0, %v3802
      %v3804 = vpop.f32.mrf.mxu0
      %v3805 = vadd.f32 0.0, %v3804
      %3806 = vmatmul.bf16.gmra.mxu0 %v3657
      %v3807 = vpop.f32.mrf.mxu0
      %v3808 = vadd.f32 0.0, %v3807
      %v3809 = vpop.f32.mrf.mxu0
      %v3810 = vadd.f32 0.0, %v3809
      %3811 = vdwg.mxu0
      %v3812 = vadd.f32 %v3615, %v3733
      %v3813 = vadd.f32 %v3616, %v3735
      %v3814 = vadd.f32 %v3617, %v3738
      %v3815 = vadd.f32 %v3618, %v3740
      %v3816 = vadd.f32 %v3619, %v3743
      %v3817 = vadd.f32 %v3620, %v3745
      %v3818 = vadd.f32 %v3621, %v3748
      %v3819 = vadd.f32 %v3622, %v3750
      %v3820 = vadd.f32 %v3623, %v3753
      %v3821 = vadd.f32 %v3624, %v3755
      %v3822 = vadd.f32 %v3625, %v3758
      %v3823 = vadd.f32 %v3626, %v3760
      %v3824 = vadd.f32 %v3627, %v3763
      %v3825 = vadd.f32 %v3628, %v3765
      %v3826 = vadd.f32 %v3629, %v3768
      %v3827 = vadd.f32 %v3630, %v3770
      %v3828 = vadd.f32 %v3631, %v3773
      %v3829 = vadd.f32 %v3632, %v3775
      %v3830 = vadd.f32 %v3633, %v3778
      %v3831 = vadd.f32 %v3634, %v3780
      %v3832 = vadd.f32 %v3635, %v3783
      %v3833 = vadd.f32 %v3636, %v3785
      %v3834 = vadd.f32 %v3637, %v3788
      %v3835 = vadd.f32 %v3638, %v3790
      %v3836 = vadd.f32 %v3639, %v3793
      %v3837 = vadd.f32 %v3640, %v3795
      %v3838 = vadd.f32 %v3641, %v3798
      %v3839 = vadd.f32 %v3642, %v3800
      %v3840 = vadd.f32 %v3643, %v3803
      %v3841 = vadd.f32 %v3644, %v3805
      %v3842 = vadd.f32 %v3645, %v3808
      %v3843 = vadd.f32 %v3646, %v3810
      %v3844 = vrot.slane %v2641, 2
      %v3845 = vrot.slane %v2642, 2
      %v3846 = vsel %vm826, %v3844, %v3845
      %v3847 = vrot.slane %v2643, 2
      %v3848 = vsel %vm826, %v3845, %v3847
      %v3851 = vpack.c.bf16 %v3848, %v3846
      %s3852 = scalar_lea.vmem %s2, 320
      %v3853 = vld [vmem:[%s3852] sm:$0xf]
      %v3854 = vld [vmem:[%s3852 + $0x4] sm:$0xf]
      %v3855 = vld [vmem:[%s3852 + $0x8] sm:$0xf]
      %v3856 = vld [vmem:[%s3852 + $0xc] sm:$0xf]
      %v3857 = vld [vmem:[%s3852 + $0x10] sm:$0xf]
      %v3858 = vld [vmem:[%s3852 + $0x14] sm:$0xf]
      %v3859 = vld [vmem:[%s3852 + $0x18] sm:$0xf]
      %v3860 = vld [vmem:[%s3852 + $0x1c] sm:$0xf]
      %v3861 = vld [vmem:[%s3852 + $0x20] sm:$0xf]
      %v3862 = vld [vmem:[%s3852 + $0x24] sm:$0xf]
      %v3863 = vld [vmem:[%s3852 + $0x28] sm:$0xf]
      %v3864 = vld [vmem:[%s3852 + $0x2c] sm:$0xf]
      %v3865 = vld [vmem:[%s3852 + $0x30] sm:$0xf]
      %v3866 = vld [vmem:[%s3852 + $0x34] sm:$0xf]
      %v3867 = vld [vmem:[%s3852 + $0x38] sm:$0xf]
      %v3868 = vld [vmem:[%s3852 + $0x3c] sm:$0xf]
      %v3885 = vunpack.c.l.b16 %v3853
      %v3886 = vunpack.c.l.b16 %v3854
      %v3887 = vunpack.c.l.b16 %v3855
      %v3888 = vunpack.c.l.b16 %v3856
      %v3889 = vunpack.c.l.b16 %v3857
      %v3890 = vunpack.c.l.b16 %v3858
      %v3891 = vunpack.c.l.b16 %v3859
      %v3892 = vunpack.c.l.b16 %v3860
      %v3893 = vunpack.c.l.b16 %v3861
      %v3894 = vunpack.c.l.b16 %v3862
      %v3895 = vunpack.c.l.b16 %v3863
      %v3896 = vunpack.c.l.b16 %v3864
      %v3897 = vunpack.c.l.b16 %v3865
      %v3898 = vunpack.c.l.b16 %v3866
      %v3899 = vunpack.c.l.b16 %v3867
      %v3900 = vunpack.c.l.b16 %v3868
      %v3901 = vpack.c.b16 %v3886, %v3885
      %v3902 = vpack.c.b16 %v3888, %v3887
      %v3903 = vpack.c.b16 %v3890, %v3889
      %v3904 = vpack.c.b16 %v3892, %v3891
      %v3905 = vpack.c.b16 %v3894, %v3893
      %v3906 = vpack.c.b16 %v3896, %v3895
      %v3907 = vpack.c.b16 %v3898, %v3897
      %v3908 = vpack.c.b16 %v3900, %v3899
      %3917 = vmatpush.bf16.msra.mxu0 %v3908
      %3918 = vmatpush.bf16.msra.mxu0 %v3907
      %3919 = vmatpush.bf16.msra.mxu0 %v3906
      %3920 = vmatpush.bf16.msra.mxu0 %v3905
      %3921 = vmatpush.bf16.msra.mxu0 %v3904
      %3922 = vmatpush.bf16.msra.mxu0 %v3903
      %3923 = vmatpush.bf16.msra.mxu0 %v3902
      %3924 = vmatpush.bf16.msra.mxu0 %v3901
      %3925 = vmatmul.bf16.gmra.mxu0 %v3259
      %v3926 = vpop.f32.mrf.mxu0
      %v3927 = vadd.f32 0.0, %v3926
      %v3928 = vpop.f32.mrf.mxu0
      %v3929 = vadd.f32 0.0, %v3928
      %3930 = vmatmul.bf16.gmra.mxu0 %v3260
      %v3931 = vpop.f32.mrf.mxu0
      %v3932 = vadd.f32 0.0, %v3931
      %v3933 = vpop.f32.mrf.mxu0
      %v3934 = vadd.f32 0.0, %v3933
      %3935 = vmatmul.bf16.gmra.mxu0 %v3261
      %v3936 = vpop.f32.mrf.mxu0
      %v3937 = vadd.f32 0.0, %v3936
      %v3938 = vpop.f32.mrf.mxu0
      %v3939 = vadd.f32 0.0, %v3938
      %3940 = vmatmul.bf16.gmra.mxu0 %v3262
      %v3941 = vpop.f32.mrf.mxu0
      %v3942 = vadd.f32 0.0, %v3941
      %v3943 = vpop.f32.mrf.mxu0
      %v3944 = vadd.f32 0.0, %v3943
      %3945 = vmatmul.bf16.gmra.mxu0 %v3263
      %v3946 = vpop.f32.mrf.mxu0
      %v3947 = vadd.f32 0.0, %v3946
      %v3948 = vpop.f32.mrf.mxu0
      %v3949 = vadd.f32 0.0, %v3948
      %3950 = vmatmul.bf16.gmra.mxu0 %v3264
      %v3951 = vpop.f32.mrf.mxu0
      %v3952 = vadd.f32 0.0, %v3951
      %v3953 = vpop.f32.mrf.mxu0
      %v3954 = vadd.f32 0.0, %v3953
      %3955 = vmatmul.bf16.gmra.mxu0 %v3265
      %v3956 = vpop.f32.mrf.mxu0
      %v3957 = vadd.f32 0.0, %v3956
      %v3958 = vpop.f32.mrf.mxu0
      %v3959 = vadd.f32 0.0, %v3958
      %3960 = vmatmul.bf16.gmra.mxu0 %v3266
      %v3961 = vpop.f32.mrf.mxu0
      %v3962 = vadd.f32 0.0, %v3961
      %v3963 = vpop.f32.mrf.mxu0
      %v3964 = vadd.f32 0.0, %v3963
      %3965 = vmatmul.bf16.gmra.mxu0 %v3267
      %v3966 = vpop.f32.mrf.mxu0
      %v3967 = vadd.f32 0.0, %v3966
      %v3968 = vpop.f32.mrf.mxu0
      %v3969 = vadd.f32 0.0, %v3968
      %3970 = vmatmul.bf16.gmra.mxu0 %v3268
      %v3971 = vpop.f32.mrf.mxu0
      %v3972 = vadd.f32 0.0, %v3971
      %v3973 = vpop.f32.mrf.mxu0
      %v3974 = vadd.f32 0.0, %v3973
      %3975 = vmatmul.bf16.gmra.mxu0 %v3269
      %v3976 = vpop.f32.mrf.mxu0
      %v3977 = vadd.f32 0.0, %v3976
      %v3978 = vpop.f32.mrf.mxu0
      %v3979 = vadd.f32 0.0, %v3978
      %3980 = vmatmul.bf16.gmra.mxu0 %v3270
      %v3981 = vpop.f32.mrf.mxu0
      %v3982 = vadd.f32 0.0, %v3981
      %v3983 = vpop.f32.mrf.mxu0
      %v3984 = vadd.f32 0.0, %v3983
      %3985 = vmatmul.bf16.gmra.mxu0 %v3271
      %v3986 = vpop.f32.mrf.mxu0
      %v3987 = vadd.f32 0.0, %v3986
      %v3988 = vpop.f32.mrf.mxu0
      %v3989 = vadd.f32 0.0, %v3988
      %3990 = vmatmul.bf16.gmra.mxu0 %v3272
      %v3991 = vpop.f32.mrf.mxu0
      %v3992 = vadd.f32 0.0, %v3991
      %v3993 = vpop.f32.mrf.mxu0
      %v3994 = vadd.f32 0.0, %v3993
      %3995 = vmatmul.bf16.gmra.mxu0 %v3273
      %v3996 = vpop.f32.mrf.mxu0
      %v3997 = vadd.f32 0.0, %v3996
      %v3998 = vpop.f32.mrf.mxu0
      %v3999 = vadd.f32 0.0, %v3998
      %4000 = vmatmul.bf16.gmra.mxu0 %v3851
      %v4001 = vpop.f32.mrf.mxu0
      %v4002 = vadd.f32 0.0, %v4001
      %v4003 = vpop.f32.mrf.mxu0
      %v4004 = vadd.f32 0.0, %v4003
      %4005 = vdwg.mxu0
      %v4006 = vadd.f32 %v3812, %v3927
      %v4007 = vadd.f32 %v3813, %v3929
      %v4008 = vadd.f32 %v3814, %v3932
      %v4009 = vadd.f32 %v3815, %v3934
      %v4010 = vadd.f32 %v3816, %v3937
      %v4011 = vadd.f32 %v3817, %v3939
      %v4012 = vadd.f32 %v3818, %v3942
      %v4013 = vadd.f32 %v3819, %v3944
      %v4014 = vadd.f32 %v3820, %v3947
      %v4015 = vadd.f32 %v3821, %v3949
      %v4016 = vadd.f32 %v3822, %v3952
      %v4017 = vadd.f32 %v3823, %v3954
      %v4018 = vadd.f32 %v3824, %v3957
      %v4019 = vadd.f32 %v3825, %v3959
      %v4020 = vadd.f32 %v3826, %v3962
      %v4021 = vadd.f32 %v3827, %v3964
      %v4022 = vadd.f32 %v3828, %v3967
      %v4023 = vadd.f32 %v3829, %v3969
      %v4024 = vadd.f32 %v3830, %v3972
      %v4025 = vadd.f32 %v3831, %v3974
      %v4026 = vadd.f32 %v3832, %v3977
      %v4027 = vadd.f32 %v3833, %v3979
      %v4028 = vadd.f32 %v3834, %v3982
      %v4029 = vadd.f32 %v3835, %v3984
      %v4030 = vadd.f32 %v3836, %v3987
      %v4031 = vadd.f32 %v3837, %v3989
      %v4032 = vadd.f32 %v3838, %v3992
      %v4033 = vadd.f32 %v3839, %v3994
      %v4034 = vadd.f32 %v3840, %v3997
      %v4035 = vadd.f32 %v3841, %v3999
      %v4036 = vadd.f32 %v3842, %v4002
      %v4037 = vadd.f32 %v3843, %v4004
      %v4038 = vpack.c.bf16 %v2645, %v2644
      %s4039 = scalar_lea.vmem %s2, 384
      %v4040 = vld [vmem:[%s4039] sm:$0xf]
      %v4041 = vld [vmem:[%s4039 + $0x4] sm:$0xf]
      %v4042 = vld [vmem:[%s4039 + $0x8] sm:$0xf]
      %v4043 = vld [vmem:[%s4039 + $0xc] sm:$0xf]
      %v4044 = vld [vmem:[%s4039 + $0x10] sm:$0xf]
      %v4045 = vld [vmem:[%s4039 + $0x14] sm:$0xf]
      %v4046 = vld [vmem:[%s4039 + $0x18] sm:$0xf]
      %v4047 = vld [vmem:[%s4039 + $0x1c] sm:$0xf]
      %v4048 = vld [vmem:[%s4039 + $0x20] sm:$0xf]
      %v4049 = vld [vmem:[%s4039 + $0x24] sm:$0xf]
      %v4050 = vld [vmem:[%s4039 + $0x28] sm:$0xf]
      %v4051 = vld [vmem:[%s4039 + $0x2c] sm:$0xf]
      %v4052 = vld [vmem:[%s4039 + $0x30] sm:$0xf]
      %v4053 = vld [vmem:[%s4039 + $0x34] sm:$0xf]
      %v4054 = vld [vmem:[%s4039 + $0x38] sm:$0xf]
      %v4055 = vld [vmem:[%s4039 + $0x3c] sm:$0xf]
      %v4072 = vunpack.c.l.b16 %v4040
      %v4073 = vunpack.c.l.b16 %v4041
      %v4074 = vunpack.c.l.b16 %v4042
      %v4075 = vunpack.c.l.b16 %v4043
      %v4076 = vunpack.c.l.b16 %v4044
      %v4077 = vunpack.c.l.b16 %v4045
      %v4078 = vunpack.c.l.b16 %v4046
      %v4079 = vunpack.c.l.b16 %v4047
      %v4080 = vunpack.c.l.b16 %v4048
      %v4081 = vunpack.c.l.b16 %v4049
      %v4082 = vunpack.c.l.b16 %v4050
      %v4083 = vunpack.c.l.b16 %v4051
      %v4084 = vunpack.c.l.b16 %v4052
      %v4085 = vunpack.c.l.b16 %v4053
      %v4086 = vunpack.c.l.b16 %v4054
      %v4087 = vunpack.c.l.b16 %v4055
      %v4088 = vpack.c.b16 %v4073, %v4072
      %v4089 = vpack.c.b16 %v4075, %v4074
      %v4090 = vpack.c.b16 %v4077, %v4076
      %v4091 = vpack.c.b16 %v4079, %v4078
      %v4092 = vpack.c.b16 %v4081, %v4080
      %v4093 = vpack.c.b16 %v4083, %v4082
      %v4094 = vpack.c.b16 %v4085, %v4084
      %v4095 = vpack.c.b16 %v4087, %v4086
      %4104 = vmatpush.bf16.msra.mxu0 %v4095
      %4105 = vmatpush.bf16.msra.mxu0 %v4094
      %4106 = vmatpush.bf16.msra.mxu0 %v4093
      %4107 = vmatpush.bf16.msra.mxu0 %v4092
      %4108 = vmatpush.bf16.msra.mxu0 %v4091
      %4109 = vmatpush.bf16.msra.mxu0 %v4090
      %4110 = vmatpush.bf16.msra.mxu0 %v4089
      %4111 = vmatpush.bf16.msra.mxu0 %v4088
      %4112 = vmatmul.bf16.gmra.mxu0 %v2649
      %v4113 = vpop.f32.mrf.mxu0
      %v4114 = vadd.f32 0.0, %v4113
      %v4115 = vpop.f32.mrf.mxu0
      %v4116 = vadd.f32 0.0, %v4115
      %4117 = vmatmul.bf16.gmra.mxu0 %v2650
      %v4118 = vpop.f32.mrf.mxu0
      %v4119 = vadd.f32 0.0, %v4118
      %v4120 = vpop.f32.mrf.mxu0
      %v4121 = vadd.f32 0.0, %v4120
      %4122 = vmatmul.bf16.gmra.mxu0 %v2651
      %v4123 = vpop.f32.mrf.mxu0
      %v4124 = vadd.f32 0.0, %v4123
      %v4125 = vpop.f32.mrf.mxu0
      %v4126 = vadd.f32 0.0, %v4125
      %4127 = vmatmul.bf16.gmra.mxu0 %v2652
      %v4128 = vpop.f32.mrf.mxu0
      %v4129 = vadd.f32 0.0, %v4128
      %v4130 = vpop.f32.mrf.mxu0
      %v4131 = vadd.f32 0.0, %v4130
      %4132 = vmatmul.bf16.gmra.mxu0 %v2653
      %v4133 = vpop.f32.mrf.mxu0
      %v4134 = vadd.f32 0.0, %v4133
      %v4135 = vpop.f32.mrf.mxu0
      %v4136 = vadd.f32 0.0, %v4135
      %4137 = vmatmul.bf16.gmra.mxu0 %v2654
      %v4138 = vpop.f32.mrf.mxu0
      %v4139 = vadd.f32 0.0, %v4138
      %v4140 = vpop.f32.mrf.mxu0
      %v4141 = vadd.f32 0.0, %v4140
      %4142 = vmatmul.bf16.gmra.mxu0 %v2655
      %v4143 = vpop.f32.mrf.mxu0
      %v4144 = vadd.f32 0.0, %v4143
      %v4145 = vpop.f32.mrf.mxu0
      %v4146 = vadd.f32 0.0, %v4145
      %4147 = vmatmul.bf16.gmra.mxu0 %v2656
      %v4148 = vpop.f32.mrf.mxu0
      %v4149 = vadd.f32 0.0, %v4148
      %v4150 = vpop.f32.mrf.mxu0
      %v4151 = vadd.f32 0.0, %v4150
      %4152 = vmatmul.bf16.gmra.mxu0 %v2657
      %v4153 = vpop.f32.mrf.mxu0
      %v4154 = vadd.f32 0.0, %v4153
      %v4155 = vpop.f32.mrf.mxu0
      %v4156 = vadd.f32 0.0, %v4155
      %4157 = vmatmul.bf16.gmra.mxu0 %v2658
      %v4158 = vpop.f32.mrf.mxu0
      %v4159 = vadd.f32 0.0, %v4158
      %v4160 = vpop.f32.mrf.mxu0
      %v4161 = vadd.f32 0.0, %v4160
      %4162 = vmatmul.bf16.gmra.mxu0 %v2659
      %v4163 = vpop.f32.mrf.mxu0
      %v4164 = vadd.f32 0.0, %v4163
      %v4165 = vpop.f32.mrf.mxu0
      %v4166 = vadd.f32 0.0, %v4165
      %4167 = vmatmul.bf16.gmra.mxu0 %v2660
      %v4168 = vpop.f32.mrf.mxu0
      %v4169 = vadd.f32 0.0, %v4168
      %v4170 = vpop.f32.mrf.mxu0
      %v4171 = vadd.f32 0.0, %v4170
      %4172 = vmatmul.bf16.gmra.mxu0 %v2661
      %v4173 = vpop.f32.mrf.mxu0
      %v4174 = vadd.f32 0.0, %v4173
      %v4175 = vpop.f32.mrf.mxu0
      %v4176 = vadd.f32 0.0, %v4175
      %4177 = vmatmul.bf16.gmra.mxu0 %v2662
      %v4178 = vpop.f32.mrf.mxu0
      %v4179 = vadd.f32 0.0, %v4178
      %v4180 = vpop.f32.mrf.mxu0
      %v4181 = vadd.f32 0.0, %v4180
      %4182 = vmatmul.bf16.gmra.mxu0 %v3460
      %v4183 = vpop.f32.mrf.mxu0
      %v4184 = vadd.f32 0.0, %v4183
      %v4185 = vpop.f32.mrf.mxu0
      %v4186 = vadd.f32 0.0, %v4185
      %4187 = vmatmul.bf16.gmra.mxu0 %v4038
      %v4188 = vpop.f32.mrf.mxu0
      %v4189 = vadd.f32 0.0, %v4188
      %v4190 = vpop.f32.mrf.mxu0
      %v4191 = vadd.f32 0.0, %v4190
      %4192 = vdwg.mxu0
      %v4193 = vadd.f32 %v4006, %v4114
      %v4194 = vadd.f32 %v4007, %v4116
      %v4195 = vadd.f32 %v4008, %v4119
      %v4196 = vadd.f32 %v4009, %v4121
      %v4197 = vadd.f32 %v4010, %v4124
      %v4198 = vadd.f32 %v4011, %v4126
      %v4199 = vadd.f32 %v4012, %v4129
      %v4200 = vadd.f32 %v4013, %v4131
      %v4201 = vadd.f32 %v4014, %v4134
      %v4202 = vadd.f32 %v4015, %v4136
      %v4203 = vadd.f32 %v4016, %v4139
      %v4204 = vadd.f32 %v4017, %v4141
      %v4205 = vadd.f32 %v4018, %v4144
      %v4206 = vadd.f32 %v4019, %v4146
      %v4207 = vadd.f32 %v4020, %v4149
      %v4208 = vadd.f32 %v4021, %v4151
      %v4209 = vadd.f32 %v4022, %v4154
      %v4210 = vadd.f32 %v4023, %v4156
      %v4211 = vadd.f32 %v4024, %v4159
      %v4212 = vadd.f32 %v4025, %v4161
      %v4213 = vadd.f32 %v4026, %v4164
      %v4214 = vadd.f32 %v4027, %v4166
      %v4215 = vadd.f32 %v4028, %v4169
      %v4216 = vadd.f32 %v4029, %v4171
      %v4217 = vadd.f32 %v4030, %v4174
      %v4218 = vadd.f32 %v4031, %v4176
      %v4219 = vadd.f32 %v4032, %v4179
      %v4220 = vadd.f32 %v4033, %v4181
      %v4221 = vadd.f32 %v4034, %v4184
      %v4222 = vadd.f32 %v4035, %v4186
      %v4223 = vadd.f32 %v4036, %v4189
      %v4224 = vadd.f32 %v4037, %v4191
      %v4228 = vrot.slane %v2644, 1
      %v4229 = vrot.slane %v2645, 1
      %v4230 = vsel %vm406, %v4228, %v4229
      %v4231 = vrot.slane %v2646, 1
      %v4232 = vsel %vm406, %v4229, %v4231
      %v4235 = vpack.c.bf16 %v4232, %v4230
      %s4236 = scalar_lea.vmem %s2, 448
      %v4237 = vld [vmem:[%s4236] sm:$0xf]
      %v4238 = vld [vmem:[%s4236 + $0x4] sm:$0xf]
      %v4239 = vld [vmem:[%s4236 + $0x8] sm:$0xf]
      %v4240 = vld [vmem:[%s4236 + $0xc] sm:$0xf]
      %v4241 = vld [vmem:[%s4236 + $0x10] sm:$0xf]
      %v4242 = vld [vmem:[%s4236 + $0x14] sm:$0xf]
      %v4243 = vld [vmem:[%s4236 + $0x18] sm:$0xf]
      %v4244 = vld [vmem:[%s4236 + $0x1c] sm:$0xf]
      %v4245 = vld [vmem:[%s4236 + $0x20] sm:$0xf]
      %v4246 = vld [vmem:[%s4236 + $0x24] sm:$0xf]
      %v4247 = vld [vmem:[%s4236 + $0x28] sm:$0xf]
      %v4248 = vld [vmem:[%s4236 + $0x2c] sm:$0xf]
      %v4249 = vld [vmem:[%s4236 + $0x30] sm:$0xf]
      %v4250 = vld [vmem:[%s4236 + $0x34] sm:$0xf]
      %v4251 = vld [vmem:[%s4236 + $0x38] sm:$0xf]
      %v4252 = vld [vmem:[%s4236 + $0x3c] sm:$0xf]
      %v4269 = vunpack.c.l.b16 %v4237
      %v4270 = vunpack.c.l.b16 %v4238
      %v4271 = vunpack.c.l.b16 %v4239
      %v4272 = vunpack.c.l.b16 %v4240
      %v4273 = vunpack.c.l.b16 %v4241
      %v4274 = vunpack.c.l.b16 %v4242
      %v4275 = vunpack.c.l.b16 %v4243
      %v4276 = vunpack.c.l.b16 %v4244
      %v4277 = vunpack.c.l.b16 %v4245
      %v4278 = vunpack.c.l.b16 %v4246
      %v4279 = vunpack.c.l.b16 %v4247
      %v4280 = vunpack.c.l.b16 %v4248
      %v4281 = vunpack.c.l.b16 %v4249
      %v4282 = vunpack.c.l.b16 %v4250
      %v4283 = vunpack.c.l.b16 %v4251
      %v4284 = vunpack.c.l.b16 %v4252
      %v4285 = vpack.c.b16 %v4270, %v4269
      %v4286 = vpack.c.b16 %v4272, %v4271
      %v4287 = vpack.c.b16 %v4274, %v4273
      %v4288 = vpack.c.b16 %v4276, %v4275
      %v4289 = vpack.c.b16 %v4278, %v4277
      %v4290 = vpack.c.b16 %v4280, %v4279
      %v4291 = vpack.c.b16 %v4282, %v4281
      %v4292 = vpack.c.b16 %v4284, %v4283
      %4301 = vmatpush.bf16.msra.mxu0 %v4292
      %4302 = vmatpush.bf16.msra.mxu0 %v4291
      %4303 = vmatpush.bf16.msra.mxu0 %v4290
      %4304 = vmatpush.bf16.msra.mxu0 %v4289
      %4305 = vmatpush.bf16.msra.mxu0 %v4288
      %4306 = vmatpush.bf16.msra.mxu0 %v4287
      %4307 = vmatpush.bf16.msra.mxu0 %v4286
      %4308 = vmatpush.bf16.msra.mxu0 %v4285
      %4309 = vmatmul.bf16.gmra.mxu0 %v2841
      %v4310 = vpop.f32.mrf.mxu0
      %v4311 = vadd.f32 0.0, %v4310
      %v4312 = vpop.f32.mrf.mxu0
      %v4313 = vadd.f32 0.0, %v4312
      %4314 = vmatmul.bf16.gmra.mxu0 %v2842
      %v4315 = vpop.f32.mrf.mxu0
      %v4316 = vadd.f32 0.0, %v4315
      %v4317 = vpop.f32.mrf.mxu0
      %v4318 = vadd.f32 0.0, %v4317
      %4319 = vmatmul.bf16.gmra.mxu0 %v2843
      %v4320 = vpop.f32.mrf.mxu0
      %v4321 = vadd.f32 0.0, %v4320
      %v4322 = vpop.f32.mrf.mxu0
      %v4323 = vadd.f32 0.0, %v4322
      %4324 = vmatmul.bf16.gmra.mxu0 %v2844
      %v4325 = vpop.f32.mrf.mxu0
      %v4326 = vadd.f32 0.0, %v4325
      %v4327 = vpop.f32.mrf.mxu0
      %v4328 = vadd.f32 0.0, %v4327
      %4329 = vmatmul.bf16.gmra.mxu0 %v2845
      %v4330 = vpop.f32.mrf.mxu0
      %v4331 = vadd.f32 0.0, %v4330
      %v4332 = vpop.f32.mrf.mxu0
      %v4333 = vadd.f32 0.0, %v4332
      %4334 = vmatmul.bf16.gmra.mxu0 %v2846
      %v4335 = vpop.f32.mrf.mxu0
      %v4336 = vadd.f32 0.0, %v4335
      %v4337 = vpop.f32.mrf.mxu0
      %v4338 = vadd.f32 0.0, %v4337
      %4339 = vmatmul.bf16.gmra.mxu0 %v2847
      %v4340 = vpop.f32.mrf.mxu0
      %v4341 = vadd.f32 0.0, %v4340
      %v4342 = vpop.f32.mrf.mxu0
      %v4343 = vadd.f32 0.0, %v4342
      %4344 = vmatmul.bf16.gmra.mxu0 %v2848
      %v4345 = vpop.f32.mrf.mxu0
      %v4346 = vadd.f32 0.0, %v4345
      %v4347 = vpop.f32.mrf.mxu0
      %v4348 = vadd.f32 0.0, %v4347
      %4349 = vmatmul.bf16.gmra.mxu0 %v2849
      %v4350 = vpop.f32.mrf.mxu0
      %v4351 = vadd.f32 0.0, %v4350
      %v4352 = vpop.f32.mrf.mxu0
      %v4353 = vadd.f32 0.0, %v4352
      %4354 = vmatmul.bf16.gmra.mxu0 %v2850
      %v4355 = vpop.f32.mrf.mxu0
      %v4356 = vadd.f32 0.0, %v4355
      %v4357 = vpop.f32.mrf.mxu0
      %v4358 = vadd.f32 0.0, %v4357
      %4359 = vmatmul.bf16.gmra.mxu0 %v2851
      %v4360 = vpop.f32.mrf.mxu0
      %v4361 = vadd.f32 0.0, %v4360
      %v4362 = vpop.f32.mrf.mxu0
      %v4363 = vadd.f32 0.0, %v4362
      %4364 = vmatmul.bf16.gmra.mxu0 %v2852
      %v4365 = vpop.f32.mrf.mxu0
      %v4366 = vadd.f32 0.0, %v4365
      %v4367 = vpop.f32.mrf.mxu0
      %v4368 = vadd.f32 0.0, %v4367
      %4369 = vmatmul.bf16.gmra.mxu0 %v2853
      %v4370 = vpop.f32.mrf.mxu0
      %v4371 = vadd.f32 0.0, %v4370
      %v4372 = vpop.f32.mrf.mxu0
      %v4373 = vadd.f32 0.0, %v4372
      %4374 = vmatmul.bf16.gmra.mxu0 %v2854
      %v4375 = vpop.f32.mrf.mxu0
      %v4376 = vadd.f32 0.0, %v4375
      %v4377 = vpop.f32.mrf.mxu0
      %v4378 = vadd.f32 0.0, %v4377
      %4379 = vmatmul.bf16.gmra.mxu0 %v3657
      %v4380 = vpop.f32.mrf.mxu0
      %v4381 = vadd.f32 0.0, %v4380
      %v4382 = vpop.f32.mrf.mxu0
      %v4383 = vadd.f32 0.0, %v4382
      %4384 = vmatmul.bf16.gmra.mxu0 %v4235
      %v4385 = vpop.f32.mrf.mxu0
      %v4386 = vadd.f32 0.0, %v4385
      %v4387 = vpop.f32.mrf.mxu0
      %v4388 = vadd.f32 0.0, %v4387
      %4389 = vdwg.mxu0
      %v4390 = vadd.f32 %v4193, %v4311
      %v4391 = vadd.f32 %v4194, %v4313
      %v4392 = vadd.f32 %v4195, %v4316
      %v4393 = vadd.f32 %v4196, %v4318
      %v4394 = vadd.f32 %v4197, %v4321
      %v4395 = vadd.f32 %v4198, %v4323
      %v4396 = vadd.f32 %v4199, %v4326
      %v4397 = vadd.f32 %v4200, %v4328
      %v4398 = vadd.f32 %v4201, %v4331
      %v4399 = vadd.f32 %v4202, %v4333
      %v4400 = vadd.f32 %v4203, %v4336
      %v4401 = vadd.f32 %v4204, %v4338
      %v4402 = vadd.f32 %v4205, %v4341
      %v4403 = vadd.f32 %v4206, %v4343
      %v4404 = vadd.f32 %v4207, %v4346
      %v4405 = vadd.f32 %v4208, %v4348
      %v4406 = vadd.f32 %v4209, %v4351
      %v4407 = vadd.f32 %v4210, %v4353
      %v4408 = vadd.f32 %v4211, %v4356
      %v4409 = vadd.f32 %v4212, %v4358
      %v4410 = vadd.f32 %v4213, %v4361
      %v4411 = vadd.f32 %v4214, %v4363
      %v4412 = vadd.f32 %v4215, %v4366
      %v4413 = vadd.f32 %v4216, %v4368
      %v4414 = vadd.f32 %v4217, %v4371
      %v4415 = vadd.f32 %v4218, %v4373
      %v4416 = vadd.f32 %v4219, %v4376
      %v4417 = vadd.f32 %v4220, %v4378
      %v4418 = vadd.f32 %v4221, %v4381
      %v4419 = vadd.f32 %v4222, %v4383
      %v4420 = vadd.f32 %v4223, %v4386
      %v4421 = vadd.f32 %v4224, %v4388
      %v4422 = vrot.slane %v2644, 2
      %v4423 = vrot.slane %v2645, 2
      %v4424 = vsel %vm826, %v4422, %v4423
      %v4425 = vrot.slane %v2646, 2
      %v4426 = vsel %vm826, %v4423, %v4425
      %v4429 = vpack.c.bf16 %v4426, %v4424
      %s4430 = scalar_lea.vmem %s2, 512
      %v4431 = vld [vmem:[%s4430] sm:$0xf]
      %v4432 = vld [vmem:[%s4430 + $0x4] sm:$0xf]
      %v4433 = vld [vmem:[%s4430 + $0x8] sm:$0xf]
      %v4434 = vld [vmem:[%s4430 + $0xc] sm:$0xf]
      %v4435 = vld [vmem:[%s4430 + $0x10] sm:$0xf]
      %v4436 = vld [vmem:[%s4430 + $0x14] sm:$0xf]
      %v4437 = vld [vmem:[%s4430 + $0x18] sm:$0xf]
      %v4438 = vld [vmem:[%s4430 + $0x1c] sm:$0xf]
      %v4439 = vld [vmem:[%s4430 + $0x20] sm:$0xf]
      %v4440 = vld [vmem:[%s4430 + $0x24] sm:$0xf]
      %v4441 = vld [vmem:[%s4430 + $0x28] sm:$0xf]
      %v4442 = vld [vmem:[%s4430 + $0x2c] sm:$0xf]
      %v4443 = vld [vmem:[%s4430 + $0x30] sm:$0xf]
      %v4444 = vld [vmem:[%s4430 + $0x34] sm:$0xf]
      %v4445 = vld [vmem:[%s4430 + $0x38] sm:$0xf]
      %v4446 = vld [vmem:[%s4430 + $0x3c] sm:$0xf]
      %v4463 = vunpack.c.l.b16 %v4431
      %v4464 = vunpack.c.l.b16 %v4432
      %v4465 = vunpack.c.l.b16 %v4433
      %v4466 = vunpack.c.l.b16 %v4434
      %v4467 = vunpack.c.l.b16 %v4435
      %v4468 = vunpack.c.l.b16 %v4436
      %v4469 = vunpack.c.l.b16 %v4437
      %v4470 = vunpack.c.l.b16 %v4438
      %v4471 = vunpack.c.l.b16 %v4439
      %v4472 = vunpack.c.l.b16 %v4440
      %v4473 = vunpack.c.l.b16 %v4441
      %v4474 = vunpack.c.l.b16 %v4442
      %v4475 = vunpack.c.l.b16 %v4443
      %v4476 = vunpack.c.l.b16 %v4444
      %v4477 = vunpack.c.l.b16 %v4445
      %v4478 = vunpack.c.l.b16 %v4446
      %v4479 = vpack.c.b16 %v4464, %v4463
      %v4480 = vpack.c.b16 %v4466, %v4465
      %v4481 = vpack.c.b16 %v4468, %v4467
      %v4482 = vpack.c.b16 %v4470, %v4469
      %v4483 = vpack.c.b16 %v4472, %v4471
      %v4484 = vpack.c.b16 %v4474, %v4473
      %v4485 = vpack.c.b16 %v4476, %v4475
      %v4486 = vpack.c.b16 %v4478, %v4477
      %4495 = vmatpush.bf16.msra.mxu0 %v4486
      %4496 = vmatpush.bf16.msra.mxu0 %v4485
      %4497 = vmatpush.bf16.msra.mxu0 %v4484
      %4498 = vmatpush.bf16.msra.mxu0 %v4483
      %4499 = vmatpush.bf16.msra.mxu0 %v4482
      %4500 = vmatpush.bf16.msra.mxu0 %v4481
      %4501 = vmatpush.bf16.msra.mxu0 %v4480
      %4502 = vmatpush.bf16.msra.mxu0 %v4479
      %4503 = vmatmul.bf16.gmra.mxu0 %v3260
      %v4504 = vpop.f32.mrf.mxu0
      %v4505 = vadd.f32 0.0, %v4504
      %v4506 = vpop.f32.mrf.mxu0
      %v4507 = vadd.f32 0.0, %v4506
      %4508 = vmatmul.bf16.gmra.mxu0 %v3261
      %v4509 = vpop.f32.mrf.mxu0
      %v4510 = vadd.f32 0.0, %v4509
      %v4511 = vpop.f32.mrf.mxu0
      %v4512 = vadd.f32 0.0, %v4511
      %4513 = vmatmul.bf16.gmra.mxu0 %v3262
      %v4514 = vpop.f32.mrf.mxu0
      %v4515 = vadd.f32 0.0, %v4514
      %v4516 = vpop.f32.mrf.mxu0
      %v4517 = vadd.f32 0.0, %v4516
      %4518 = vmatmul.bf16.gmra.mxu0 %v3263
      %v4519 = vpop.f32.mrf.mxu0
      %v4520 = vadd.f32 0.0, %v4519
      %v4521 = vpop.f32.mrf.mxu0
      %v4522 = vadd.f32 0.0, %v4521
      %4523 = vmatmul.bf16.gmra.mxu0 %v3264
      %v4524 = vpop.f32.mrf.mxu0
      %v4525 = vadd.f32 0.0, %v4524
      %v4526 = vpop.f32.mrf.mxu0
      %v4527 = vadd.f32 0.0, %v4526
      %4528 = vmatmul.bf16.gmra.mxu0 %v3265
      %v4529 = vpop.f32.mrf.mxu0
      %v4530 = vadd.f32 0.0, %v4529
      %v4531 = vpop.f32.mrf.mxu0
      %v4532 = vadd.f32 0.0, %v4531
      %4533 = vmatmul.bf16.gmra.mxu0 %v3266
      %v4534 = vpop.f32.mrf.mxu0
      %v4535 = vadd.f32 0.0, %v4534
      %v4536 = vpop.f32.mrf.mxu0
      %v4537 = vadd.f32 0.0, %v4536
      %4538 = vmatmul.bf16.gmra.mxu0 %v3267
      %v4539 = vpop.f32.mrf.mxu0
      %v4540 = vadd.f32 0.0, %v4539
      %v4541 = vpop.f32.mrf.mxu0
      %v4542 = vadd.f32 0.0, %v4541
      %4543 = vmatmul.bf16.gmra.mxu0 %v3268
      %v4544 = vpop.f32.mrf.mxu0
      %v4545 = vadd.f32 0.0, %v4544
      %v4546 = vpop.f32.mrf.mxu0
      %v4547 = vadd.f32 0.0, %v4546
      %4548 = vmatmul.bf16.gmra.mxu0 %v3269
      %v4549 = vpop.f32.mrf.mxu0
      %v4550 = vadd.f32 0.0, %v4549
      %v4551 = vpop.f32.mrf.mxu0
      %v4552 = vadd.f32 0.0, %v4551
      %4553 = vmatmul.bf16.gmra.mxu0 %v3270
      %v4554 = vpop.f32.mrf.mxu0
      %v4555 = vadd.f32 0.0, %v4554
      %v4556 = vpop.f32.mrf.mxu0
      %v4557 = vadd.f32 0.0, %v4556
      %4558 = vmatmul.bf16.gmra.mxu0 %v3271
      %v4559 = vpop.f32.mrf.mxu0
      %v4560 = vadd.f32 0.0, %v4559
      %v4561 = vpop.f32.mrf.mxu0
      %v4562 = vadd.f32 0.0, %v4561
      %4563 = vmatmul.bf16.gmra.mxu0 %v3272
      %v4564 = vpop.f32.mrf.mxu0
      %v4565 = vadd.f32 0.0, %v4564
      %v4566 = vpop.f32.mrf.mxu0
      %v4567 = vadd.f32 0.0, %v4566
      %4568 = vmatmul.bf16.gmra.mxu0 %v3273
      %v4569 = vpop.f32.mrf.mxu0
      %v4570 = vadd.f32 0.0, %v4569
      %v4571 = vpop.f32.mrf.mxu0
      %v4572 = vadd.f32 0.0, %v4571
      %4573 = vmatmul.bf16.gmra.mxu0 %v3851
      %v4574 = vpop.f32.mrf.mxu0
      %v4575 = vadd.f32 0.0, %v4574
      %v4576 = vpop.f32.mrf.mxu0
      %v4577 = vadd.f32 0.0, %v4576
      %4578 = vmatmul.bf16.gmra.mxu0 %v4429
      %v4579 = vpop.f32.mrf.mxu0
      %v4580 = vadd.f32 0.0, %v4579
      %v4581 = vpop.f32.mrf.mxu0
      %v4582 = vadd.f32 0.0, %v4581
      %4583 = vdwg.mxu0
      %v4584 = vadd.f32 %v4390, %v4505
      %v4585 = vadd.f32 %v4391, %v4507
      %v4586 = vadd.f32 %v4392, %v4510
      %v4587 = vadd.f32 %v4393, %v4512
      %v4588 = vadd.f32 %v4394, %v4515
      %v4589 = vadd.f32 %v4395, %v4517
      %v4590 = vadd.f32 %v4396, %v4520
      %v4591 = vadd.f32 %v4397, %v4522
      %v4592 = vadd.f32 %v4398, %v4525
      %v4593 = vadd.f32 %v4399, %v4527
      %v4594 = vadd.f32 %v4400, %v4530
      %v4595 = vadd.f32 %v4401, %v4532
      %v4596 = vadd.f32 %v4402, %v4535
      %v4597 = vadd.f32 %v4403, %v4537
      %v4598 = vadd.f32 %v4404, %v4540
      %v4599 = vadd.f32 %v4405, %v4542
      %v4600 = vadd.f32 %v4406, %v4545
      %v4601 = vadd.f32 %v4407, %v4547
      %v4602 = vadd.f32 %v4408, %v4550
      %v4603 = vadd.f32 %v4409, %v4552
      %v4604 = vadd.f32 %v4410, %v4555
      %v4605 = vadd.f32 %v4411, %v4557
      %v4606 = vadd.f32 %v4412, %v4560
      %v4607 = vadd.f32 %v4413, %v4562
      %v4608 = vadd.f32 %v4414, %v4565
      %v4609 = vadd.f32 %v4415, %v4567
      %v4610 = vadd.f32 %v4416, %v4570
      %v4611 = vadd.f32 %v4417, %v4572
      %v4612 = vadd.f32 %v4418, %v4575
      %v4613 = vadd.f32 %v4419, %v4577
      %v4614 = vadd.f32 %v4420, %v4580
      %v4615 = vadd.f32 %v4421, %v4582
      %v4616 = vadd.f32 %v4584, %v4585
      %v4617 = vadd.f32 %v4616, %v4586
      %v4618 = vadd.f32 %v4617, %v4587
      %v4619 = vadd.f32 %v4618, %v4588
      %v4620 = vadd.f32 %v4619, %v4589
      %v4621 = vadd.f32 %v4620, %v4590
      %v4622 = vadd.f32 %v4621, %v4591
      %v4623 = vadd.f32 %v4622, %v4592
      %v4624 = vadd.f32 %v4623, %v4593
      %v4625 = vadd.f32 %v4624, %v4594
      %v4626 = vadd.f32 %v4625, %v4595
      %v4627 = vadd.f32 %v4626, %v4596
      %v4628 = vadd.f32 %v4627, %v4597
      %v4629 = vadd.f32 %v4628, %v4598
      %v4630 = vadd.f32 %v4629, %v4599
      %v4631 = vadd.f32 %v4630, %v4600
      %v4632 = vadd.f32 %v4631, %v4601
      %v4633 = vadd.f32 %v4632, %v4602
      %v4634 = vadd.f32 %v4633, %v4603
      %v4635 = vadd.f32 %v4634, %v4604
      %v4636 = vadd.f32 %v4635, %v4605
      %v4637 = vadd.f32 %v4636, %v4606
      %v4638 = vadd.f32 %v4637, %v4607
      %v4639 = vadd.f32 %v4638, %v4608
      %v4640 = vadd.f32 %v4639, %v4609
      %v4641 = vadd.f32 %v4640, %v4610
      %v4642 = vadd.f32 %v4641, %v4611
      %v4643 = vadd.f32 %v4642, %v4612
      %v4644 = vadd.f32 %v4643, %v4613
      %v4645 = vadd.f32 %v4644, %v4614
      %v4646 = vadd.f32 %v4645, %v4615
      %v4647 = vrot.slane %v4646, 4
      %v4648 = vadd.f32 %v4646, %v4647
      %v4649 = vrot.slane %v4648, 2
      %v4650 = vadd.f32 %v4648, %v4649
      %v4651 = vrot.slane %v4650, 1
      %v4652 = vadd.f32 %v4650, %v4651
      %v4653 = vmul.f32 %v4652, %v2340
      %v4654 = vsub.f32 %v4584, %v4653
      %v4655 = vsub.f32 %v4585, %v4653
      %v4656 = vsub.f32 %v4586, %v4653
      %v4657 = vsub.f32 %v4587, %v4653
      %v4658 = vsub.f32 %v4588, %v4653
      %v4659 = vsub.f32 %v4589, %v4653
      %v4660 = vsub.f32 %v4590, %v4653
      %v4661 = vsub.f32 %v4591, %v4653
      %v4662 = vsub.f32 %v4592, %v4653
      %v4663 = vsub.f32 %v4593, %v4653
      %v4664 = vsub.f32 %v4594, %v4653
      %v4665 = vsub.f32 %v4595, %v4653
      %v4666 = vsub.f32 %v4596, %v4653
      %v4667 = vsub.f32 %v4597, %v4653
      %v4668 = vsub.f32 %v4598, %v4653
      %v4669 = vsub.f32 %v4599, %v4653
      %v4670 = vsub.f32 %v4600, %v4653
      %v4671 = vsub.f32 %v4601, %v4653
      %v4672 = vsub.f32 %v4602, %v4653
      %v4673 = vsub.f32 %v4603, %v4653
      %v4674 = vsub.f32 %v4604, %v4653
      %v4675 = vsub.f32 %v4605, %v4653
      %v4676 = vsub.f32 %v4606, %v4653
      %v4677 = vsub.f32 %v4607, %v4653
      %v4678 = vsub.f32 %v4608, %v4653
      %v4679 = vsub.f32 %v4609, %v4653
      %v4680 = vsub.f32 %v4610, %v4653
      %v4681 = vsub.f32 %v4611, %v4653
      %v4682 = vsub.f32 %v4612, %v4653
      %v4683 = vsub.f32 %v4613, %v4653
      %v4684 = vsub.f32 %v4614, %v4653
      %v4685 = vsub.f32 %v4615, %v4653
      %v4686 = vmul.f32 %v4654, %v4654
      %v4687 = vmul.f32 %v4655, %v4655
      %v4688 = vmul.f32 %v4656, %v4656
      %v4689 = vmul.f32 %v4657, %v4657
      %v4690 = vmul.f32 %v4658, %v4658
      %v4691 = vmul.f32 %v4659, %v4659
      %v4692 = vmul.f32 %v4660, %v4660
      %v4693 = vmul.f32 %v4661, %v4661
      %v4694 = vmul.f32 %v4662, %v4662
      %v4695 = vmul.f32 %v4663, %v4663
      %v4696 = vmul.f32 %v4664, %v4664
      %v4697 = vmul.f32 %v4665, %v4665
      %v4698 = vmul.f32 %v4666, %v4666
      %v4699 = vmul.f32 %v4667, %v4667
      %v4700 = vmul.f32 %v4668, %v4668
      %v4701 = vmul.f32 %v4669, %v4669
      %v4702 = vmul.f32 %v4670, %v4670
      %v4703 = vmul.f32 %v4671, %v4671
      %v4704 = vmul.f32 %v4672, %v4672
      %v4705 = vmul.f32 %v4673, %v4673
      %v4706 = vmul.f32 %v4674, %v4674
      %v4707 = vmul.f32 %v4675, %v4675
      %v4708 = vmul.f32 %v4676, %v4676
      %v4709 = vmul.f32 %v4677, %v4677
      %v4710 = vmul.f32 %v4678, %v4678
      %v4711 = vmul.f32 %v4679, %v4679
      %v4712 = vmul.f32 %v4680, %v4680
      %v4713 = vmul.f32 %v4681, %v4681
      %v4714 = vmul.f32 %v4682, %v4682
      %v4715 = vmul.f32 %v4683, %v4683
      %v4716 = vmul.f32 %v4684, %v4684
      %v4717 = vmul.f32 %v4685, %v4685
      %v4718 = vadd.f32 %v4686, %v4687
      %v4719 = vadd.f32 %v4718, %v4688
      %v4720 = vadd.f32 %v4719, %v4689
      %v4721 = vadd.f32 %v4720, %v4690
      %v4722 = vadd.f32 %v4721, %v4691
      %v4723 = vadd.f32 %v4722, %v4692
      %v4724 = vadd.f32 %v4723, %v4693
      %v4725 = vadd.f32 %v4724, %v4694
      %v4726 = vadd.f32 %v4725, %v4695
      %v4727 = vadd.f32 %v4726, %v4696
      %v4728 = vadd.f32 %v4727, %v4697
      %v4729 = vadd.f32 %v4728, %v4698
      %v4730 = vadd.f32 %v4729, %v4699
      %v4731 = vadd.f32 %v4730, %v4700
      %v4732 = vadd.f32 %v4731, %v4701
      %v4733 = vadd.f32 %v4732, %v4702
      %v4734 = vadd.f32 %v4733, %v4703
      %v4735 = vadd.f32 %v4734, %v4704
      %v4736 = vadd.f32 %v4735, %v4705
      %v4737 = vadd.f32 %v4736, %v4706
      %v4738 = vadd.f32 %v4737, %v4707
      %v4739 = vadd.f32 %v4738, %v4708
      %v4740 = vadd.f32 %v4739, %v4709
      %v4741 = vadd.f32 %v4740, %v4710
      %v4742 = vadd.f32 %v4741, %v4711
      %v4743 = vadd.f32 %v4742, %v4712
      %v4744 = vadd.f32 %v4743, %v4713
      %v4745 = vadd.f32 %v4744, %v4714
      %v4746 = vadd.f32 %v4745, %v4715
      %v4747 = vadd.f32 %v4746, %v4716
      %v4748 = vadd.f32 %v4747, %v4717
      %v4749 = vrot.slane %v4748, 4
      %v4750 = vadd.f32 %v4748, %v4749
      %v4751 = vrot.slane %v4750, 2
      %v4752 = vadd.f32 %v4750, %v4751
      %v4753 = vrot.slane %v4752, 1
      %v4754 = vadd.f32 %v4752, %v4753
      %v4755 = vmul.f32 %v4754, %v2340
      %v4756 = vadd.f32 %v4755, 1e-05
      %v4757 = vrsqrt.pop %v4756
      %v4758 = vmul.f32 %v4757, %v4756
      %v4759 = vmul.f32 %v4758, %v4757
      %v4760 = vmul.f32 0.5, %v4759
      %v4761 = vsub.f32 1.5, %v4760
      %v4762 = vmul.f32 %v4757, %v4761
      %vm4763 = vweird.f32 %v4756
      %vm4764 = vweird.f32 %v4757
      %vm4765 = vmor %vm4763, %vm4764
      %v4766 = vsel %vm4765, %v4757, %v4762
      %v4767 = vmul.f32 %v4654, %v4766
      %v4768 = vmul.f32 %v4655, %v4766
      %v4769 = vmul.f32 %v4656, %v4766
      %v4770 = vmul.f32 %v4657, %v4766
      %v4771 = vmul.f32 %v4658, %v4766
      %v4772 = vmul.f32 %v4659, %v4766
      %v4773 = vmul.f32 %v4660, %v4766
      %v4774 = vmul.f32 %v4661, %v4766
      %v4775 = vmul.f32 %v4662, %v4766
      %v4776 = vmul.f32 %v4663, %v4766
      %v4777 = vmul.f32 %v4664, %v4766
      %v4778 = vmul.f32 %v4665, %v4766
      %v4779 = vmul.f32 %v4666, %v4766
      %v4780 = vmul.f32 %v4667, %v4766
      %v4781 = vmul.f32 %v4668, %v4766
      %v4782 = vmul.f32 %v4669, %v4766
      %v4783 = vmul.f32 %v4670, %v4766
      %v4784 = vmul.f32 %v4671, %v4766
      %v4785 = vmul.f32 %v4672, %v4766
      %v4786 = vmul.f32 %v4673, %v4766
      %v4787 = vmul.f32 %v4674, %v4766
      %v4788 = vmul.f32 %v4675, %v4766
      %v4789 = vmul.f32 %v4676, %v4766
      %v4790 = vmul.f32 %v4677, %v4766
      %v4791 = vmul.f32 %v4678, %v4766
      %v4792 = vmul.f32 %v4679, %v4766
      %v4793 = vmul.f32 %v4680, %v4766
      %v4794 = vmul.f32 %v4681, %v4766
      %v4795 = vmul.f32 %v4682, %v4766
      %v4796 = vmul.f32 %v4683, %v4766
      %v4797 = vmul.f32 %v4684, %v4766
      %v4798 = vmul.f32 %v4685, %v4766
      %4799 = vst [vmem:[%s217] sm:$0xff] %v4767
      %4800 = vst [vmem:[%s217 + $0x8] sm:$0xff] %v4768
      %4801 = vst [vmem:[%s217 + $0x10] sm:$0xff] %v4769
      %4802 = vst [vmem:[%s217 + $0x18] sm:$0xff] %v4770
      %4803 = vst [vmem:[%s217 + $0x20] sm:$0xff] %v4771
      %4804 = vst [vmem:[%s217 + $0x28] sm:$0xff] %v4772
      %4805 = vst [vmem:[%s217 + $0x30] sm:$0xff] %v4773
      %4806 = vst [vmem:[%s217 + $0x38] sm:$0xff] %v4774
      %4807 = vst [vmem:[%s217 + $0x40] sm:$0xff] %v4775
      %4808 = vst [vmem:[%s217 + $0x48] sm:$0xff] %v4776
      %4809 = vst [vmem:[%s217 + $0x50] sm:$0xff] %v4777
      %4810 = vst [vmem:[%s217 + $0x58] sm:$0xff] %v4778
      %4811 = vst [vmem:[%s217 + $0x60] sm:$0xff] %v4779
      %4812 = vst [vmem:[%s217 + $0x68] sm:$0xff] %v4780
      %4813 = vst [vmem:[%s217 + $0x70] sm:$0xff] %v4781
      %4814 = vst [vmem:[%s217 + $0x78] sm:$0xff] %v4782
      %4815 = vst [vmem:[%s217 + $0x80] sm:$0xff] %v4783
      %4816 = vst [vmem:[%s217 + $0x88] sm:$0xff] %v4784
      %4817 = vst [vmem:[%s217 + $0x90] sm:$0xff] %v4785
      %4818 = vst [vmem:[%s217 + $0x98] sm:$0xff] %v4786
      %4819 = vst [vmem:[%s217 + $0xa0] sm:$0xff] %v4787
      %4820 = vst [vmem:[%s217 + $0xa8] sm:$0xff] %v4788
      %4821 = vst [vmem:[%s217 + $0xb0] sm:$0xff] %v4789
      %4822 = vst [vmem:[%s217 + $0xb8] sm:$0xff] %v4790
      %4823 = vst [vmem:[%s217 + $0xc0] sm:$0xff] %v4791
      %4824 = vst [vmem:[%s217 + $0xc8] sm:$0xff] %v4792
      %4825 = vst [vmem:[%s217 + $0xd0] sm:$0xff] %v4793
      %4826 = vst [vmem:[%s217 + $0xd8] sm:$0xff] %v4794
      %4827 = vst [vmem:[%s217 + $0xe0] sm:$0xff] %v4795
      %4828 = vst [vmem:[%s217 + $0xe8] sm:$0xff] %v4796
      %4829 = vst [vmem:[%s217 + $0xf0] sm:$0xff] %v4797
      %4830 = vst [vmem:[%s217 + $0xf8] sm:$0xff] %v4798
      %v4831 = vld [vmem:[%s212] sm:$0xff]
      %v4832 = vld [vmem:[%s212 + $0x8] sm:$0xff]
      %v4833 = vld [vmem:[%s212 + $0x10] sm:$0xff]
      %v4834 = vld [vmem:[%s212 + $0x18] sm:$0xff]
      %v4835 = vld [vmem:[%s212 + $0x20] sm:$0xff]
      %v4836 = vld [vmem:[%s212 + $0x28] sm:$0xff]
      %v4837 = vld [vmem:[%s212 + $0x30] sm:$0xff]
      %v4838 = vld [vmem:[%s212 + $0x38] sm:$0xff]
      %v4839 = vld [vmem:[%s212 + $0x40] sm:$0xff]
      %v4840 = vld [vmem:[%s212 + $0x48] sm:$0xff]
      %v4841 = vld [vmem:[%s212 + $0x50] sm:$0xff]
      %v4842 = vld [vmem:[%s212 + $0x58] sm:$0xff]
      %v4843 = vld [vmem:[%s212 + $0x60] sm:$0xff]
      %v4844 = vld [vmem:[%s212 + $0x68] sm:$0xff]
      %v4845 = vld [vmem:[%s212 + $0x70] sm:$0xff]
      %v4846 = vld [vmem:[%s212 + $0x78] sm:$0xff]
      %v4847 = vld [vmem:[%s212 + $0x80] sm:$0xff]
      %v4848 = vld [vmem:[%s212 + $0x88] sm:$0xff]
      %v4849 = vld [vmem:[%s212 + $0x90] sm:$0xff]
      %v4850 = vld [vmem:[%s212 + $0x98] sm:$0xff]
      %v4851 = vld [vmem:[%s212 + $0xa0] sm:$0xff]
      %v4852 = vld [vmem:[%s212 + $0xa8] sm:$0xff]
      %v4853 = vld [vmem:[%s212 + $0xb0] sm:$0xff]
      %v4854 = vld [vmem:[%s212 + $0xb8] sm:$0xff]
      %v4855 = vld [vmem:[%s212 + $0xc0] sm:$0xff]
      %v4856 = vld [vmem:[%s212 + $0xc8] sm:$0xff]
      %v4857 = vld [vmem:[%s212 + $0xd0] sm:$0xff]
      %v4858 = vld [vmem:[%s212 + $0xd8] sm:$0xff]
      %v4859 = vld [vmem:[%s212 + $0xe0] sm:$0xff]
      %v4860 = vld [vmem:[%s212 + $0xe8] sm:$0xff]
      %v4861 = vld [vmem:[%s212 + $0xf0] sm:$0xff]
      %v4862 = vld [vmem:[%s212 + $0xf8] sm:$0xff]
      %v4863 = vadd.f32 %v4767, %v4831
      %v4864 = vadd.f32 %v4768, %v4832
      %v4865 = vadd.f32 %v4769, %v4833
      %v4866 = vadd.f32 %v4770, %v4834
      %v4867 = vadd.f32 %v4771, %v4835
      %v4868 = vadd.f32 %v4772, %v4836
      %v4869 = vadd.f32 %v4773, %v4837
      %v4870 = vadd.f32 %v4774, %v4838
      %v4871 = vadd.f32 %v4775, %v4839
      %v4872 = vadd.f32 %v4776, %v4840
      %v4873 = vadd.f32 %v4777, %v4841
      %v4874 = vadd.f32 %v4778, %v4842
      %v4875 = vadd.f32 %v4779, %v4843
      %v4876 = vadd.f32 %v4780, %v4844
      %v4877 = vadd.f32 %v4781, %v4845
      %v4878 = vadd.f32 %v4782, %v4846
      %v4879 = vadd.f32 %v4783, %v4847
      %v4880 = vadd.f32 %v4784, %v4848
      %v4881 = vadd.f32 %v4785, %v4849
      %v4882 = vadd.f32 %v4786, %v4850
      %v4883 = vadd.f32 %v4787, %v4851
      %v4884 = vadd.f32 %v4788, %v4852
      %v4885 = vadd.f32 %v4789, %v4853
      %v4886 = vadd.f32 %v4790, %v4854
      %v4887 = vadd.f32 %v4791, %v4855
      %v4888 = vadd.f32 %v4792, %v4856
      %v4889 = vadd.f32 %v4793, %v4857
      %v4890 = vadd.f32 %v4794, %v4858
      %v4891 = vadd.f32 %v4795, %v4859
      %v4892 = vadd.f32 %v4796, %v4860
      %v4893 = vadd.f32 %v4797, %v4861
      %v4894 = vadd.f32 %v4798, %v4862
      %vm4895 = vcmask 31744
      %4896 = vst.msk [vmem:[%s217] sm:$0xff] %vm4895, %v4863
      %4897 = vst.msk [vmem:[%s217 + $0x8] sm:$0xff] %vm4895, %v4864
      %4898 = vst.msk [vmem:[%s217 + $0x10] sm:$0xff] %vm4895, %v4865
      %4899 = vst.msk [vmem:[%s217 + $0x18] sm:$0xff] %vm4895, %v4866
      %4900 = vst.msk [vmem:[%s217 + $0x20] sm:$0xff] %vm4895, %v4867
      %4901 = vst.msk [vmem:[%s217 + $0x28] sm:$0xff] %vm4895, %v4868
      %4902 = vst.msk [vmem:[%s217 + $0x30] sm:$0xff] %vm4895, %v4869
      %4903 = vst.msk [vmem:[%s217 + $0x38] sm:$0xff] %vm4895, %v4870
      %4904 = vst.msk [vmem:[%s217 + $0x40] sm:$0xff] %vm4895, %v4871
      %4905 = vst.msk [vmem:[%s217 + $0x48] sm:$0xff] %vm4895, %v4872
      %4906 = vst.msk [vmem:[%s217 + $0x50] sm:$0xff] %vm4895, %v4873
      %4907 = vst.msk [vmem:[%s217 + $0x58] sm:$0xff] %vm4895, %v4874
      %4908 = vst.msk [vmem:[%s217 + $0x60] sm:$0xff] %vm4895, %v4875
      %4909 = vst.msk [vmem:[%s217 + $0x68] sm:$0xff] %vm4895, %v4876
      %4910 = vst.msk [vmem:[%s217 + $0x70] sm:$0xff] %vm4895, %v4877
      %4911 = vst.msk [vmem:[%s217 + $0x78] sm:$0xff] %vm4895, %v4878
      %4912 = vst.msk [vmem:[%s217 + $0x80] sm:$0xff] %vm4895, %v4879
      %4913 = vst.msk [vmem:[%s217 + $0x88] sm:$0xff] %vm4895, %v4880
      %4914 = vst.msk [vmem:[%s217 + $0x90] sm:$0xff] %vm4895, %v4881
      %4915 = vst.msk [vmem:[%s217 + $0x98] sm:$0xff] %vm4895, %v4882
      %4916 = vst.msk [vmem:[%s217 + $0xa0] sm:$0xff] %vm4895, %v4883
      %4917 = vst.msk [vmem:[%s217 + $0xa8] sm:$0xff] %vm4895, %v4884
      %4918 = vst.msk [vmem:[%s217 + $0xb0] sm:$0xff] %vm4895, %v4885
      %4919 = vst.msk [vmem:[%s217 + $0xb8] sm:$0xff] %vm4895, %v4886
      %4920 = vst.msk [vmem:[%s217 + $0xc0] sm:$0xff] %vm4895, %v4887
      %4921 = vst.msk [vmem:[%s217 + $0xc8] sm:$0xff] %vm4895, %v4888
      %4922 = vst.msk [vmem:[%s217 + $0xd0] sm:$0xff] %vm4895, %v4889
      %4923 = vst.msk [vmem:[%s217 + $0xd8] sm:$0xff] %vm4895, %v4890
      %4924 = vst.msk [vmem:[%s217 + $0xe0] sm:$0xff] %vm4895, %v4891
      %4925 = vst.msk [vmem:[%s217 + $0xe8] sm:$0xff] %vm4895, %v4892
      %4926 = vst.msk [vmem:[%s217 + $0xf0] sm:$0xff] %vm4895, %v4893
      %4927 = vst.msk [vmem:[%s217 + $0xf8] sm:$0xff] %vm4895, %v4894
      %p4928 = scmp.lt.s32.totalorder %s15, 1
      %s4929 = scalar_select %p4928, %s15, 1
      %s4930 = smul.addr %s4929, 32
      %s4931 = smul.addr %s4930, 8
      %s4932 = scalar_lea.vmem %s4, %s4931
      // Predicated region
      $region37: #{residual_block_pallas.1} parent=35 // pred_check
        %p4933 = pneg %p127
      $region38: #{residual_block_pallas.1} parent=35 // pred_check_branch
        %4935 = sbr.rel (%p4933) target = $region40
      $region39: #{residual_block_pallas.1} parent=35 // pred_region
        _
      $region40: #{residual_block_pallas.1} parent=35 // pred_fallthru
        _
    $region36: #{residual_block_pallas.1} parent=5 // pred_fallthru
      _
    %p4936 = scmp.le.s32.totalorder 2, %s10
    // Predicated region
    $region41: #{residual_block_pallas.1} parent=5 // pred_check
      %p4937 = pneg %p4936
    $region42: #{residual_block_pallas.1} parent=5 // pred_check_branch
      %4939 = sbr.rel (%p4937) target = $region44
    $region43: #{residual_block_pallas.1} parent=5 // pred_region
      %s4940 = ssub.s32 %s10, 2
      // Predicated region
      $region45: #{residual_block_pallas.1} parent=43 // pred_check
        %p4941 = pneg %p133
      $region46: #{residual_block_pallas.1} parent=43 // pred_check_branch
        %4943 = sbr.rel (%p4941) target = $region48
      $region47: #{residual_block_pallas.1} parent=43 // pred_region
        %p4944 = scmp.lt.s32.totalorder %s16, 1
        %s4945 = scalar_select %p4944, %s16, 1
        %s4946 = smul.addr %s4945, 32
        %s4947 = smul.addr %s4946, 8
        %s4948 = scalar_lea.vmem %s4, %s4947
      $region48: #{residual_block_pallas.1} parent=43 // pred_fallthru
        _
    $region44: #{residual_block_pallas.1} parent=5 // pred_fallthru
      _
  $region6: #{residual_block_pallas.1} parent=0 // loop_footer
    %s14 = sadd.s32 1, %s10
  $region7: #{residual_block_pallas.1} parent=0 // loop_footer_branch
    %9 = sbr.rel target = $region3
  $region8: #{residual_block_pallas.1} parent=0 // loop_exit
    _

</llo_original>
